<compile_context>
chip_gen: v5e
topology: v5e:2x2
jax: 0.10.0
libtpu: 0.0.40
codegen_flags: <defaults>
</compile_context>

<pallas_src>
import functools

import jax
import jax.numpy as jnp
import numpy as np
from jax import lax
from jax.experimental import pallas as pl
from jax.experimental.pallas import tpu as pltpu


def _stb_dy_kernel(feat_ref, w_ref, wf_ref, cvec_ref, c1w_ref, c1b_ref,
                   c2wh_ref, c2wl_ref, fcw_ref, fcb_ref, out_ref,
                   ghi_ref, gtot_ref, *, inv_s, s_total, ts, ragged_s, use_vpu_c2):
    """Grid = (batch tiles, spatial tiles).  The spatial axis accumulates into scratch."""
    s_idx = pl.program_id(1)
    c = feat_ref.shape[1]          # channels (sublane axis of the feature slab)
    cr = c1b_ref.shape[1]          # channels // reduction_rate

    # ---- streaming phase: 3 traversals of the (Bt, C, ts) tile (algorithmic floor) ----
    feat = feat_ref[...].astype(jnp.float32)               # bf16/f32 HBM -> f32 in-register
    if ragged_s:                                            # mask the ragged last S tile
        lane = lax.broadcasted_iota(jnp.int32, (1, 1, ts), 2)
        feat = jnp.where(s_idx * ts + lane < s_total, feat, 0.0)

    # conv2_cat (1x1) + folded BN: per-spatial-position channel (sublane) reduce.
    wdy = jnp.sum(feat * wf_ref[...][None], axis=1, keepdims=True)            # (Bt, 1, ts)
    w_row = w_ref[...].astype(jnp.float32)                                    # (Bt, 1, C)
    bias_b = jnp.sum(w_row * cvec_ref[0:1, :][None], axis=-1, keepdims=True)  # (Bt, 1, 1)
    bconst = cvec_ref[3:4, 0:1]                                               # (1, 1)
    sig = jax.nn.sigmoid(jnp.maximum(wdy + bias_b + bconst[None], 0.0))       # (Bt, 1, ts)

    # Partial global-average pools of [feat*sig, feat*(1-sig)]: lane reduces over S.
    part_hi = jnp.sum(feat * sig, axis=2)                                     # (Bt, C)
    part_tot = jnp.sum(feat, axis=2)                                          # (Bt, C)

    @pl.when(s_idx == 0)
    def _init():
        ghi_ref[...] = part_hi
        gtot_ref[...] = part_tot

    @pl.when(s_idx > 0)
    def _accumulate():
        ghi_ref[...] += part_hi
        gtot_ref[...] += part_tot

    # ---- finalize once per batch tile: channel-attention MLP + fc on pooled rows ----
    @pl.when(s_idx == pl.num_programs(1) - 1)
    def _finalize():
        g_hi = ghi_ref[...] * inv_s                                           # mean(feat*sig)
        g_lo = gtot_ref[...] * inv_s - g_hi                                   # mean(feat*(1-sig))
        h = (jnp.dot(g_hi, c1w_ref[:c, :], preferred_element_type=jnp.float32)
             + jnp.dot(g_lo, c1w_ref[c:, :], preferred_element_type=jnp.float32)
             + c1b_ref[...])                                                  # (Bt, Cr)
        h = jnp.maximum(h, 0.0)
        c2b_hi = cvec_ref[1:2, :]
        c2b_lo = cvec_ref[2:3, :]
        if use_vpu_c2:
            # Cr is tiny: VPU outer-product FMA instead of a nearly empty MXU pass.
            pre_hi = c2b_hi + h[:, 0:1] * c2wh_ref[0:1, :]
            pre_lo = c2b_lo + h[:, 0:1] * c2wl_ref[0:1, :]
            for r in range(1, cr):
                pre_hi = pre_hi + h[:, r:r + 1] * c2wh_ref[r:r + 1, :]
                pre_lo = pre_lo + h[:, r:r + 1] * c2wl_ref[r:r + 1, :]
        else:
            pre_hi = jnp.dot(h, c2wh_ref[...], preferred_element_type=jnp.float32) + c2b_hi
            pre_lo = jnp.dot(h, c2wl_ref[...], preferred_element_type=jnp.float32) + c2b_lo
        cw_hi = jax.nn.sigmoid(pre_hi)                                        # (Bt, C)
        cw_lo = jax.nn.sigmoid(pre_lo)                                        # (Bt, C)
        # hl * cw + hl followed by the outer global average pool  ==  g * (cw + 1)
        gp_hi = g_hi * (cw_hi + 1.0)
        gp_lo = g_lo * (cw_lo + 1.0)
        pred = (jnp.dot(gp_hi, fcw_ref[:c, :], preferred_element_type=jnp.float32)
                + jnp.dot(gp_lo, fcw_ref[c:, :], preferred_element_type=jnp.float32)
                + fcb_ref[...])                                               # (Bt, bits_p)
        out_ref[:, 0, :] = pred


def _tpu_vmem_and_cores():
    """Best-effort hardware query: (per-core VMEM bytes, multiple TensorCores?)."""
    vmem = None
    try:
        vmem = int(getattr(pltpu.get_tpu_info(), "vmem_capacity_bytes", 0)) or None
    except Exception:
        vmem = None
    kind = ""
    try:
        kind = str(jax.devices()[0].device_kind).lower()
    except Exception:
        pass
    is_v7 = ("v7" in kind) or ("tpu7" in kind)
    if vmem is None:
        vmem = (64 << 20) if is_v7 else (128 << 20)
    if is_v7:
        vmem = min(vmem, 64 << 20)            # v7x: 64 MiB per TensorCore
    multi_core = is_v7 or vmem < (100 << 20)  # v5e / v6e report 128 MiB and have 1 TC
    return vmem, multi_core


def _choose_tiling(B, C, S, in_bytes, const_bytes, bits_p):
    """Pick (block_b, block_s, vmem_limit_bytes) from the VMEM budget."""
    vmem_phys, multi_core = _tpu_vmem_and_cores()
    # Raise v5e's 16-MiB scoped default; lands ~45 MiB on v7x, ~90 MiB on v5e/v6e.
    vmem_limit = min(int(vmem_phys * 0.70), 100 << 20)
    stream_budget = max(int(vmem_limit * 0.60) - const_bytes, 1 << 20)
    row_bytes = C * S * in_bytes + C * in_bytes + bits_p * 4   # feat + w_dy + out per row
    bb = stream_budget // (2 * row_bytes)                      # double-buffered rows
    if bb >= 1:
        ts = S
        bb = int(min(bb, B))
        if bb >= 256 and B > bb:                               # MXU-friendly M for big B
            bb = (bb // 256) * 256
        elif bb >= 8 and B > bb:
            bb = (bb // 8) * 8
        if multi_core and B > 1:
            bb = min(bb, -(-B // 2))                           # >= 2 steps for the 2 TCs
            nb = -(-B // bb)
            if 1 < nb <= 8 and nb % 2 == 1:
                bb = -(-B // (nb + 1))                         # even step count
    else:
        # Even one batch row at full S does not fit: stream the spatial axis instead.
        bb = 1
        ts = (stream_budget // (2 * C * in_bytes)) // 128 * 128
        ts = int(min(max(ts, 128), S))
    return max(int(bb), 1), int(ts), int(vmem_limit)


def spatial_transform_block_dy(features, w_dy, params, *, pooling_size=None,
                               block_b=None, block_s=None):
    """features: (B, C, H, W) NCHW (f32 or bf16), w_dy: (B, C, 1, 1). Returns (B, bits) f32."""
    B, C, H, W = features.shape
    if pooling_size is not None:
        # AvgPool2d(pooling_size) reduces to a single position (== global mean)
        # only when pooling_size == H == W; the kernel assumes that.
        assert H == pooling_size and W == pooling_size, "kernel assumes pooling_size == H == W"
    S = H * W
    C2 = 2 * C
    Cr = int(params["conv1_w"].shape[0])
    bits = int(params["fc_w"].shape[0])
    bits_p = -(-bits // 128) * 128            # 128-lane-padded output (unmasked store)
    assert Cr >= 1, "channels // reduction_rate must be >= 1"

    # NCHW is consumed directly: these reshapes are contiguous (no HBM transpose pass),
    # and the input dtype (e.g. bf16) is streamed as-is and cast to f32 in-kernel.
    feat = features.reshape(B, C, S)
    w = w_dy.reshape(B, 1, C)
    in_bytes = int(features.dtype.itemsize)

    f32 = jnp.float32
    # Fold eval-mode BatchNorm2d(1) into conv2_cat.
    eps = 1e-5
    scale = (params["bn_gamma"] / jnp.sqrt(params["bn_var"] + eps)).astype(f32)
    wcat_eff = params["conv2_cat_w"].reshape(C2).astype(f32) * scale                 # (2C,)
    b_eff = ((params["conv2_cat_b"] - params["bn_mean"]) * scale
             + params["bn_beta"]).astype(f32)                                        # scalar

    wf_col = wcat_eff[:C].reshape(C, 1)                     # gate weight on features (column)
    c2b = params["conv2_b"].reshape(C2).astype(f32)
    cvecs = jnp.stack([
        wcat_eff[C:],                                       # ww: gate weight on w_dy
        c2b[:C],                                            # conv2 bias, hi half
        c2b[C:],                                            # conv2 bias, lo half
        jnp.ones((C,), f32) * b_eff,                        # folded BN/conv scalar bias
    ], axis=0)                                              # (4, C)

    # Pre-transpose MLP / fc weights so pooled activations stay row-major (Bt, C).
    c1w = params["conv1_w"].reshape(Cr, C2).T.astype(f32)   # (2C, Cr)
    c1b = params["conv1_b"].reshape(1, Cr).astype(f32)
    c2w = params["conv2_w"].reshape(C2, Cr).astype(f32)
    c2w_hi = jnp.transpose(c2w[:C])                         # (Cr, C)
    c2w_lo = jnp.transpose(c2w[C:])                         # (Cr, C)
    fcw = params["fc_w"].reshape(bits, C2).T.astype(f32)    # (2C, bits)
    fcw = jnp.pad(fcw, ((0, 0), (0, bits_p - bits)))        # zero-padded extra lanes
    fcb = jnp.pad(params["fc_b"].reshape(1, bits).astype(f32), ((0, 0), (0, bits_p - bits)))

    const_bytes = 4 * (C + 4 * C + C2 * Cr + Cr + 2 * Cr * C + C2 * bits_p + bits_p)
    bb, ts, vmem_limit = _choose_tiling(B, C, S, in_bytes, const_bytes, bits_p)
    if block_b is not None:
        bb = int(block_b)
    if block_s is not None:
        ts = int(block_s)
    bb = max(1, min(bb, B))
    ts = max(1, min(ts, S))
    nb = -(-B // bb)
    ns = -(-S // ts)
    ragged_s = (S % ts) != 0     # ragged batch tiles need no mask: rows are independent and
                                 # out-of-range output rows are dropped on writeback.

    kernel = functools.partial(
        _stb_dy_kernel, inv_s=1.0 / S, s_total=S, ts=ts,
        ragged_s=ragged_s, use_vpu_c2=(Cr < 8))

    feat_map = lambda b, s: (b, 0, s)
    batch_map = lambda b, s: (b, 0, 0)
    const_map = lambda b, s: (0, 0)

    def build(single_buffer_consts):
        # Constant operands are DMA'd once; single-buffering frees VMEM for the feature tile.
        ckw = {"pipeline_mode": pl.Buffered(1)} if single_buffer_consts else {}
        return pl.pallas_call(
            kernel,
            out_shape=jax.ShapeDtypeStruct((B, 1, bits_p), jnp.float32),
            grid=(nb, ns),
            in_specs=[
                pl.BlockSpec((bb, C, ts), feat_map),              # features, NCHW block
                pl.BlockSpec((bb, 1, C), batch_map),              # w_dy rows
                pl.BlockSpec((C, 1), const_map, **ckw),           # gate weight on features
                pl.BlockSpec((4, C), const_map, **ckw),           # [ww, c2b_hi, c2b_lo, bn bias]
                pl.BlockSpec((C2, Cr), const_map, **ckw),         # conv1 weight (transposed)
                pl.BlockSpec((1, Cr), const_map, **ckw),          # conv1 bias
                pl.BlockSpec((Cr, C), const_map, **ckw),          # conv2 weight hi (transposed)
                pl.BlockSpec((Cr, C), const_map, **ckw),          # conv2 weight lo (transposed)
                pl.BlockSpec((C2, bits_p), const_map, **ckw),     # fc weight (transposed, padded)
                pl.BlockSpec((1, bits_p), const_map, **ckw),      # fc bias (padded)
            ],
            out_specs=pl.BlockSpec((bb, 1, bits_p), batch_map),
            scratch_shapes=[pltpu.VMEM((bb, C), jnp.float32),     # sum_s feat*sig accumulator
                            pltpu.VMEM((bb, C), jnp.float32)],    # sum_s feat accumulator
            compiler_params=pltpu.CompilerParams(
                dimension_semantics=("parallel", "arbitrary"),
                vmem_limit_bytes=vmem_limit),
        )

    args = (feat, w, wf_col, cvecs, c1w, c1b, c2w_hi, c2w_lo, fcw, fcb)
    try:
        out = build(True)(*args)
    except Exception:
        # pipeline_mode=pl.Buffered(1) is a newer Pallas feature; fall back to defaults.
        out = build(False)(*args)
    return out.reshape(B, bits_p)[:, :bits]


def reference(features, w_dy, params):
    """Literal pure-JAX transcription of the PyTorch forward (eval-mode BN)."""
    B, C, H, W = features.shape
    eps = 1e-5
    gap_expand = jnp.broadcast_to(w_dy, features.shape)
    gapcat = jnp.concatenate([features, gap_expand], axis=1)                    # (B, 2C, H, W)
    wcat = params["conv2_cat_w"].reshape(1, 2 * C, 1, 1)
    w_dy_upd = jnp.sum(gapcat * wcat, axis=1, keepdims=True) + params["conv2_cat_b"]
    bn = ((w_dy_upd - params["bn_mean"]) / jnp.sqrt(params["bn_var"] + eps)
          * params["bn_gamma"] + params["bn_beta"])
    s = jax.nn.sigmoid(jnp.maximum(bn, 0.0))
    hl = jnp.concatenate([features * s, features * (1.0 - s)], axis=1)          # (B, 2C, H, W)
    x = jnp.mean(hl, axis=(2, 3))                                               # (B, 2C)
    h = jnp.maximum(x @ params["conv1_w"].T + params["conv1_b"], 0.0)           # (B, Cr)
    cw = jax.nn.sigmoid(h @ params["conv2_w"].T + params["conv2_b"])            # (B, 2C)
    hl2 = hl * cw[:, :, None, None] + hl
    stn_ap = jnp.mean(hl2, axis=(2, 3))                                         # (B, 2C)
    pred = stn_ap @ params["fc_w"].T + params["fc_b"]
    return pred


def _make_params(key, C, Cr, bits):
    ks = jax.random.split(key, 8)
    return {
        "conv2_cat_w": jax.random.normal(ks[0], (2 * C,), jnp.float32) * 0.2,
        "conv2_cat_b": jax.random.normal(ks[1], (), jnp.float32) * 0.1,
        "bn_gamma": jnp.float32(0.9),
        "bn_beta": jnp.float32(0.1),
        "bn_mean": jnp.float32(0.05),
        "bn_var": jnp.float32(1.2),
        "conv1_w": jax.random.normal(ks[2], (Cr, 2 * C), jnp.float32) * 0.2,
        "conv1_b": jax.random.normal(ks[3], (Cr,), jnp.float32) * 0.1,
        "conv2_w": jax.random.normal(ks[4], (2 * C, Cr), jnp.float32) * 0.2,
        "conv2_b": jax.random.normal(ks[5], (2 * C,), jnp.float32) * 0.1,
        "fc_w": jax.random.normal(ks[6], (bits, 2 * C), jnp.float32) * 0.2,
        "fc_b": jax.random.normal(ks[7], (bits,), jnp.float32) * 0.1,
    }


if __name__ == "__main__":
    key = jax.random.PRNGKey(0)
    k1, k2, k3, k4, k5, k6 = jax.random.split(key, 6)

    # --- check 1: f32 inputs, heuristic tiling (single grid step on v5e/v6e, 2 on v7x) ---
    B, C, H, W, bits = 8, 32, 8, 8, 8
    Cr = C // 16
    params = _make_params(k1, C, Cr, bits)
    features = jax.random.normal(k2, (B, C, H, W), jnp.float32)
    w_dy = jax.random.normal(k3, (B, C, 1, 1), jnp.float32)
    out = jax.block_until_ready(
        spatial_transform_block_dy(features, w_dy, params, pooling_size=H))
    ref = reference(features, w_dy, params)
    np.testing.assert_allclose(np.asarray(out), np.asarray(ref), rtol=1e-4, atol=1e-4)

    # --- check 2: bf16 feature/w_dy streaming (halves HBM DMA), f32 math in-kernel ---
    feat_bf = features.astype(jnp.bfloat16)
    w_bf = w_dy.astype(jnp.bfloat16)
    out_bf = jax.block_until_ready(
        spatial_transform_block_dy(feat_bf, w_bf, params, pooling_size=H))
    ref_bf = reference(feat_bf.astype(jnp.float32), w_bf.astype(jnp.float32), params)
    np.testing.assert_allclose(np.asarray(out_bf), np.asarray(ref_bf), rtol=1e-3, atol=1e-3)

    # --- check 3: forced small tiles -> ragged batch tile + masked ragged S tile ---
    B2, Cc, H2, W2, bits2 = 5, 32, 12, 12, 8     # S = 144 -> tiles of 128 + masked 16
    Cr2 = Cc // 16
    params2 = _make_params(k4, Cc, Cr2, bits2)
    f2 = jax.random.normal(k5, (B2, Cc, H2, W2), jnp.float32)
    w2 = jax.random.normal(k6, (B2, Cc, 1, 1), jnp.float32)
    out2 = jax.block_until_ready(
        spatial_transform_block_dy(f2, w2, params2, pooling_size=H2, block_b=3, block_s=128))
    ref2 = reference(f2, w2, params2)
    np.testing.assert_allclose(np.asarray(out2), np.asarray(ref2), rtol=1e-4, atol=1e-4)

    print("KERNEL_OK")
</pallas_src>

<mosaic_0001>
module attributes {stable_mosaic.version = 11 : i64} {
  func.func @_stb_dy_kernel(%arg0: i32, %arg1: i32, %arg2: memref<8x32x64xf32, #tpu.memory_space<vmem>>, %arg3: memref<8x1x32xf32, #tpu.memory_space<vmem>>, %arg4: memref<32x1xf32, #tpu.memory_space<vmem>>, %arg5: memref<4x32xf32, #tpu.memory_space<vmem>>, %arg6: memref<64x2xf32, #tpu.memory_space<vmem>>, %arg7: memref<1x2xf32, #tpu.memory_space<vmem>>, %arg8: memref<2x32xf32, #tpu.memory_space<vmem>>, %arg9: memref<2x32xf32, #tpu.memory_space<vmem>>, %arg10: memref<64x128xf32, #tpu.memory_space<vmem>>, %arg11: memref<1x128xf32, #tpu.memory_space<vmem>>, %arg12: memref<8x1x128xf32, #tpu.memory_space<vmem>>, %arg13: memref<8x32xf32, #tpu.memory_space<vmem>>, %arg14: memref<8x32xf32, #tpu.memory_space<vmem>>) attributes {dimension_semantics = [#tpu.dimension_semantics<parallel>, #tpu.dimension_semantics<arbitrary>], iteration_bounds = array<i64: 1, 1>, scalar_prefetch = 0 : i64, scratch_operands = 2 : i64, tpu.core_type = #tpu.core_type<tc>, window_params = [{transform_indices = @transform_0, window_bounds = array<i64: 8, 32, 64>}, {transform_indices = @transform_1, window_bounds = array<i64: 8, 1, 32>}, {pipeline_mode = #tpu.pipeline_mode<synchronous>, transform_indices = @transform_2, window_bounds = array<i64: 32, 1>}, {pipeline_mode = #tpu.pipeline_mode<synchronous>, transform_indices = @transform_3, window_bounds = array<i64: 4, 32>}, {pipeline_mode = #tpu.pipeline_mode<synchronous>, transform_indices = @transform_4, window_bounds = array<i64: 64, 2>}, {pipeline_mode = #tpu.pipeline_mode<synchronous>, transform_indices = @transform_5, window_bounds = array<i64: 1, 2>}, {pipeline_mode = #tpu.pipeline_mode<synchronous>, transform_indices = @transform_6, window_bounds = array<i64: 2, 32>}, {pipeline_mode = #tpu.pipeline_mode<synchronous>, transform_indices = @transform_7, window_bounds = array<i64: 2, 32>}, {pipeline_mode = #tpu.pipeline_mode<synchronous>, transform_indices = @transform_8, window_bounds = array<i64: 64, 128>}, {pipeline_mode = #tpu.pipeline_mode<synchronous>, transform_indices = @transform_9, window_bounds = array<i64: 1, 128>}, {transform_indices = @transform_10, window_bounds = array<i64: 8, 1, 128>}]} {
    %c0 = arith.constant 0 : index
    %c0_0 = arith.constant 0 : index
    %c0_1 = arith.constant 0 : index
    %0 = vector.load %arg2[%c0, %c0_0, %c0_1] : memref<8x32x64xf32, #tpu.memory_space<vmem>>, vector<8x32x64xf32>
    %c0_2 = arith.constant 0 : index
    %c0_3 = arith.constant 0 : index
    %1 = vector.load %arg4[%c0_2, %c0_3] : memref<32x1xf32, #tpu.memory_space<vmem>>, vector<32x1xf32>
    %2 = vector.shape_cast %1 : vector<32x1xf32> to vector<1x32x1xf32>
    %3 = vector.broadcast %2 : vector<1x32x1xf32> to vector<8x32x64xf32>
    %4 = arith.mulf %0, %3 : vector<8x32x64xf32>
    %cst = arith.constant dense<0.000000e+00> : vector<8x64xf32>
    %5 = vector.multi_reduction <add>, %4, %cst [1] : vector<8x32x64xf32> to vector<8x64xf32>
    %6 = vector.shape_cast %5 : vector<8x64xf32> to vector<8x1x64xf32>
    %c0_4 = arith.constant 0 : index
    %c0_5 = arith.constant 0 : index
    %c0_6 = arith.constant 0 : index
    %7 = vector.load %arg3[%c0_4, %c0_5, %c0_6] : memref<8x1x32xf32, #tpu.memory_space<vmem>>, vector<8x1x32xf32>
    %c0_7 = arith.constant 0 : index
    %c0_8 = arith.constant 0 : index
    %8 = vector.load %arg5[%c0_7, %c0_8] : memref<4x32xf32, #tpu.memory_space<vmem>>, vector<1x32xf32>
    %9 = vector.shape_cast %8 : vector<1x32xf32> to vector<1x1x32xf32>
    %10 = vector.broadcast %9 : vector<1x1x32xf32> to vector<8x1x32xf32>
    %11 = arith.mulf %7, %10 : vector<8x1x32xf32>
    %cst_9 = arith.constant dense<0.000000e+00> : vector<8x1xf32>
    %12 = vector.multi_reduction <add>, %11, %cst_9 [2] : vector<8x1x32xf32> to vector<8x1xf32>
    %13 = vector.shape_cast %12 : vector<8x1xf32> to vector<8x1x1xf32>
    %c3 = arith.constant 3 : index
    %c0_10 = arith.constant 0 : index
    %14 = vector.load %arg5[%c3, %c0_10] : memref<4x32xf32, #tpu.memory_space<vmem>>, vector<1x1xf32>
    %15 = vector.broadcast %13 : vector<8x1x1xf32> to vector<8x1x64xf32>
    %16 = arith.addf %6, %15 : vector<8x1x64xf32>
    %17 = vector.shape_cast %14 : vector<1x1xf32> to vector<1x1x1xf32>
    %18 = vector.broadcast %17 : vector<1x1x1xf32> to vector<8x1x64xf32>
    %19 = arith.addf %16, %18 : vector<8x1x64xf32>
    %cst_11 = arith.constant 0.000000e+00 : f32
    %20 = vector.broadcast %cst_11 : f32 to vector<8x1x64xf32>
    %21 = arith.maximumf %19, %20 : vector<8x1x64xf32>
    %22 = arith.negf %21 : vector<8x1x64xf32>
    %23 = math.exp %22 : vector<8x1x64xf32>
    %cst_12 = arith.constant 1.000000e+00 : f32
    %24 = vector.broadcast %cst_12 : f32 to vector<8x1x64xf32>
    %25 = arith.addf %24, %23 : vector<8x1x64xf32>
    %26 = arith.divf %24, %25 : vector<8x1x64xf32>
    %27 = vector.broadcast %26 : vector<8x1x64xf32> to vector<8x32x64xf32>
    %28 = arith.mulf %0, %27 : vector<8x32x64xf32>
    %cst_13 = arith.constant dense<0.000000e+00> : vector<8x32xf32>
    %29 = vector.multi_reduction <add>, %28, %cst_13 [2] : vector<8x32x64xf32> to vector<8x32xf32>
    %cst_14 = arith.constant dense<0.000000e+00> : vector<8x32xf32>
    %30 = vector.multi_reduction <add>, %0, %cst_14 [2] : vector<8x32x64xf32> to vector<8x32xf32>
    %c0_i32 = arith.constant 0 : i32
    %31 = arith.cmpi eq, %arg1, %c0_i32 : i32
    %32 = arith.extui %31 : i1 to i32
    %c0_i32_15 = arith.constant 0 : i32
    %33 = arith.cmpi ne, %32, %c0_i32_15 : i32
    scf.if %33 {
      %c0_20 = arith.constant 0 : index
      %c0_21 = arith.constant 0 : index
      %40 = vector.load %arg13[%c0_20, %c0_21] : memref<8x32xf32, #tpu.memory_space<vmem>>, vector<8x32xf32>
      tpu.vector_store %arg13[%c0_20, %c0_21], %29 {strides = array<i32>} : memref<8x32xf32, #tpu.memory_space<vmem>>, vector<8x32xf32>,
      %c0_22 = arith.constant 0 : index
      %c0_23 = arith.constant 0 : index
      %41 = vector.load %arg14[%c0_22, %c0_23] : memref<8x32xf32, #tpu.memory_space<vmem>>, vector<8x32xf32>
      tpu.vector_store %arg14[%c0_22, %c0_23], %30 {strides = array<i32>} : memref<8x32xf32, #tpu.memory_space<vmem>>, vector<8x32xf32>,
    } else {
    }
    %c0_i32_16 = arith.constant 0 : i32
    %34 = arith.cmpi sgt, %arg1, %c0_i32_16 : i32
    %35 = arith.extui %34 : i1 to i32
    %c0_i32_17 = arith.constant 0 : i32
    %36 = arith.cmpi ne, %35, %c0_i32_17 : i32
    scf.if %36 {
      %c0_20 = arith.constant 0 : index
      %c0_21 = arith.constant 0 : index
      %40 = vector.load %arg13[%c0_20, %c0_21] : memref<8x32xf32, #tpu.memory_space<vmem>>, vector<8x32xf32>
      %41 = arith.addf %40, %29 : vector<8x32xf32>
      %c0_22 = arith.constant 0 : index
      %c0_23 = arith.constant 0 : index
      %42 = vector.load %arg13[%c0_22, %c0_23] : memref<8x32xf32, #tpu.memory_space<vmem>>, vector<8x32xf32>
      tpu.vector_store %arg13[%c0_22, %c0_23], %41 {strides = array<i32>} : memref<8x32xf32, #tpu.memory_space<vmem>>, vector<8x32xf32>,
      %c0_24 = arith.constant 0 : index
      %c0_25 = arith.constant 0 : index
      %43 = vector.load %arg14[%c0_24, %c0_25] : memref<8x32xf32, #tpu.memory_space<vmem>>, vector<8x32xf32>
      %44 = arith.addf %43, %30 : vector<8x32xf32>
      %c0_26 = arith.constant 0 : index
      %c0_27 = arith.constant 0 : index
      %45 = vector.load %arg14[%c0_26, %c0_27] : memref<8x32xf32, #tpu.memory_space<vmem>>, vector<8x32xf32>
      tpu.vector_store %arg14[%c0_26, %c0_27], %44 {strides = array<i32>} : memref<8x32xf32, #tpu.memory_space<vmem>>, vector<8x32xf32>,
    } else {
    }
    %c0_i32_18 = arith.constant 0 : i32
    %37 = arith.cmpi eq, %arg1, %c0_i32_18 : i32
    %38 = arith.extui %37 : i1 to i32
    %c0_i32_19 = arith.constant 0 : i32
    %39 = arith.cmpi ne, %38, %c0_i32_19 : i32
    scf.if %39 {
      %c0_20 = arith.constant 0 : index
      %c0_21 = arith.constant 0 : index
      %40 = vector.load %arg13[%c0_20, %c0_21] : memref<8x32xf32, #tpu.memory_space<vmem>>, vector<8x32xf32>
      %cst_22 = arith.constant 1.562500e-02 : f32
      %41 = vector.broadcast %cst_22 : f32 to vector<8x32xf32>
      %42 = arith.mulf %40, %41 : vector<8x32xf32>
      %c0_23 = arith.constant 0 : index
      %c0_24 = arith.constant 0 : index
      %43 = vector.load %arg14[%c0_23, %c0_24] : memref<8x32xf32, #tpu.memory_space<vmem>>, vector<8x32xf32>
      %cst_25 = arith.constant 1.562500e-02 : f32
      %44 = vector.broadcast %cst_25 : f32 to vector<8x32xf32>
      %45 = arith.mulf %43, %44 : vector<8x32xf32>
      %46 = arith.subf %45, %42 : vector<8x32xf32>
      %c0_26 = arith.constant 0 : index
      %c0_27 = arith.constant 0 : index
      %47 = vector.load %arg6[%c0_26, %c0_27] : memref<64x2xf32, #tpu.memory_space<vmem>>, vector<32x2xf32>
      %cst_28 = arith.constant dense<0.000000e+00> : vector<8x2xf32>
      %48 = tpu.matmul %42, %47, %cst_28 {dimension_numbers = #tpu.dot_dimension_numbers<[1], [0], [0], [1], [0, 0, 1, 1], [], []>} : vector<8x32xf32>, vector<32x2xf32>, vector<8x2xf32> -> vector<8x2xf32>
      %c32 = arith.constant 32 : index
      %c0_29 = arith.constant 0 : index
      %49 = vector.load %arg6[%c32, %c0_29] : memref<64x2xf32, #tpu.memory_space<vmem>>, vector<32x2xf32>
      %cst_30 = arith.constant dense<0.000000e+00> : vector<8x2xf32>
      %50 = tpu.matmul %46, %49, %cst_30 {dimension_numbers = #tpu.dot_dimension_numbers<[1], [0], [0], [1], [0, 0, 1, 1], [], []>} : vector<8x32xf32>, vector<32x2xf32>, vector<8x2xf32> -> vector<8x2xf32>
      %51 = arith.addf %48, %50 : vector<8x2xf32>
      %c0_31 = arith.constant 0 : index
      %c0_32 = arith.constant 0 : index
      %52 = vector.load %arg7[%c0_31, %c0_32] : memref<1x2xf32, #tpu.memory_space<vmem>>, vector<1x2xf32>
      %53 = vector.broadcast %52 : vector<1x2xf32> to vector<8x2xf32>
      %54 = arith.addf %51, %53 : vector<8x2xf32>
      %cst_33 = arith.constant 0.000000e+00 : f32
      %55 = vector.broadcast %cst_33 : f32 to vector<8x2xf32>
      %56 = arith.maximumf %54, %55 : vector<8x2xf32>
      %c1 = arith.constant 1 : index
      %c0_34 = arith.constant 0 : index
      %57 = vector.load %arg5[%c1, %c0_34] : memref<4x32xf32, #tpu.memory_space<vmem>>, vector<1x32xf32>
      %c2 = arith.constant 2 : index
      %c0_35 = arith.constant 0 : index
      %58 = vector.load %arg5[%c2, %c0_35] : memref<4x32xf32, #tpu.memory_space<vmem>>, vector<1x32xf32>
      %59 = vector.extract_strided_slice %56 {offsets = [0, 0], sizes = [8, 1], strides = [1, 1]} : vector<8x2xf32> to vector<8x1xf32>
      %c0_36 = arith.constant 0 : index
      %c0_37 = arith.constant 0 : index
      %60 = vector.load %arg8[%c0_36, %c0_37] : memref<2x32xf32, #tpu.memory_space<vmem>>, vector<1x32xf32>
      %61 = vector.broadcast %59 : vector<8x1xf32> to vector<8x32xf32>
      %62 = vector.broadcast %60 : vector<1x32xf32> to vector<8x32xf32>
      %63 = arith.mulf %61, %62 : vector<8x32xf32>
      %64 = vector.broadcast %57 : vector<1x32xf32> to vector<8x32xf32>
      %65 = arith.addf %64, %63 : vector<8x32xf32>
      %66 = vector.extract_strided_slice %56 {offsets = [0, 0], sizes = [8, 1], strides = [1, 1]} : vector<8x2xf32> to vector<8x1xf32>
      %c0_38 = arith.constant 0 : index
      %c0_39 = arith.constant 0 : index
      %67 = vector.load %arg9[%c0_38, %c0_39] : memref<2x32xf32, #tpu.memory_space<vmem>>, vector<1x32xf32>
      %68 = vector.broadcast %66 : vector<8x1xf32> to vector<8x32xf32>
      %69 = vector.broadcast %67 : vector<1x32xf32> to vector<8x32xf32>
      %70 = arith.mulf %68, %69 : vector<8x32xf32>
      %71 = vector.broadcast %58 : vector<1x32xf32> to vector<8x32xf32>
      %72 = arith.addf %71, %70 : vector<8x32xf32>
      %73 = vector.extract_strided_slice %56 {offsets = [0, 1], sizes = [8, 1], strides = [1, 1]} : vector<8x2xf32> to vector<8x1xf32>
      %c1_40 = arith.constant 1 : index
      %c0_41 = arith.constant 0 : index
      %74 = vector.load %arg8[%c1_40, %c0_41] : memref<2x32xf32, #tpu.memory_space<vmem>>, vector<1x32xf32>
      %75 = vector.broadcast %73 : vector<8x1xf32> to vector<8x32xf32>
      %76 = vector.broadcast %74 : vector<1x32xf32> to vector<8x32xf32>
      %77 = arith.mulf %75, %76 : vector<8x32xf32>
      %78 = arith.addf %65, %77 : vector<8x32xf32>
      %79 = vector.extract_strided_slice %56 {offsets = [0, 1], sizes = [8, 1], strides = [1, 1]} : vector<8x2xf32> to vector<8x1xf32>
      %c1_42 = arith.constant 1 : index
      %c0_43 = arith.constant 0 : index
      %80 = vector.load %arg9[%c1_42, %c0_43] : memref<2x32xf32, #tpu.memory_space<vmem>>, vector<1x32xf32>
      %81 = vector.broadcast %79 : vector<8x1xf32> to vector<8x32xf32>
      %82 = vector.broadcast %80 : vector<1x32xf32> to vector<8x32xf32>
      %83 = arith.mulf %81, %82 : vector<8x32xf32>
      %84 = arith.addf %72, %83 : vector<8x32xf32>
      %85 = arith.negf %78 : vector<8x32xf32>
      %86 = math.exp %85 : vector<8x32xf32>
      %cst_44 = arith.constant 1.000000e+00 : f32
      %87 = vector.broadcast %cst_44 : f32 to vector<8x32xf32>
      %88 = arith.addf %87, %86 : vector<8x32xf32>
      %89 = arith.divf %87, %88 : vector<8x32xf32>
      %90 = arith.negf %84 : vector<8x32xf32>
      %91 = math.exp %90 : vector<8x32xf32>
      %cst_45 = arith.constant 1.000000e+00 : f32
      %92 = vector.broadcast %cst_45 : f32 to vector<8x32xf32>
      %93 = arith.addf %92, %91 : vector<8x32xf32>
      %94 = arith.divf %92, %93 : vector<8x32xf32>
      %cst_46 = arith.constant 1.000000e+00 : f32
      %95 = vector.broadcast %cst_46 : f32 to vector<8x32xf32>
      %96 = arith.addf %89, %95 : vector<8x32xf32>
      %97 = arith.mulf %42, %96 : vector<8x32xf32>
      %cst_47 = arith.constant 1.000000e+00 : f32
      %98 = vector.broadcast %cst_47 : f32 to vector<8x32xf32>
      %99 = arith.addf %94, %98 : vector<8x32xf32>
      %100 = arith.mulf %46, %99 : vector<8x32xf32>
      %c0_48 = arith.constant 0 : index
      %c0_49 = arith.constant 0 : index
      %101 = vector.load %arg10[%c0_48, %c0_49] : memref<64x128xf32, #tpu.memory_space<vmem>>, vector<32x128xf32>
      %cst_50 = arith.constant dense<0.000000e+00> : vector<8x128xf32>
      %102 = tpu.matmul %97, %101, %cst_50 {dimension_numbers = #tpu.dot_dimension_numbers<[1], [0], [0], [1], [0, 0, 1, 1], [], []>} : vector<8x32xf32>, vector<32x128xf32>, vector<8x128xf32> -> vector<8x128xf32>
      %c32_51 = arith.constant 32 : index
      %c0_52 = arith.constant 0 : index
      %103 = vector.load %arg10[%c32_51, %c0_52] : memref<64x128xf32, #tpu.memory_space<vmem>>, vector<32x128xf32>
      %cst_53 = arith.constant dense<0.000000e+00> : vector<8x128xf32>
      %104 = tpu.matmul %100, %103, %cst_53 {dimension_numbers = #tpu.dot_dimension_numbers<[1], [0], [0], [1], [0, 0, 1, 1], [], []>} : vector<8x32xf32>, vector<32x128xf32>, vector<8x128xf32> -> vector<8x128xf32>
      %105 = arith.addf %102, %104 : vector<8x128xf32>
      %c0_54 = arith.constant 0 : index
      %c0_55 = arith.constant 0 : index
      %106 = vector.load %arg11[%c0_54, %c0_55] : memref<1x128xf32, #tpu.memory_space<vmem>>, vector<1x128xf32>
      %107 = vector.broadcast %106 : vector<1x128xf32> to vector<8x128xf32>
      %108 = arith.addf %105, %107 : vector<8x128xf32>
      %c0_56 = arith.constant 0 : index
      %c0_57 = arith.constant 0 : index
      %c0_58 = arith.constant 0 : index
      %109 = vector.load %arg12[%c0_56, %c0_57, %c0_58] : memref<8x1x128xf32, #tpu.memory_space<vmem>>, vector<8x1x128xf32>
      %110 = vector.shape_cast %109 : vector<8x1x128xf32> to vector<8x128xf32>
      %111 = vector.shape_cast %108 : vector<8x128xf32> to vector<8x1x128xf32>
      tpu.vector_store %arg12[%c0_56, %c0_57, %c0_58], %111 {strides = array<i32>} : memref<8x1x128xf32, #tpu.memory_space<vmem>>, vector<8x1x128xf32>,
    } else {
    }
    return
  }
  func.func @transform_0(%arg0: i32, %arg1: i32) -> (i32, i32, i32) {
    %c0_i32 = arith.constant 0 : i32
    %c0_i32_0 = arith.constant 0 : i32
    return %arg0, %c0_i32, %arg1 : i32, i32, i32
  }
  func.func @transform_1(%arg0: i32, %arg1: i32) -> (i32, i32, i32) {
    %c0_i32 = arith.constant 0 : i32
    %c0_i32_0 = arith.constant 0 : i32
    %c0_i32_1 = arith.constant 0 : i32
    return %arg0, %c0_i32, %c0_i32_0 : i32, i32, i32
  }
  func.func @transform_2(%arg0: i32, %arg1: i32) -> (i32, i32) {
    %c0_i32 = arith.constant 0 : i32
    %c0_i32_0 = arith.constant 0 : i32
    %c0_i32_1 = arith.constant 0 : i32
    return %c0_i32, %c0_i32_0 : i32, i32
  }
  func.func @transform_3(%arg0: i32, %arg1: i32) -> (i32, i32) {
    %c0_i32 = arith.constant 0 : i32
    %c0_i32_0 = arith.constant 0 : i32
    %c0_i32_1 = arith.constant 0 : i32
    return %c0_i32, %c0_i32_0 : i32, i32
  }
  func.func @transform_4(%arg0: i32, %arg1: i32) -> (i32, i32) {
    %c0_i32 = arith.constant 0 : i32
    %c0_i32_0 = arith.constant 0 : i32
    %c0_i32_1 = arith.constant 0 : i32
    return %c0_i32, %c0_i32_0 : i32, i32
  }
  func.func @transform_5(%arg0: i32, %arg1: i32) -> (i32, i32) {
    %c0_i32 = arith.constant 0 : i32
    %c0_i32_0 = arith.constant 0 : i32
    %c0_i32_1 = arith.constant 0 : i32
    return %c0_i32, %c0_i32_0 : i32, i32
  }
  func.func @transform_6(%arg0: i32, %arg1: i32) -> (i32, i32) {
    %c0_i32 = arith.constant 0 : i32
    %c0_i32_0 = arith.constant 0 : i32
    %c0_i32_1 = arith.constant 0 : i32
    return %c0_i32, %c0_i32_0 : i32, i32
  }
  func.func @transform_7(%arg0: i32, %arg1: i32) -> (i32, i32) {
    %c0_i32 = arith.constant 0 : i32
    %c0_i32_0 = arith.constant 0 : i32
    %c0_i32_1 = arith.constant 0 : i32
    return %c0_i32, %c0_i32_0 : i32, i32
  }
  func.func @transform_8(%arg0: i32, %arg1: i32) -> (i32, i32) {
    %c0_i32 = arith.constant 0 : i32
    %c0_i32_0 = arith.constant 0 : i32
    %c0_i32_1 = arith.constant 0 : i32
    return %c0_i32, %c0_i32_0 : i32, i32
  }
  func.func @transform_9(%arg0: i32, %arg1: i32) -> (i32, i32) {
    %c0_i32 = arith.constant 0 : i32
    %c0_i32_0 = arith.constant 0 : i32
    %c0_i32_1 = arith.constant 0 : i32
    return %c0_i32, %c0_i32_0 : i32, i32
  }
  func.func @transform_10(%arg0: i32, %arg1: i32) -> (i32, i32, i32) {
    %c0_i32 = arith.constant 0 : i32
    %c0_i32_0 = arith.constant 0 : i32
    %c0_i32_1 = arith.constant 0 : i32
    return %arg0, %c0_i32, %c0_i32_0 : i32, i32, i32
  }
}

module attributes {stable_mosaic.version = 11 : i64} {
  func.func @_stb_dy_kernel(%arg0: i32, %arg1: i32, %arg2: memref<8x32x64xf32, #tpu.memory_space<vmem>>, %arg3: memref<8x1x32xf32, #tpu.memory_space<vmem>>, %arg4: memref<32x1xf32, #tpu.memory_space<vmem>>, %arg5: memref<4x32xf32, #tpu.memory_space<vmem>>, %arg6: memref<64x2xf32, #tpu.memory_space<vmem>>, %arg7: memref<1x2xf32, #tpu.memory_space<vmem>>, %arg8: memref<2x32xf32, #tpu.memory_space<vmem>>, %arg9: memref<2x32xf32, #tpu.memory_space<vmem>>, %arg10: memref<64x128xf32, #tpu.memory_space<vmem>>, %arg11: memref<1x128xf32, #tpu.memory_space<vmem>>, %arg12: memref<8x1x128xf32, #tpu.memory_space<vmem>>, %arg13: memref<8x32xf32, #tpu.memory_space<vmem>>, %arg14: memref<8x32xf32, #tpu.memory_space<vmem>>) attributes {dimension_semantics = [#tpu.dimension_semantics<parallel>, #tpu.dimension_semantics<arbitrary>], iteration_bounds = array<i64: 1, 1>, scalar_prefetch = 0 : i64, scratch_operands = 2 : i64, tpu.core_type = #tpu.core_type<tc>, window_params = [{transform_indices = @transform_0, window_bounds = array<i64: 8, 32, 64>}, {transform_indices = @transform_1, window_bounds = array<i64: 8, 1, 32>}, {pipeline_mode = #tpu.pipeline_mode<synchronous>, transform_indices = @transform_2, window_bounds = array<i64: 32, 1>}, {pipeline_mode = #tpu.pipeline_mode<synchronous>, transform_indices = @transform_3, window_bounds = array<i64: 4, 32>}, {pipeline_mode = #tpu.pipeline_mode<synchronous>, transform_indices = @transform_4, window_bounds = array<i64: 64, 2>}, {pipeline_mode = #tpu.pipeline_mode<synchronous>, transform_indices = @transform_5, window_bounds = array<i64: 1, 2>}, {pipeline_mode = #tpu.pipeline_mode<synchronous>, transform_indices = @transform_6, window_bounds = array<i64: 2, 32>}, {pipeline_mode = #tpu.pipeline_mode<synchronous>, transform_indices = @transform_7, window_bounds = array<i64: 2, 32>}, {pipeline_mode = #tpu.pipeline_mode<synchronous>, transform_indices = @transform_8, window_bounds = array<i64: 64, 128>}, {pipeline_mode = #tpu.pipeline_mode<synchronous>, transform_indices = @transform_9, window_bounds = array<i64: 1, 128>}, {transform_indices = @transform_10, window_bounds = array<i64: 8, 1, 128>}]} {
    %c0 = arith.constant 0 : index
    %c0_0 = arith.constant 0 : index
    %c0_1 = arith.constant 0 : index
    %0 = vector.load %arg2[%c0, %c0_0, %c0_1] : memref<8x32x64xf32, #tpu.memory_space<vmem>>, vector<8x32x64xf32>
    %c0_2 = arith.constant 0 : index
    %c0_3 = arith.constant 0 : index
    %1 = vector.load %arg4[%c0_2, %c0_3] : memref<32x1xf32, #tpu.memory_space<vmem>>, vector<32x1xf32>
    %2 = vector.shape_cast %1 : vector<32x1xf32> to vector<1x32x1xf32>
    %3 = vector.broadcast %2 : vector<1x32x1xf32> to vector<8x32x64xf32>
    %4 = arith.mulf %0, %3 : vector<8x32x64xf32>
    %cst = arith.constant dense<0.000000e+00> : vector<8x64xf32>
    %5 = vector.multi_reduction <add>, %4, %cst [1] : vector<8x32x64xf32> to vector<8x64xf32>
    %6 = vector.shape_cast %5 : vector<8x64xf32> to vector<8x1x64xf32>
    %c0_4 = arith.constant 0 : index
    %c0_5 = arith.constant 0 : index
    %c0_6 = arith.constant 0 : index
    %7 = vector.load %arg3[%c0_4, %c0_5, %c0_6] : memref<8x1x32xf32, #tpu.memory_space<vmem>>, vector<8x1x32xf32>
    %c0_7 = arith.constant 0 : index
    %c0_8 = arith.constant 0 : index
    %8 = vector.load %arg5[%c0_7, %c0_8] : memref<4x32xf32, #tpu.memory_space<vmem>>, vector<1x32xf32>
    %9 = vector.shape_cast %8 : vector<1x32xf32> to vector<1x1x32xf32>
    %10 = vector.broadcast %9 : vector<1x1x32xf32> to vector<8x1x32xf32>
    %11 = arith.mulf %7, %10 : vector<8x1x32xf32>
    %cst_9 = arith.constant dense<0.000000e+00> : vector<8x1xf32>
    %12 = vector.multi_reduction <add>, %11, %cst_9 [2] : vector<8x1x32xf32> to vector<8x1xf32>
    %13 = vector.shape_cast %12 : vector<8x1xf32> to vector<8x1x1xf32>
    %c3 = arith.constant 3 : index
    %c0_10 = arith.constant 0 : index
    %14 = vector.load %arg5[%c3, %c0_10] : memref<4x32xf32, #tpu.memory_space<vmem>>, vector<1x1xf32>
    %15 = vector.broadcast %13 : vector<8x1x1xf32> to vector<8x1x64xf32>
    %16 = arith.addf %6, %15 : vector<8x1x64xf32>
    %17 = vector.shape_cast %14 : vector<1x1xf32> to vector<1x1x1xf32>
    %18 = vector.broadcast %17 : vector<1x1x1xf32> to vector<8x1x64xf32>
    %19 = arith.addf %16, %18 : vector<8x1x64xf32>
    %cst_11 = arith.constant 0.000000e+00 : f32
    %20 = vector.broadcast %cst_11 : f32 to vector<8x1x64xf32>
    %21 = arith.maximumf %19, %20 : vector<8x1x64xf32>
    %22 = arith.negf %21 : vector<8x1x64xf32>
    %23 = math.exp %22 : vector<8x1x64xf32>
    %cst_12 = arith.constant 1.000000e+00 : f32
    %24 = vector.broadcast %cst_12 : f32 to vector<8x1x64xf32>
    %25 = arith.addf %24, %23 : vector<8x1x64xf32>
    %26 = arith.divf %24, %25 : vector<8x1x64xf32>
    %27 = vector.broadcast %26 : vector<8x1x64xf32> to vector<8x32x64xf32>
    %28 = arith.mulf %0, %27 : vector<8x32x64xf32>
    %cst_13 = arith.constant dense<0.000000e+00> : vector<8x32xf32>
    %29 = vector.multi_reduction <add>, %28, %cst_13 [2] : vector<8x32x64xf32> to vector<8x32xf32>
    %cst_14 = arith.constant dense<0.000000e+00> : vector<8x32xf32>
    %30 = vector.multi_reduction <add>, %0, %cst_14 [2] : vector<8x32x64xf32> to vector<8x32xf32>
    %c0_i32 = arith.constant 0 : i32
    %31 = arith.cmpi eq, %arg1, %c0_i32 : i32
    %32 = arith.extui %31 : i1 to i32
    %c0_i32_15 = arith.constant 0 : i32
    %33 = arith.cmpi ne, %32, %c0_i32_15 : i32
    scf.if %33 {
      %c0_20 = arith.constant 0 : index
      %c0_21 = arith.constant 0 : index
      %40 = vector.load %arg13[%c0_20, %c0_21] : memref<8x32xf32, #tpu.memory_space<vmem>>, vector<8x32xf32>
      tpu.vector_store %arg13[%c0_20, %c0_21], %29 {strides = array<i32>} : memref<8x32xf32, #tpu.memory_space<vmem>>, vector<8x32xf32>,
      %c0_22 = arith.constant 0 : index
      %c0_23 = arith.constant 0 : index
      %41 = vector.load %arg14[%c0_22, %c0_23] : memref<8x32xf32, #tpu.memory_space<vmem>>, vector<8x32xf32>
      tpu.vector_store %arg14[%c0_22, %c0_23], %30 {strides = array<i32>} : memref<8x32xf32, #tpu.memory_space<vmem>>, vector<8x32xf32>,
    } else {
    }
    %c0_i32_16 = arith.constant 0 : i32
    %34 = arith.cmpi sgt, %arg1, %c0_i32_16 : i32
    %35 = arith.extui %34 : i1 to i32
    %c0_i32_17 = arith.constant 0 : i32
    %36 = arith.cmpi ne, %35, %c0_i32_17 : i32
    scf.if %36 {
      %c0_20 = arith.constant 0 : index
      %c0_21 = arith.constant 0 : index
      %40 = vector.load %arg13[%c0_20, %c0_21] : memref<8x32xf32, #tpu.memory_space<vmem>>, vector<8x32xf32>
      %41 = arith.addf %40, %29 : vector<8x32xf32>
      %c0_22 = arith.constant 0 : index
      %c0_23 = arith.constant 0 : index
      %42 = vector.load %arg13[%c0_22, %c0_23] : memref<8x32xf32, #tpu.memory_space<vmem>>, vector<8x32xf32>
      tpu.vector_store %arg13[%c0_22, %c0_23], %41 {strides = array<i32>} : memref<8x32xf32, #tpu.memory_space<vmem>>, vector<8x32xf32>,
      %c0_24 = arith.constant 0 : index
      %c0_25 = arith.constant 0 : index
      %43 = vector.load %arg14[%c0_24, %c0_25] : memref<8x32xf32, #tpu.memory_space<vmem>>, vector<8x32xf32>
      %44 = arith.addf %43, %30 : vector<8x32xf32>
      %c0_26 = arith.constant 0 : index
      %c0_27 = arith.constant 0 : index
      %45 = vector.load %arg14[%c0_26, %c0_27] : memref<8x32xf32, #tpu.memory_space<vmem>>, vector<8x32xf32>
      tpu.vector_store %arg14[%c0_26, %c0_27], %44 {strides = array<i32>} : memref<8x32xf32, #tpu.memory_space<vmem>>, vector<8x32xf32>,
    } else {
    }
    %c0_i32_18 = arith.constant 0 : i32
    %37 = arith.cmpi eq, %arg1, %c0_i32_18 : i32
    %38 = arith.extui %37 : i1 to i32
    %c0_i32_19 = arith.constant 0 : i32
    %39 = arith.cmpi ne, %38, %c0_i32_19 : i32
    scf.if %39 {
      %c0_20 = arith.constant 0 : index
      %c0_21 = arith.constant 0 : index
      %40 = vector.load %arg13[%c0_20, %c0_21] : memref<8x32xf32, #tpu.memory_space<vmem>>, vector<8x32xf32>
      %cst_22 = arith.constant 1.562500e-02 : f32
      %41 = vector.broadcast %cst_22 : f32 to vector<8x32xf32>
      %42 = arith.mulf %40, %41 : vector<8x32xf32>
      %c0_23 = arith.constant 0 : index
      %c0_24 = arith.constant 0 : index
      %43 = vector.load %arg14[%c0_23, %c0_24] : memref<8x32xf32, #tpu.memory_space<vmem>>, vector<8x32xf32>
      %cst_25 = arith.constant 1.562500e-02 : f32
      %44 = vector.broadcast %cst_25 : f32 to vector<8x32xf32>
      %45 = arith.mulf %43, %44 : vector<8x32xf32>
      %46 = arith.subf %45, %42 : vector<8x32xf32>
      %c0_26 = arith.constant 0 : index
      %c0_27 = arith.constant 0 : index
      %47 = vector.load %arg6[%c0_26, %c0_27] : memref<64x2xf32, #tpu.memory_space<vmem>>, vector<32x2xf32>
      %cst_28 = arith.constant dense<0.000000e+00> : vector<8x2xf32>
      %48 = tpu.matmul %42, %47, %cst_28 {dimension_numbers = #tpu.dot_dimension_numbers<[1], [0], [0], [1], [0, 0, 1, 1], [], []>} : vector<8x32xf32>, vector<32x2xf32>, vector<8x2xf32> -> vector<8x2xf32>
      %c32 = arith.constant 32 : index
      %c0_29 = arith.constant 0 : index
      %49 = vector.load %arg6[%c32, %c0_29] : memref<64x2xf32, #tpu.memory_space<vmem>>, vector<32x2xf32>
      %cst_30 = arith.constant dense<0.000000e+00> : vector<8x2xf32>
      %50 = tpu.matmul %46, %49, %cst_30 {dimension_numbers = #tpu.dot_dimension_numbers<[1], [0], [0], [1], [0, 0, 1, 1], [], []>} : vector<8x32xf32>, vector<32x2xf32>, vector<8x2xf32> -> vector<8x2xf32>
      %51 = arith.addf %48, %50 : vector<8x2xf32>
      %c0_31 = arith.constant 0 : index
      %c0_32 = arith.constant 0 : index
      %52 = vector.load %arg7[%c0_31, %c0_32] : memref<1x2xf32, #tpu.memory_space<vmem>>, vector<1x2xf32>
      %53 = vector.broadcast %52 : vector<1x2xf32> to vector<8x2xf32>
      %54 = arith.addf %51, %53 : vector<8x2xf32>
      %cst_33 = arith.constant 0.000000e+00 : f32
      %55 = vector.broadcast %cst_33 : f32 to vector<8x2xf32>
      %56 = arith.maximumf %54, %55 : vector<8x2xf32>
      %c1 = arith.constant 1 : index
      %c0_34 = arith.constant 0 : index
      %57 = vector.load %arg5[%c1, %c0_34] : memref<4x32xf32, #tpu.memory_space<vmem>>, vector<1x32xf32>
      %c2 = arith.constant 2 : index
      %c0_35 = arith.constant 0 : index
      %58 = vector.load %arg5[%c2, %c0_35] : memref<4x32xf32, #tpu.memory_space<vmem>>, vector<1x32xf32>
      %59 = vector.extract_strided_slice %56 {offsets = [0, 0], sizes = [8, 1], strides = [1, 1]} : vector<8x2xf32> to vector<8x1xf32>
      %c0_36 = arith.constant 0 : index
      %c0_37 = arith.constant 0 : index
      %60 = vector.load %arg8[%c0_36, %c0_37] : memref<2x32xf32, #tpu.memory_space<vmem>>, vector<1x32xf32>
      %61 = vector.broadcast %59 : vector<8x1xf32> to vector<8x32xf32>
      %62 = vector.broadcast %60 : vector<1x32xf32> to vector<8x32xf32>
      %63 = arith.mulf %61, %62 : vector<8x32xf32>
      %64 = vector.broadcast %57 : vector<1x32xf32> to vector<8x32xf32>
      %65 = arith.addf %64, %63 : vector<8x32xf32>
      %66 = vector.extract_strided_slice %56 {offsets = [0, 0], sizes = [8, 1], strides = [1, 1]} : vector<8x2xf32> to vector<8x1xf32>
      %c0_38 = arith.constant 0 : index
      %c0_39 = arith.constant 0 : index
      %67 = vector.load %arg9[%c0_38, %c0_39] : memref<2x32xf32, #tpu.memory_space<vmem>>, vector<1x32xf32>
      %68 = vector.broadcast %66 : vector<8x1xf32> to vector<8x32xf32>
      %69 = vector.broadcast %67 : vector<1x32xf32> to vector<8x32xf32>
      %70 = arith.mulf %68, %69 : vector<8x32xf32>
      %71 = vector.broadcast %58 : vector<1x32xf32> to vector<8x32xf32>
      %72 = arith.addf %71, %70 : vector<8x32xf32>
      %73 = vector.extract_strided_slice %56 {offsets = [0, 1], sizes = [8, 1], strides = [1, 1]} : vector<8x2xf32> to vector<8x1xf32>
      %c1_40 = arith.constant 1 : index
      %c0_41 = arith.constant 0 : index
      %74 = vector.load %arg8[%c1_40, %c0_41] : memref<2x32xf32, #tpu.memory_space<vmem>>, vector<1x32xf32>
      %75 = vector.broadcast %73 : vector<8x1xf32> to vector<8x32xf32>
      %76 = vector.broadcast %74 : vector<1x32xf32> to vector<8x32xf32>
      %77 = arith.mulf %75, %76 : vector<8x32xf32>
      %78 = arith.addf %65, %77 : vector<8x32xf32>
      %79 = vector.extract_strided_slice %56 {offsets = [0, 1], sizes = [8, 1], strides = [1, 1]} : vector<8x2xf32> to vector<8x1xf32>
      %c1_42 = arith.constant 1 : index
      %c0_43 = arith.constant 0 : index
      %80 = vector.load %arg9[%c1_42, %c0_43] : memref<2x32xf32, #tpu.memory_space<vmem>>, vector<1x32xf32>
      %81 = vector.broadcast %79 : vector<8x1xf32> to vector<8x32xf32>
      %82 = vector.broadcast %80 : vector<1x32xf32> to vector<8x32xf32>
      %83 = arith.mulf %81, %82 : vector<8x32xf32>
      %84 = arith.addf %72, %83 : vector<8x32xf32>
      %85 = arith.negf %78 : vector<8x32xf32>
      %86 = math.exp %85 : vector<8x32xf32>
      %cst_44 = arith.constant 1.000000e+00 : f32
      %87 = vector.broadcast %cst_44 : f32 to vector<8x32xf32>
      %88 = arith.addf %87, %86 : vector<8x32xf32>
      %89 = arith.divf %87, %88 : vector<8x32xf32>
      %90 = arith.negf %84 : vector<8x32xf32>
      %91 = math.exp %90 : vector<8x32xf32>
      %cst_45 = arith.constant 1.000000e+00 : f32
      %92 = vector.broadcast %cst_45 : f32 to vector<8x32xf32>
      %93 = arith.addf %92, %91 : vector<8x32xf32>
      %94 = arith.divf %92, %93 : vector<8x32xf32>
      %cst_46 = arith.constant 1.000000e+00 : f32
      %95 = vector.broadcast %cst_46 : f32 to vector<8x32xf32>
      %96 = arith.addf %89, %95 : vector<8x32xf32>
      %97 = arith.mulf %42, %96 : vector<8x32xf32>
      %cst_47 = arith.constant 1.000000e+00 : f32
      %98 = vector.broadcast %cst_47 : f32 to vector<8x32xf32>
      %99 = arith.addf %94, %98 : vector<8x32xf32>
      %100 = arith.mulf %46, %99 : vector<8x32xf32>
      %c0_48 = arith.constant 0 : index
      %c0_49 = arith.constant 0 : index
      %101 = vector.load %arg10[%c0_48, %c0_49] : memref<64x128xf32, #tpu.memory_space<vmem>>, vector<32x128xf32>
      %cst_50 = arith.constant dense<0.000000e+00> : vector<8x128xf32>
      %102 = tpu.matmul %97, %101, %cst_50 {dimension_numbers = #tpu.dot_dimension_numbers<[1], [0], [0], [1], [0, 0, 1, 1], [], []>} : vector<8x32xf32>, vector<32x128xf32>, vector<8x128xf32> -> vector<8x128xf32>
      %c32_51 = arith.constant 32 : index
      %c0_52 = arith.constant 0 : index
      %103 = vector.load %arg10[%c32_51, %c0_52] : memref<64x128xf32, #tpu.memory_space<vmem>>, vector<32x128xf32>
      %cst_53 = arith.constant dense<0.000000e+00> : vector<8x128xf32>
      %104 = tpu.matmul %100, %103, %cst_53 {dimension_numbers = #tpu.dot_dimension_numbers<[1], [0], [0], [1], [0, 0, 1, 1], [], []>} : vector<8x32xf32>, vector<32x128xf32>, vector<8x128xf32> -> vector<8x128xf32>
      %105 = arith.addf %102, %104 : vector<8x128xf32>
      %c0_54 = arith.constant 0 : index
      %c0_55 = arith.constant 0 : index
      %106 = vector.load %arg11[%c0_54, %c0_55] : memref<1x128xf32, #tpu.memory_space<vmem>>, vector<1x128xf32>
      %107 = vector.broadcast %106 : vector<1x128xf32> to vector<8x128xf32>
      %108 = arith.addf %105, %107 : vector<8x128xf32>
      %c0_56 = arith.constant 0 : index
      %c0_57 = arith.constant 0 : index
      %c0_58 = arith.constant 0 : index
      %109 = vector.load %arg12[%c0_56, %c0_57, %c0_58] : memref<8x1x128xf32, #tpu.memory_space<vmem>>, vector<8x1x128xf32>
      %110 = vector.shape_cast %109 : vector<8x1x128xf32> to vector<8x128xf32>
      %111 = vector.shape_cast %108 : vector<8x128xf32> to vector<8x1x128xf32>
      tpu.vector_store %arg12[%c0_56, %c0_57, %c0_58], %111 {strides = array<i32>} : memref<8x1x128xf32, #tpu.memory_space<vmem>>, vector<8x1x128xf32>,
    } else {
    }
    return
  }
  func.func @transform_0(%arg0: i32, %arg1: i32) -> (i32, i32, i32) {
    %c0_i32 = arith.constant 0 : i32
    %c0_i32_0 = arith.constant 0 : i32
    return %arg0, %c0_i32, %arg1 : i32, i32, i32
  }
  func.func @transform_1(%arg0: i32, %arg1: i32) -> (i32, i32, i32) {
    %c0_i32 = arith.constant 0 : i32
    %c0_i32_0 = arith.constant 0 : i32
    %c0_i32_1 = arith.constant 0 : i32
    return %arg0, %c0_i32, %c0_i32_0 : i32, i32, i32
  }
  func.func @transform_2(%arg0: i32, %arg1: i32) -> (i32, i32) {
    %c0_i32 = arith.constant 0 : i32
    %c0_i32_0 = arith.constant 0 : i32
    %c0_i32_1 = arith.constant 0 : i32
    return %c0_i32, %c0_i32_0 : i32, i32
  }
  func.func @transform_3(%arg0: i32, %arg1: i32) -> (i32, i32) {
    %c0_i32 = arith.constant 0 : i32
    %c0_i32_0 = arith.constant 0 : i32
    %c0_i32_1 = arith.constant 0 : i32
    return %c0_i32, %c0_i32_0 : i32, i32
  }
  func.func @transform_4(%arg0: i32, %arg1: i32) -> (i32, i32) {
    %c0_i32 = arith.constant 0 : i32
    %c0_i32_0 = arith.constant 0 : i32
    %c0_i32_1 = arith.constant 0 : i32
    return %c0_i32, %c0_i32_0 : i32, i32
  }
  func.func @transform_5(%arg0: i32, %arg1: i32) -> (i32, i32) {
    %c0_i32 = arith.constant 0 : i32
    %c0_i32_0 = arith.constant 0 : i32
    %c0_i32_1 = arith.constant 0 : i32
    return %c0_i32, %c0_i32_0 : i32, i32
  }
  func.func @transform_6(%arg0: i32, %arg1: i32) -> (i32, i32) {
    %c0_i32 = arith.constant 0 : i32
    %c0_i32_0 = arith.constant 0 : i32
    %c0_i32_1 = arith.constant 0 : i32
    return %c0_i32, %c0_i32_0 : i32, i32
  }
  func.func @transform_7(%arg0: i32, %arg1: i32) -> (i32, i32) {
    %c0_i32 = arith.constant 0 : i32
    %c0_i32_0 = arith.constant 0 : i32
    %c0_i32_1 = arith.constant 0 : i32
    return %c0_i32, %c0_i32_0 : i32, i32
  }
  func.func @transform_8(%arg0: i32, %arg1: i32) -> (i32, i32) {
    %c0_i32 = arith.constant 0 : i32
    %c0_i32_0 = arith.constant 0 : i32
    %c0_i32_1 = arith.constant 0 : i32
    return %c0_i32, %c0_i32_0 : i32, i32
  }
  func.func @transform_9(%arg0: i32, %arg1: i32) -> (i32, i32) {
    %c0_i32 = arith.constant 0 : i32
    %c0_i32_0 = arith.constant 0 : i32
    %c0_i32_1 = arith.constant 0 : i32
    return %c0_i32, %c0_i32_0 : i32, i32
  }
  func.func @transform_10(%arg0: i32, %arg1: i32) -> (i32, i32, i32) {
    %c0_i32 = arith.constant 0 : i32
    %c0_i32_0 = arith.constant 0 : i32
    %c0_i32_1 = arith.constant 0 : i32
    return %arg0, %c0_i32, %c0_i32_0 : i32, i32, i32
  }
}

</mosaic_0001>

<llo_original>
// kernel: tpu_custom_call.1
$region0: #{tpu_custom_call.1}
  #allocation0 [shape = 'u32[]', space=smem, size = 0x4, offset = 0x4, fixed_abs, tag = 'smem constant byte address 0x4 - core index']
  #allocation1 [shape = 'u32[72,128]{1,0:T(1,128)}', space=vmem, size = 0x9000, scoped, tag = 'internal scratch']
  #allocation2 [shape = 'f32[8,32]{1,0:T(8,128)}', space=vmem, size = 0x1000, scoped, tag = 'scratch operand']
  #allocation3 [shape = 'f32[8,32]{1,0:T(8,128)}', space=vmem, size = 0x1000, scoped, tag = 'scratch operand']
  %s0 = inlined_call_operand.hbm [shape: f32[8,32,64], index: 0, kind: input, shape index: {}]
  %s1 = inlined_call_operand.vmem [shape: f32[8,1,32], index: 1, kind: input, shape index: {}]
  %s2 = inlined_call_operand.vmem [shape: f32[32,1], index: 2, kind: input, shape index: {}]
  %s3 = inlined_call_operand.vmem [shape: f32[4,32], index: 3, kind: input, shape index: {}]
  %s4 = inlined_call_operand.vmem [shape: f32[64,2], index: 4, kind: input, shape index: {}]
  %s5 = inlined_call_operand.vmem [shape: f32[1,2], index: 5, kind: input, shape index: {}]
  %s6 = inlined_call_operand.vmem [shape: f32[2,32], index: 6, kind: input, shape index: {}]
  %s7 = inlined_call_operand.vmem [shape: f32[2,32], index: 7, kind: input, shape index: {}]
  %s8 = inlined_call_operand.vmem [shape: f32[64,128], index: 8, kind: input, shape index: {}]
  %s9 = inlined_call_operand.vmem [shape: f32[1,128], index: 9, kind: input, shape index: {}]
  %s10 = inlined_call_operand.hbm [shape: f32[8,1,128], index: 10, kind: output, shape index: {}]
  %s11 = sld [smem:[#allocation0]]
  $region66: #{tpu_custom_call.1} parent=0
    _
  %s13 = ssub.s32 1, %s11
  %s14 = scalar_select 0, %s13, %s11
  $region1: #{tpu_custom_call.1} parent=0
    #allocation4 [shape = 'u8[131072]{0}', space=vmem, size = 0x20000, scoped, tag = 'input window, operand 0, single buffered']
    #allocation5 [shape = 's32[1]{0}', space=sflag, size = 0x4, scoped, tag = 'scoped memory for tpu_custom_call.1']
    #allocation6 [shape = 's32[1]{0}', space=sflag, size = 0x4, scoped, tag = 'scoped memory for tpu_custom_call.1']
    #allocation7 [shape = 'u8[4096]{0}', space=vmem, size = 0x1000, scoped, tag = 'output window, operand 0, single buffered']
    %15 = vsyncpa [#allocation5], 0
    %16 = vsyncpa [#allocation6], 0
    // Predicated region
    $region2: #{tpu_custom_call.1} parent=1 // pred_check
      _
    $region3: #{tpu_custom_call.1} parent=1 // pred_check_branch
      %18 = sbr.rel (0) target = $region5
    $region4: #{tpu_custom_call.1} parent=1 // pred_region
      %20 = vsyncadd [#allocation5], 0
      %s21 = sshll.u32 %s0, 4
      %s22 = int_to_ptr.hbm [resolvable:$true] %s21
      %s23 = sshll.u32 [#allocation4], 4
      %s24 = int_to_ptr.vmem [resolvable:$true] %s23
      %29 = dma.hbm_to_vmem [thread:$0]  %s22, 4096, %s24, [#allocation5], 128, 128, 8
    $region5: #{tpu_custom_call.1} parent=1 // pred_fallthru
      _
    // Predicated region
    $region6: #{tpu_custom_call.1} parent=1 // pred_check
      _
    $region7: #{tpu_custom_call.1} parent=1 // pred_check_branch
      %31 = sbr.rel (0) target = $region9
    $region8: #{tpu_custom_call.1} parent=1 // pred_region
      _
    $region9: #{tpu_custom_call.1} parent=1 // pred_fallthru
      _
    // Predicated region
    $region10: #{tpu_custom_call.1} parent=1 // pred_check
      _
    $region11: #{tpu_custom_call.1} parent=1 // pred_check_branch
      %33 = sbr.rel (0) target = $region13
    $region12: #{tpu_custom_call.1} parent=1 // pred_region
      _
    $region13: #{tpu_custom_call.1} parent=1 // pred_fallthru
      _
    // Predicated region
    $region14: #{tpu_custom_call.1} parent=1 // pred_check
      _
    $region15: #{tpu_custom_call.1} parent=1 // pred_check_branch
      %35 = sbr.rel (0) target = $region17
    $region16: #{tpu_custom_call.1} parent=1 // pred_region
      _
    $region17: #{tpu_custom_call.1} parent=1 // pred_fallthru
      _
    // Predicated region
    $region18: #{tpu_custom_call.1} parent=1 // pred_check
      _
    $region19: #{tpu_custom_call.1} parent=1 // pred_check_branch
      %37 = sbr.rel (0) target = $region21
    $region20: #{tpu_custom_call.1} parent=1 // pred_region
      _
    $region21: #{tpu_custom_call.1} parent=1 // pred_fallthru
      _
    // Predicated region
    $region22: #{tpu_custom_call.1} parent=1 // pred_check
      _
    $region23: #{tpu_custom_call.1} parent=1 // pred_check_branch
      %39 = sbr.rel (0) target = $region25
    $region24: #{tpu_custom_call.1} parent=1 // pred_region
      _
    $region25: #{tpu_custom_call.1} parent=1 // pred_fallthru
      _
    // Predicated region
    $region26: #{tpu_custom_call.1} parent=1 // pred_check
      _
    $region27: #{tpu_custom_call.1} parent=1 // pred_check_branch
      %41 = sbr.rel (0) target = $region29
    $region28: #{tpu_custom_call.1} parent=1 // pred_region
      _
    $region29: #{tpu_custom_call.1} parent=1 // pred_fallthru
      _
    // Predicated region
    $region30: #{tpu_custom_call.1} parent=1 // pred_check
      _
    $region31: #{tpu_custom_call.1} parent=1 // pred_check_branch
      %43 = sbr.rel (0) target = $region33
    $region32: #{tpu_custom_call.1} parent=1 // pred_region
      _
    $region33: #{tpu_custom_call.1} parent=1 // pred_fallthru
      _
    // Predicated region
    $region34: #{tpu_custom_call.1} parent=1 // pred_check
      _
    $region35: #{tpu_custom_call.1} parent=1 // pred_check_branch
      %45 = sbr.rel (0) target = $region37
    $region36: #{tpu_custom_call.1} parent=1 // pred_region
      _
    $region37: #{tpu_custom_call.1} parent=1 // pred_fallthru
      _
    // Predicated region
    $region38: #{tpu_custom_call.1} parent=1 // pred_check
      _
    $region39: #{tpu_custom_call.1} parent=1 // pred_check_branch
      %47 = sbr.rel (0) target = $region41
    $region40: #{tpu_custom_call.1} parent=1 // pred_region
      _
    $region41: #{tpu_custom_call.1} parent=1 // pred_fallthru
      _
    // Predicated region
    $region42: #{tpu_custom_call.1} parent=1 // pred_check
      _
    $region43: #{tpu_custom_call.1} parent=1 // pred_check_branch
      %49 = sbr.rel (0) target = $region45
    $region44: #{tpu_custom_call.1} parent=1 // pred_region
      %51 = dma.done [#allocation5], 4096
    $region45: #{tpu_custom_call.1} parent=1 // pred_fallthru
      _
    %v52 = vld [vmem:[#allocation4] sm:$0xff]
    %v53 = vld [vmem:[#allocation4 + $0x8] sm:$0xff]
    %v54 = vld [vmem:[#allocation4 + $0x10] sm:$0xff]
    %v55 = vld [vmem:[#allocation4 + $0x18] sm:$0xff]
    %v56 = vld [vmem:[#allocation4 + $0x20] sm:$0xff]
    %v57 = vld [vmem:[#allocation4 + $0x28] sm:$0xff]
    %v58 = vld [vmem:[#allocation4 + $0x30] sm:$0xff]
    %v59 = vld [vmem:[#allocation4 + $0x38] sm:$0xff]
    %v60 = vld [vmem:[#allocation4 + $0x40] sm:$0xff]
    %v61 = vld [vmem:[#allocation4 + $0x48] sm:$0xff]
    %v62 = vld [vmem:[#allocation4 + $0x50] sm:$0xff]
    %v63 = vld [vmem:[#allocation4 + $0x58] sm:$0xff]
    %v64 = vld [vmem:[#allocation4 + $0x60] sm:$0xff]
    %v65 = vld [vmem:[#allocation4 + $0x68] sm:$0xff]
    %v66 = vld [vmem:[#allocation4 + $0x70] sm:$0xff]
    %v67 = vld [vmem:[#allocation4 + $0x78] sm:$0xff]
    %v68 = vld [vmem:[#allocation4 + $0x80] sm:$0xff]
    %v69 = vld [vmem:[#allocation4 + $0x88] sm:$0xff]
    %v70 = vld [vmem:[#allocation4 + $0x90] sm:$0xff]
    %v71 = vld [vmem:[#allocation4 + $0x98] sm:$0xff]
    %v72 = vld [vmem:[#allocation4 + $0xa0] sm:$0xff]
    %v73 = vld [vmem:[#allocation4 + $0xa8] sm:$0xff]
    %v74 = vld [vmem:[#allocation4 + $0xb0] sm:$0xff]
    %v75 = vld [vmem:[#allocation4 + $0xb8] sm:$0xff]
    %v76 = vld [vmem:[#allocation4 + $0xc0] sm:$0xff]
    %v77 = vld [vmem:[#allocation4 + $0xc8] sm:$0xff]
    %v78 = vld [vmem:[#allocation4 + $0xd0] sm:$0xff]
    %v79 = vld [vmem:[#allocation4 + $0xd8] sm:$0xff]
    %v80 = vld [vmem:[#allocation4 + $0xe0] sm:$0xff]
    %v81 = vld [vmem:[#allocation4 + $0xe8] sm:$0xff]
    %v82 = vld [vmem:[#allocation4 + $0xf0] sm:$0xff]
    %v83 = vld [vmem:[#allocation4 + $0xf8] sm:$0xff]
    %v84 = vld [vmem:[%s2] sm:$0xff]
    %v85 = vld [vmem:[%s2 + $0x8] sm:$0xff]
    %v86 = vld [vmem:[%s2 + $0x10] sm:$0xff]
    %v87 = vld [vmem:[%s2 + $0x18] sm:$0xff]
    %89 = vset.pattern.permute.xlu0 0
    %90 = vperm.xlu0 %89, %v84
    %v91 = vpop.permute.xlu0 %90
    %94 = vset.pattern.permute.xlu0 0
    %95 = vperm.xlu0 %94, %v85
    %v96 = vpop.permute.xlu0 %95
    %99 = vset.pattern.permute.xlu0 0
    %100 = vperm.xlu0 %99, %v86
    %v101 = vpop.permute.xlu0 %100
    %104 = vset.pattern.permute.xlu0 0
    %105 = vperm.xlu0 %104, %v87
    %v106 = vpop.permute.xlu0 %105
    %v108 = vmul.f32 %v52, %v91
    %v109 = vmul.f32 %v53, %v96
    %v110 = vmul.f32 %v54, %v101
    %v111 = vmul.f32 %v55, %v106
    %v112 = vmul.f32 %v56, %v91
    %v113 = vmul.f32 %v57, %v96
    %v114 = vmul.f32 %v58, %v101
    %v115 = vmul.f32 %v59, %v106
    %v116 = vmul.f32 %v60, %v91
    %v117 = vmul.f32 %v61, %v96
    %v118 = vmul.f32 %v62, %v101
    %v119 = vmul.f32 %v63, %v106
    %v120 = vmul.f32 %v64, %v91
    %v121 = vmul.f32 %v65, %v96
    %v122 = vmul.f32 %v66, %v101
    %v123 = vmul.f32 %v67, %v106
    %v124 = vmul.f32 %v68, %v91
    %v125 = vmul.f32 %v69, %v96
    %v126 = vmul.f32 %v70, %v101
    %v127 = vmul.f32 %v71, %v106
    %v128 = vmul.f32 %v72, %v91
    %v129 = vmul.f32 %v73, %v96
    %v130 = vmul.f32 %v74, %v101
    %v131 = vmul.f32 %v75, %v106
    %v132 = vmul.f32 %v76, %v91
    %v133 = vmul.f32 %v77, %v96
    %v134 = vmul.f32 %v78, %v101
    %v135 = vmul.f32 %v79, %v106
    %v136 = vmul.f32 %v80, %v91
    %v137 = vmul.f32 %v81, %v96
    %v138 = vmul.f32 %v82, %v101
    %v139 = vmul.f32 %v83, %v106
    %vm140 = vcmask 523264
    %v141 = vsel %vm140, %v108, 0.0
    %v142 = vsel %vm140, %v109, 0.0
    %v143 = vadd.f32 %v141, %v142
    %v144 = vsel %vm140, %v110, 0.0
    %v145 = vadd.f32 %v143, %v144
    %v146 = vsel %vm140, %v111, 0.0
    %v147 = vadd.f32 %v145, %v146
    %v148 = vrot.slane %v147, 4
    %v149 = vadd.f32 %v147, %v148
    %v150 = vrot.slane %v149, 2
    %v151 = vadd.f32 %v149, %v150
    %v152 = vrot.slane %v151, 1
    %v153 = vadd.f32 %v151, %v152
    %v154 = vsel %vm140, %v112, 0.0
    %v155 = vsel %vm140, %v113, 0.0
    %v156 = vadd.f32 %v154, %v155
    %v157 = vsel %vm140, %v114, 0.0
    %v158 = vadd.f32 %v156, %v157
    %v159 = vsel %vm140, %v115, 0.0
    %v160 = vadd.f32 %v158, %v159
    %v161 = vrot.slane %v160, 4
    %v162 = vadd.f32 %v160, %v161
    %v163 = vrot.slane %v162, 2
    %v164 = vadd.f32 %v162, %v163
    %v165 = vrot.slane %v164, 1
    %v166 = vadd.f32 %v164, %v165
    %v167 = vsel %vm140, %v116, 0.0
    %v168 = vsel %vm140, %v117, 0.0
    %v169 = vadd.f32 %v167, %v168
    %v170 = vsel %vm140, %v118, 0.0
    %v171 = vadd.f32 %v169, %v170
    %v172 = vsel %vm140, %v119, 0.0
    %v173 = vadd.f32 %v171, %v172
    %v174 = vrot.slane %v173, 4
    %v175 = vadd.f32 %v173, %v174
    %v176 = vrot.slane %v175, 2
    %v177 = vadd.f32 %v175, %v176
    %v178 = vrot.slane %v177, 1
    %v179 = vadd.f32 %v177, %v178
    %v180 = vsel %vm140, %v120, 0.0
    %v181 = vsel %vm140, %v121, 0.0
    %v182 = vadd.f32 %v180, %v181
    %v183 = vsel %vm140, %v122, 0.0
    %v184 = vadd.f32 %v182, %v183
    %v185 = vsel %vm140, %v123, 0.0
    %v186 = vadd.f32 %v184, %v185
    %v187 = vrot.slane %v186, 4
    %v188 = vadd.f32 %v186, %v187
    %v189 = vrot.slane %v188, 2
    %v190 = vadd.f32 %v188, %v189
    %v191 = vrot.slane %v190, 1
    %v192 = vadd.f32 %v190, %v191
    %v193 = vsel %vm140, %v124, 0.0
    %v194 = vsel %vm140, %v125, 0.0
    %v195 = vadd.f32 %v193, %v194
    %v196 = vsel %vm140, %v126, 0.0
    %v197 = vadd.f32 %v195, %v196
    %v198 = vsel %vm140, %v127, 0.0
    %v199 = vadd.f32 %v197, %v198
    %v200 = vrot.slane %v199, 4
    %v201 = vadd.f32 %v199, %v200
    %v202 = vrot.slane %v201, 2
    %v203 = vadd.f32 %v201, %v202
    %v204 = vrot.slane %v203, 1
    %v205 = vadd.f32 %v203, %v204
    %v206 = vsel %vm140, %v128, 0.0
    %v207 = vsel %vm140, %v129, 0.0
    %v208 = vadd.f32 %v206, %v207
    %v209 = vsel %vm140, %v130, 0.0
    %v210 = vadd.f32 %v208, %v209
    %v211 = vsel %vm140, %v131, 0.0
    %v212 = vadd.f32 %v210, %v211
    %v213 = vrot.slane %v212, 4
    %v214 = vadd.f32 %v212, %v213
    %v215 = vrot.slane %v214, 2
    %v216 = vadd.f32 %v214, %v215
    %v217 = vrot.slane %v216, 1
    %v218 = vadd.f32 %v216, %v217
    %v219 = vsel %vm140, %v132, 0.0
    %v220 = vsel %vm140, %v133, 0.0
    %v221 = vadd.f32 %v219, %v220
    %v222 = vsel %vm140, %v134, 0.0
    %v223 = vadd.f32 %v221, %v222
    %v224 = vsel %vm140, %v135, 0.0
    %v225 = vadd.f32 %v223, %v224
    %v226 = vrot.slane %v225, 4
    %v227 = vadd.f32 %v225, %v226
    %v228 = vrot.slane %v227, 2
    %v229 = vadd.f32 %v227, %v228
    %v230 = vrot.slane %v229, 1
    %v231 = vadd.f32 %v229, %v230
    %v232 = vsel %vm140, %v136, 0.0
    %v233 = vsel %vm140, %v137, 0.0
    %v234 = vadd.f32 %v232, %v233
    %v235 = vsel %vm140, %v138, 0.0
    %v236 = vadd.f32 %v234, %v235
    %v237 = vsel %vm140, %v139, 0.0
    %v238 = vadd.f32 %v236, %v237
    %v239 = vrot.slane %v238, 4
    %v240 = vadd.f32 %v238, %v239
    %v241 = vrot.slane %v240, 2
    %v242 = vadd.f32 %v240, %v241
    %v243 = vrot.slane %v242, 1
    %v244 = vadd.f32 %v242, %v243
    %v245 = vld [vmem:[%s1] sm:$0x1]
    %v246 = vld [vmem:[%s1 + $0x1] sm:$0x1]
    %v247 = vld [vmem:[%s1 + $0x2] sm:$0x1]
    %v248 = vld [vmem:[%s1 + $0x3] sm:$0x1]
    %v249 = vld [vmem:[%s1 + $0x4] sm:$0x1]
    %v250 = vld [vmem:[%s1 + $0x5] sm:$0x1]
    %v251 = vld [vmem:[%s1 + $0x6] sm:$0x1]
    %v252 = vld [vmem:[%s1 + $0x7] sm:$0x1]
    %v253 = vld [vmem:[%s3] sm:$0x1]
    %v254 = vmul.f32 %v245, %v253
    %v255 = vmul.f32 %v246, %v253
    %v256 = vmul.f32 %v247, %v253
    %v257 = vmul.f32 %v248, %v253
    %v258 = vmul.f32 %v249, %v253
    %v259 = vmul.f32 %v250, %v253
    %v260 = vmul.f32 %v251, %v253
    %v261 = vmul.f32 %v252, %v253
    %vm262 = vcmask 253952
    %v263 = vsel %vm262, %v254, 0.0
    %264 = vadd.xlane.f32.xlu0 %v263
    %v265 = vpop.xlane.xlu0 %264
    %v266 = vsel %vm262, %v255, 0.0
    %267 = vadd.xlane.f32.xlu0 %v266
    %v268 = vpop.xlane.xlu0 %267
    %v269 = vsel %vm262, %v256, 0.0
    %270 = vadd.xlane.f32.xlu0 %v269
    %v271 = vpop.xlane.xlu0 %270
    %v272 = vsel %vm262, %v257, 0.0
    %273 = vadd.xlane.f32.xlu0 %v272
    %v274 = vpop.xlane.xlu0 %273
    %v275 = vsel %vm262, %v258, 0.0
    %276 = vadd.xlane.f32.xlu0 %v275
    %v277 = vpop.xlane.xlu0 %276
    %v278 = vsel %vm262, %v259, 0.0
    %279 = vadd.xlane.f32.xlu0 %v278
    %v280 = vpop.xlane.xlu0 %279
    %v281 = vsel %vm262, %v260, 0.0
    %282 = vadd.xlane.f32.xlu0 %v281
    %v283 = vpop.xlane.xlu0 %282
    %v284 = vsel %vm262, %v261, 0.0
    %285 = vadd.xlane.f32.xlu0 %v284
    %v286 = vpop.xlane.xlu0 %285
    %v287 = vld [vmem:[%s3 + $0x3] sm:$0x1]
    %v288 = vadd.f32 %v153, %v265
    %v289 = vadd.f32 %v166, %v268
    %v290 = vadd.f32 %v179, %v271
    %v291 = vadd.f32 %v192, %v274
    %v292 = vadd.f32 %v205, %v277
    %v293 = vadd.f32 %v218, %v280
    %v294 = vadd.f32 %v231, %v283
    %v295 = vadd.f32 %v244, %v286
    %297 = vset.pattern.permute.xlu0 0
    %298 = vperm.xlu0 %297, %v287
    %v299 = vpop.permute.xlu0 %298
    %v301 = vadd.f32 %v288, %v299
    %v302 = vadd.f32 %v289, %v299
    %v303 = vadd.f32 %v290, %v299
    %v304 = vadd.f32 %v291, %v299
    %v305 = vadd.f32 %v292, %v299
    %v306 = vadd.f32 %v293, %v299
    %v307 = vadd.f32 %v294, %v299
    %v308 = vadd.f32 %v295, %v299
    %v309 = vmax.f32 %v301, 0.0
    %v310 = vmax.f32 %v302, 0.0
    %v311 = vmax.f32 %v303, 0.0
    %v312 = vmax.f32 %v304, 0.0
    %v313 = vmax.f32 %v305, 0.0
    %v314 = vmax.f32 %v306, 0.0
    %v315 = vmax.f32 %v307, 0.0
    %v316 = vmax.f32 %v308, 0.0
    %v317 = vxor.u32 %v309, 2147483648
    %v318 = vxor.u32 %v310, 2147483648
    %v319 = vxor.u32 %v311, 2147483648
    %v320 = vxor.u32 %v312, 2147483648
    %v321 = vxor.u32 %v313, 2147483648
    %v322 = vxor.u32 %v314, 2147483648
    %v323 = vxor.u32 %v315, 2147483648
    %v324 = vxor.u32 %v316, 2147483648
    %v325 = vmul.f32 %v317, 1.442695
    %v326 = vpow.pop %v325
    %v327 = vmul.f32 %v318, 1.442695
    %v328 = vpow.pop %v327
    %v329 = vmul.f32 %v319, 1.442695
    %v330 = vpow.pop %v329
    %v331 = vmul.f32 %v320, 1.442695
    %v332 = vpow.pop %v331
    %v333 = vmul.f32 %v321, 1.442695
    %v334 = vpow.pop %v333
    %v335 = vmul.f32 %v322, 1.442695
    %v336 = vpow.pop %v335
    %v337 = vmul.f32 %v323, 1.442695
    %v338 = vpow.pop %v337
    %v339 = vmul.f32 %v324, 1.442695
    %v340 = vpow.pop %v339
    %v341 = vadd.f32 %v326, 1.0
    %v342 = vadd.f32 %v328, 1.0
    %v343 = vadd.f32 %v330, 1.0
    %v344 = vadd.f32 %v332, 1.0
    %v345 = vadd.f32 %v334, 1.0
    %v346 = vadd.f32 %v336, 1.0
    %v347 = vadd.f32 %v338, 1.0
    %v348 = vadd.f32 %v340, 1.0
    %v349 = vrcp.pop %v341
    %v350 = vmul.f32 %v341, %v349
    %v351 = vsub.f32 1.0, %v350
    %v352 = vmul.f32 %v349, %v351
    %v353 = vadd.f32 %v349, %v352
    %vm354 = vweird.f32 %v341
    %vm355 = vweird.f32 %v349
    %vm356 = vmor %vm354, %vm355
    %v357 = vsel %vm356, %v349, %v353
    %v358 = vand.u32 2147483647, %v341
    %vm359 = vcmp.eq.f32.partialorder %v358, 8.507059e+37
    %v360 = vand.u32 %v341, 2147483648
    %v361 = vor.u32 1.1754944e-38, %v360
    %v362 = vsel %vm359, %v361, %v357
    %v363 = vmul.f32 1.0, %v362
    %v364 = vrcp.pop %v342
    %v365 = vmul.f32 %v342, %v364
    %v366 = vsub.f32 1.0, %v365
    %v367 = vmul.f32 %v364, %v366
    %v368 = vadd.f32 %v364, %v367
    %vm369 = vweird.f32 %v342
    %vm370 = vweird.f32 %v364
    %vm371 = vmor %vm369, %vm370
    %v372 = vsel %vm371, %v364, %v368
    %v373 = vand.u32 2147483647, %v342
    %vm374 = vcmp.eq.f32.partialorder %v373, 8.507059e+37
    %v375 = vand.u32 %v342, 2147483648
    %v376 = vor.u32 1.1754944e-38, %v375
    %v377 = vsel %vm374, %v376, %v372
    %v378 = vmul.f32 1.0, %v377
    %v379 = vrcp.pop %v343
    %v380 = vmul.f32 %v343, %v379
    %v381 = vsub.f32 1.0, %v380
    %v382 = vmul.f32 %v379, %v381
    %v383 = vadd.f32 %v379, %v382
    %vm384 = vweird.f32 %v343
    %vm385 = vweird.f32 %v379
    %vm386 = vmor %vm384, %vm385
    %v387 = vsel %vm386, %v379, %v383
    %v388 = vand.u32 2147483647, %v343
    %vm389 = vcmp.eq.f32.partialorder %v388, 8.507059e+37
    %v390 = vand.u32 %v343, 2147483648
    %v391 = vor.u32 1.1754944e-38, %v390
    %v392 = vsel %vm389, %v391, %v387
    %v393 = vmul.f32 1.0, %v392
    %v394 = vrcp.pop %v344
    %v395 = vmul.f32 %v344, %v394
    %v396 = vsub.f32 1.0, %v395
    %v397 = vmul.f32 %v394, %v396
    %v398 = vadd.f32 %v394, %v397
    %vm399 = vweird.f32 %v344
    %vm400 = vweird.f32 %v394
    %vm401 = vmor %vm399, %vm400
    %v402 = vsel %vm401, %v394, %v398
    %v403 = vand.u32 2147483647, %v344
    %vm404 = vcmp.eq.f32.partialorder %v403, 8.507059e+37
    %v405 = vand.u32 %v344, 2147483648
    %v406 = vor.u32 1.1754944e-38, %v405
    %v407 = vsel %vm404, %v406, %v402
    %v408 = vmul.f32 1.0, %v407
    %v409 = vrcp.pop %v345
    %v410 = vmul.f32 %v345, %v409
    %v411 = vsub.f32 1.0, %v410
    %v412 = vmul.f32 %v409, %v411
    %v413 = vadd.f32 %v409, %v412
    %vm414 = vweird.f32 %v345
    %vm415 = vweird.f32 %v409
    %vm416 = vmor %vm414, %vm415
    %v417 = vsel %vm416, %v409, %v413
    %v418 = vand.u32 2147483647, %v345
    %vm419 = vcmp.eq.f32.partialorder %v418, 8.507059e+37
    %v420 = vand.u32 %v345, 2147483648
    %v421 = vor.u32 1.1754944e-38, %v420
    %v422 = vsel %vm419, %v421, %v417
    %v423 = vmul.f32 1.0, %v422
    %v424 = vrcp.pop %v346
    %v425 = vmul.f32 %v346, %v424
    %v426 = vsub.f32 1.0, %v425
    %v427 = vmul.f32 %v424, %v426
    %v428 = vadd.f32 %v424, %v427
    %vm429 = vweird.f32 %v346
    %vm430 = vweird.f32 %v424
    %vm431 = vmor %vm429, %vm430
    %v432 = vsel %vm431, %v424, %v428
    %v433 = vand.u32 2147483647, %v346
    %vm434 = vcmp.eq.f32.partialorder %v433, 8.507059e+37
    %v435 = vand.u32 %v346, 2147483648
    %v436 = vor.u32 1.1754944e-38, %v435
    %v437 = vsel %vm434, %v436, %v432
    %v438 = vmul.f32 1.0, %v437
    %v439 = vrcp.pop %v347
    %v440 = vmul.f32 %v347, %v439
    %v441 = vsub.f32 1.0, %v440
    %v442 = vmul.f32 %v439, %v441
    %v443 = vadd.f32 %v439, %v442
    %vm444 = vweird.f32 %v347
    %vm445 = vweird.f32 %v439
    %vm446 = vmor %vm444, %vm445
    %v447 = vsel %vm446, %v439, %v443
    %v448 = vand.u32 2147483647, %v347
    %vm449 = vcmp.eq.f32.partialorder %v448, 8.507059e+37
    %v450 = vand.u32 %v347, 2147483648
    %v451 = vor.u32 1.1754944e-38, %v450
    %v452 = vsel %vm449, %v451, %v447
    %v453 = vmul.f32 1.0, %v452
    %v454 = vrcp.pop %v348
    %v455 = vmul.f32 %v348, %v454
    %v456 = vsub.f32 1.0, %v455
    %v457 = vmul.f32 %v454, %v456
    %v458 = vadd.f32 %v454, %v457
    %vm459 = vweird.f32 %v348
    %vm460 = vweird.f32 %v454
    %vm461 = vmor %vm459, %vm460
    %v462 = vsel %vm461, %v454, %v458
    %v463 = vand.u32 2147483647, %v348
    %vm464 = vcmp.eq.f32.partialorder %v463, 8.507059e+37
    %v465 = vand.u32 %v348, 2147483648
    %v466 = vor.u32 1.1754944e-38, %v465
    %v467 = vsel %vm464, %v466, %v462
    %v468 = vmul.f32 1.0, %v467
    %v469 = vperm.slane %v363, 0
    %v470 = vperm.slane %v378, 0
    %v471 = vperm.slane %v393, 0
    %v472 = vperm.slane %v408, 0
    %v473 = vperm.slane %v423, 0
    %v474 = vperm.slane %v438, 0
    %v475 = vperm.slane %v453, 0
    %v476 = vperm.slane %v468, 0
    %v477 = vmul.f32 %v52, %v469
    %v478 = vmul.f32 %v53, %v469
    %v479 = vmul.f32 %v54, %v469
    %v480 = vmul.f32 %v55, %v469
    %v481 = vmul.f32 %v56, %v470
    %v482 = vmul.f32 %v57, %v470
    %v483 = vmul.f32 %v58, %v470
    %v484 = vmul.f32 %v59, %v470
    %v485 = vmul.f32 %v60, %v471
    %v486 = vmul.f32 %v61, %v471
    %v487 = vmul.f32 %v62, %v471
    %v488 = vmul.f32 %v63, %v471
    %v489 = vmul.f32 %v64, %v472
    %v490 = vmul.f32 %v65, %v472
    %v491 = vmul.f32 %v66, %v472
    %v492 = vmul.f32 %v67, %v472
    %v493 = vmul.f32 %v68, %v473
    %v494 = vmul.f32 %v69, %v473
    %v495 = vmul.f32 %v70, %v473
    %v496 = vmul.f32 %v71, %v473
    %v497 = vmul.f32 %v72, %v474
    %v498 = vmul.f32 %v73, %v474
    %v499 = vmul.f32 %v74, %v474
    %v500 = vmul.f32 %v75, %v474
    %v501 = vmul.f32 %v76, %v475
    %v502 = vmul.f32 %v77, %v475
    %v503 = vmul.f32 %v78, %v475
    %v504 = vmul.f32 %v79, %v475
    %v505 = vmul.f32 %v80, %v476
    %v506 = vmul.f32 %v81, %v476
    %v507 = vmul.f32 %v82, %v476
    %v508 = vmul.f32 %v83, %v476
    %v509 = vsel %vm140, %v477, 0.0
    %510 = vadd.xlane.f32.xlu0 %v509
    %v511 = vpop.xlane.xlu0 %510
    %v512 = vsel %vm140, %v478, 0.0
    %513 = vadd.xlane.f32.xlu0 %v512
    %v514 = vpop.xlane.xlu0 %513
    %v515 = vsel %vm140, %v479, 0.0
    %516 = vadd.xlane.f32.xlu0 %v515
    %v517 = vpop.xlane.xlu0 %516
    %v518 = vsel %vm140, %v480, 0.0
    %519 = vadd.xlane.f32.xlu0 %v518
    %v520 = vpop.xlane.xlu0 %519
    %v521 = vsel %vm140, %v481, 0.0
    %522 = vadd.xlane.f32.xlu0 %v521
    %v523 = vpop.xlane.xlu0 %522
    %v524 = vsel %vm140, %v482, 0.0
    %525 = vadd.xlane.f32.xlu0 %v524
    %v526 = vpop.xlane.xlu0 %525
    %v527 = vsel %vm140, %v483, 0.0
    %528 = vadd.xlane.f32.xlu0 %v527
    %v529 = vpop.xlane.xlu0 %528
    %v530 = vsel %vm140, %v484, 0.0
    %531 = vadd.xlane.f32.xlu0 %v530
    %v532 = vpop.xlane.xlu0 %531
    %v533 = vsel %vm140, %v485, 0.0
    %534 = vadd.xlane.f32.xlu0 %v533
    %v535 = vpop.xlane.xlu0 %534
    %v536 = vsel %vm140, %v486, 0.0
    %537 = vadd.xlane.f32.xlu0 %v536
    %v538 = vpop.xlane.xlu0 %537
    %v539 = vsel %vm140, %v487, 0.0
    %540 = vadd.xlane.f32.xlu0 %v539
    %v541 = vpop.xlane.xlu0 %540
    %v542 = vsel %vm140, %v488, 0.0
    %543 = vadd.xlane.f32.xlu0 %v542
    %v544 = vpop.xlane.xlu0 %543
    %v545 = vsel %vm140, %v489, 0.0
    %546 = vadd.xlane.f32.xlu0 %v545
    %v547 = vpop.xlane.xlu0 %546
    %v548 = vsel %vm140, %v490, 0.0
    %549 = vadd.xlane.f32.xlu0 %v548
    %v550 = vpop.xlane.xlu0 %549
    %v551 = vsel %vm140, %v491, 0.0
    %552 = vadd.xlane.f32.xlu0 %v551
    %v553 = vpop.xlane.xlu0 %552
    %v554 = vsel %vm140, %v492, 0.0
    %555 = vadd.xlane.f32.xlu0 %v554
    %v556 = vpop.xlane.xlu0 %555
    %v557 = vsel %vm140, %v493, 0.0
    %558 = vadd.xlane.f32.xlu0 %v557
    %v559 = vpop.xlane.xlu0 %558
    %v560 = vsel %vm140, %v494, 0.0
    %561 = vadd.xlane.f32.xlu0 %v560
    %v562 = vpop.xlane.xlu0 %561
    %v563 = vsel %vm140, %v495, 0.0
    %564 = vadd.xlane.f32.xlu0 %v563
    %v565 = vpop.xlane.xlu0 %564
    %v566 = vsel %vm140, %v496, 0.0
    %567 = vadd.xlane.f32.xlu0 %v566
    %v568 = vpop.xlane.xlu0 %567
    %v569 = vsel %vm140, %v497, 0.0
    %570 = vadd.xlane.f32.xlu0 %v569
    %v571 = vpop.xlane.xlu0 %570
    %v572 = vsel %vm140, %v498, 0.0
    %573 = vadd.xlane.f32.xlu0 %v572
    %v574 = vpop.xlane.xlu0 %573
    %v575 = vsel %vm140, %v499, 0.0
    %576 = vadd.xlane.f32.xlu0 %v575
    %v577 = vpop.xlane.xlu0 %576
    %v578 = vsel %vm140, %v500, 0.0
    %579 = vadd.xlane.f32.xlu0 %v578
    %v580 = vpop.xlane.xlu0 %579
    %v581 = vsel %vm140, %v501, 0.0
    %582 = vadd.xlane.f32.xlu0 %v581
    %v583 = vpop.xlane.xlu0 %582
    %v584 = vsel %vm140, %v502, 0.0
    %585 = vadd.xlane.f32.xlu0 %v584
    %v586 = vpop.xlane.xlu0 %585
    %v587 = vsel %vm140, %v503, 0.0
    %588 = vadd.xlane.f32.xlu0 %v587
    %v589 = vpop.xlane.xlu0 %588
    %v590 = vsel %vm140, %v504, 0.0
    %591 = vadd.xlane.f32.xlu0 %v590
    %v592 = vpop.xlane.xlu0 %591
    %v593 = vsel %vm140, %v505, 0.0
    %594 = vadd.xlane.f32.xlu0 %v593
    %v595 = vpop.xlane.xlu0 %594
    %v596 = vsel %vm140, %v506, 0.0
    %597 = vadd.xlane.f32.xlu0 %v596
    %v598 = vpop.xlane.xlu0 %597
    %v599 = vsel %vm140, %v507, 0.0
    %600 = vadd.xlane.f32.xlu0 %v599
    %v601 = vpop.xlane.xlu0 %600
    %v602 = vsel %vm140, %v508, 0.0
    %603 = vadd.xlane.f32.xlu0 %v602
    %v604 = vpop.xlane.xlu0 %603
    %v605 = vsel %vm140, %v52, 0.0
    %606 = vadd.xlane.f32.xlu0 %v605
    %v607 = vpop.xlane.xlu0 %606
    %v608 = vsel %vm140, %v53, 0.0
    %609 = vadd.xlane.f32.xlu0 %v608
    %v610 = vpop.xlane.xlu0 %609
    %v611 = vsel %vm140, %v54, 0.0
    %612 = vadd.xlane.f32.xlu0 %v611
    %v613 = vpop.xlane.xlu0 %612
    %v614 = vsel %vm140, %v55, 0.0
    %615 = vadd.xlane.f32.xlu0 %v614
    %v616 = vpop.xlane.xlu0 %615
    %v617 = vsel %vm140, %v56, 0.0
    %618 = vadd.xlane.f32.xlu0 %v617
    %v619 = vpop.xlane.xlu0 %618
    %v620 = vsel %vm140, %v57, 0.0
    %621 = vadd.xlane.f32.xlu0 %v620
    %v622 = vpop.xlane.xlu0 %621
    %v623 = vsel %vm140, %v58, 0.0
    %624 = vadd.xlane.f32.xlu0 %v623
    %v625 = vpop.xlane.xlu0 %624
    %v626 = vsel %vm140, %v59, 0.0
    %627 = vadd.xlane.f32.xlu0 %v626
    %v628 = vpop.xlane.xlu0 %627
    %v629 = vsel %vm140, %v60, 0.0
    %630 = vadd.xlane.f32.xlu0 %v629
    %v631 = vpop.xlane.xlu0 %630
    %v632 = vsel %vm140, %v61, 0.0
    %633 = vadd.xlane.f32.xlu0 %v632
    %v634 = vpop.xlane.xlu0 %633
    %v635 = vsel %vm140, %v62, 0.0
    %636 = vadd.xlane.f32.xlu0 %v635
    %v637 = vpop.xlane.xlu0 %636
    %v638 = vsel %vm140, %v63, 0.0
    %639 = vadd.xlane.f32.xlu0 %v638
    %v640 = vpop.xlane.xlu0 %639
    %v641 = vsel %vm140, %v64, 0.0
    %642 = vadd.xlane.f32.xlu0 %v641
    %v643 = vpop.xlane.xlu0 %642
    %v644 = vsel %vm140, %v65, 0.0
    %645 = vadd.xlane.f32.xlu0 %v644
    %v646 = vpop.xlane.xlu0 %645
    %v647 = vsel %vm140, %v66, 0.0
    %648 = vadd.xlane.f32.xlu0 %v647
    %v649 = vpop.xlane.xlu0 %648
    %v650 = vsel %vm140, %v67, 0.0
    %651 = vadd.xlane.f32.xlu0 %v650
    %v652 = vpop.xlane.xlu0 %651
    %v653 = vsel %vm140, %v68, 0.0
    %654 = vadd.xlane.f32.xlu0 %v653
    %v655 = vpop.xlane.xlu0 %654
    %v656 = vsel %vm140, %v69, 0.0
    %657 = vadd.xlane.f32.xlu0 %v656
    %v658 = vpop.xlane.xlu0 %657
    %v659 = vsel %vm140, %v70, 0.0
    %660 = vadd.xlane.f32.xlu0 %v659
    %v661 = vpop.xlane.xlu0 %660
    %v662 = vsel %vm140, %v71, 0.0
    %663 = vadd.xlane.f32.xlu0 %v662
    %v664 = vpop.xlane.xlu0 %663
    %v665 = vsel %vm140, %v72, 0.0
    %666 = vadd.xlane.f32.xlu0 %v665
    %v667 = vpop.xlane.xlu0 %666
    %v668 = vsel %vm140, %v73, 0.0
    %669 = vadd.xlane.f32.xlu0 %v668
    %v670 = vpop.xlane.xlu0 %669
    %v671 = vsel %vm140, %v74, 0.0
    %672 = vadd.xlane.f32.xlu0 %v671
    %v673 = vpop.xlane.xlu0 %672
    %v674 = vsel %vm140, %v75, 0.0
    %675 = vadd.xlane.f32.xlu0 %v674
    %v676 = vpop.xlane.xlu0 %675
    %v677 = vsel %vm140, %v76, 0.0
    %678 = vadd.xlane.f32.xlu0 %v677
    %v679 = vpop.xlane.xlu0 %678
    %v680 = vsel %vm140, %v77, 0.0
    %681 = vadd.xlane.f32.xlu0 %v680
    %v682 = vpop.xlane.xlu0 %681
    %v683 = vsel %vm140, %v78, 0.0
    %684 = vadd.xlane.f32.xlu0 %v683
    %v685 = vpop.xlane.xlu0 %684
    %v686 = vsel %vm140, %v79, 0.0
    %687 = vadd.xlane.f32.xlu0 %v686
    %v688 = vpop.xlane.xlu0 %687
    %v689 = vsel %vm140, %v80, 0.0
    %690 = vadd.xlane.f32.xlu0 %v689
    %v691 = vpop.xlane.xlu0 %690
    %v692 = vsel %vm140, %v81, 0.0
    %693 = vadd.xlane.f32.xlu0 %v692
    %v694 = vpop.xlane.xlu0 %693
    %v695 = vsel %vm140, %v82, 0.0
    %696 = vadd.xlane.f32.xlu0 %v695
    %v697 = vpop.xlane.xlu0 %696
    %v698 = vsel %vm140, %v83, 0.0
    %699 = vadd.xlane.f32.xlu0 %v698
    %v700 = vpop.xlane.xlu0 %699
    %p701 = scmp.eq.s32.totalorder 0, 0
    // Predicated region
    $region46: #{tpu_custom_call.1} parent=1 // pred_check
      %p702 = pneg %p701
    $region47: #{tpu_custom_call.1} parent=1 // pred_check_branch
      %704 = sbr.rel (%p702) target = $region49
    $region48: #{tpu_custom_call.1} parent=1 // pred_region
      %v737 = vlaneseq
      %v738 = vand.u32 %v737, 127
      %v739 = vperm.slane %v511, %v738
      %v740 = vadd.s32 %v738, 4294967288
      %v741 = vperm.slane %v514, %v740
      %vm742 = vcmask 130112
      %v743 = vsel %vm742, %v741, %v739
      %v744 = vadd.s32 %v738, 4294967280
      %v745 = vperm.slane %v517, %v744
      %vm746 = vcmask 195712
      %v747 = vsel %vm746, %v745, %v743
      %v748 = vadd.s32 %v738, 4294967272
      %v749 = vperm.slane %v520, %v748
      %vm750 = vcmask 261312
      %v751 = vsel %vm750, %v749, %v747
      %v752 = vperm.slane %v523, %v738
      %v753 = vperm.slane %v526, %v740
      %v754 = vsel %vm742, %v753, %v752
      %v755 = vperm.slane %v529, %v744
      %v756 = vsel %vm746, %v755, %v754
      %v757 = vperm.slane %v532, %v748
      %v758 = vsel %vm750, %v757, %v756
      %v759 = vperm.slane %v535, %v738
      %v760 = vperm.slane %v538, %v740
      %v761 = vsel %vm742, %v760, %v759
      %v762 = vperm.slane %v541, %v744
      %v763 = vsel %vm746, %v762, %v761
      %v764 = vperm.slane %v544, %v748
      %v765 = vsel %vm750, %v764, %v763
      %v766 = vperm.slane %v547, %v738
      %v767 = vperm.slane %v550, %v740
      %v768 = vsel %vm742, %v767, %v766
      %v769 = vperm.slane %v553, %v744
      %v770 = vsel %vm746, %v769, %v768
      %v771 = vperm.slane %v556, %v748
      %v772 = vsel %vm750, %v771, %v770
      %v773 = vperm.slane %v559, %v738
      %v774 = vperm.slane %v562, %v740
      %v775 = vsel %vm742, %v774, %v773
      %v776 = vperm.slane %v565, %v744
      %v777 = vsel %vm746, %v776, %v775
      %v778 = vperm.slane %v568, %v748
      %v779 = vsel %vm750, %v778, %v777
      %v780 = vperm.slane %v571, %v738
      %v781 = vperm.slane %v574, %v740
      %v782 = vsel %vm742, %v781, %v780
      %v783 = vperm.slane %v577, %v744
      %v784 = vsel %vm746, %v783, %v782
      %v785 = vperm.slane %v580, %v748
      %v786 = vsel %vm750, %v785, %v784
      %v787 = vperm.slane %v583, %v738
      %v788 = vperm.slane %v586, %v740
      %v789 = vsel %vm742, %v788, %v787
      %v790 = vperm.slane %v589, %v744
      %v791 = vsel %vm746, %v790, %v789
      %v792 = vperm.slane %v592, %v748
      %v793 = vsel %vm750, %v792, %v791
      %v794 = vperm.slane %v595, %v738
      %v795 = vperm.slane %v598, %v740
      %v796 = vsel %vm742, %v795, %v794
      %v797 = vperm.slane %v601, %v744
      %v798 = vsel %vm746, %v797, %v796
      %v799 = vperm.slane %v604, %v748
      %v800 = vsel %vm750, %v799, %v798
      %vm801 = vcmask 1041409
      %v802 = vsel %vm801, %v758, %v751
      %vm803 = vcmask 1042434
      %v804 = vsel %vm803, %v765, %v802
      %vm805 = vcmask 1043459
      %v806 = vsel %vm805, %v772, %v804
      %vm807 = vcmask 1044484
      %v808 = vsel %vm807, %v779, %v806
      %vm809 = vcmask 1045509
      %v810 = vsel %vm809, %v786, %v808
      %vm811 = vcmask 1046534
      %v812 = vsel %vm811, %v793, %v810
      %vm813 = vcmask 1047559
      %v814 = vsel %vm813, %v800, %v812
      %vm816 = vcmask 261120
      %817 = vst.msk [vmem:[#allocation2] sm:$0xff] %vm816, %v814
      %v850 = vperm.slane %v607, %v738
      %v851 = vperm.slane %v610, %v740
      %v852 = vsel %vm742, %v851, %v850
      %v853 = vperm.slane %v613, %v744
      %v854 = vsel %vm746, %v853, %v852
      %v855 = vperm.slane %v616, %v748
      %v856 = vsel %vm750, %v855, %v854
      %v857 = vperm.slane %v619, %v738
      %v858 = vperm.slane %v622, %v740
      %v859 = vsel %vm742, %v858, %v857
      %v860 = vperm.slane %v625, %v744
      %v861 = vsel %vm746, %v860, %v859
      %v862 = vperm.slane %v628, %v748
      %v863 = vsel %vm750, %v862, %v861
      %v864 = vperm.slane %v631, %v738
      %v865 = vperm.slane %v634, %v740
      %v866 = vsel %vm742, %v865, %v864
      %v867 = vperm.slane %v637, %v744
      %v868 = vsel %vm746, %v867, %v866
      %v869 = vperm.slane %v640, %v748
      %v870 = vsel %vm750, %v869, %v868
      %v871 = vperm.slane %v643, %v738
      %v872 = vperm.slane %v646, %v740
      %v873 = vsel %vm742, %v872, %v871
      %v874 = vperm.slane %v649, %v744
      %v875 = vsel %vm746, %v874, %v873
      %v876 = vperm.slane %v652, %v748
      %v877 = vsel %vm750, %v876, %v875
      %v878 = vperm.slane %v655, %v738
      %v879 = vperm.slane %v658, %v740
      %v880 = vsel %vm742, %v879, %v878
      %v881 = vperm.slane %v661, %v744
      %v882 = vsel %vm746, %v881, %v880
      %v883 = vperm.slane %v664, %v748
      %v884 = vsel %vm750, %v883, %v882
      %v885 = vperm.slane %v667, %v738
      %v886 = vperm.slane %v670, %v740
      %v887 = vsel %vm742, %v886, %v885
      %v888 = vperm.slane %v673, %v744
      %v889 = vsel %vm746, %v888, %v887
      %v890 = vperm.slane %v676, %v748
      %v891 = vsel %vm750, %v890, %v889
      %v892 = vperm.slane %v679, %v738
      %v893 = vperm.slane %v682, %v740
      %v894 = vsel %vm742, %v893, %v892
      %v895 = vperm.slane %v685, %v744
      %v896 = vsel %vm746, %v895, %v894
      %v897 = vperm.slane %v688, %v748
      %v898 = vsel %vm750, %v897, %v896
      %v899 = vperm.slane %v691, %v738
      %v900 = vperm.slane %v694, %v740
      %v901 = vsel %vm742, %v900, %v899
      %v902 = vperm.slane %v697, %v744
      %v903 = vsel %vm746, %v902, %v901
      %v904 = vperm.slane %v700, %v748
      %v905 = vsel %vm750, %v904, %v903
      %v906 = vsel %vm801, %v863, %v856
      %v907 = vsel %vm803, %v870, %v906
      %v908 = vsel %vm805, %v877, %v907
      %v909 = vsel %vm807, %v884, %v908
      %v910 = vsel %vm809, %v891, %v909
      %v911 = vsel %vm811, %v898, %v910
      %v912 = vsel %vm813, %v905, %v911
      %914 = vst.msk [vmem:[#allocation3] sm:$0xff] %vm816, %v912
    $region49: #{tpu_custom_call.1} parent=1 // pred_fallthru
      _
    %p915 = scmp.gt.s32.totalorder 0, 0
    // Predicated region
    $region50: #{tpu_custom_call.1} parent=1 // pred_check
      %p916 = pneg %p915
    $region51: #{tpu_custom_call.1} parent=1 // pred_check_branch
      %918 = sbr.rel (%p916) target = $region53
    $region52: #{tpu_custom_call.1} parent=1 // pred_region
      %v919 = vld [vmem:[#allocation2] sm:$0xff]
      %v952 = vlaneseq
      %v953 = vand.u32 %v952, 127
      %v954 = vperm.slane %v511, %v953
      %v955 = vadd.s32 %v953, 4294967288
      %v956 = vperm.slane %v514, %v955
      %vm957 = vcmask 130112
      %v958 = vsel %vm957, %v956, %v954
      %v959 = vadd.s32 %v953, 4294967280
      %v960 = vperm.slane %v517, %v959
      %vm961 = vcmask 195712
      %v962 = vsel %vm961, %v960, %v958
      %v963 = vadd.s32 %v953, 4294967272
      %v964 = vperm.slane %v520, %v963
      %vm965 = vcmask 261312
      %v966 = vsel %vm965, %v964, %v962
      %v967 = vperm.slane %v523, %v953
      %v968 = vperm.slane %v526, %v955
      %v969 = vsel %vm957, %v968, %v967
      %v970 = vperm.slane %v529, %v959
      %v971 = vsel %vm961, %v970, %v969
      %v972 = vperm.slane %v532, %v963
      %v973 = vsel %vm965, %v972, %v971
      %v974 = vperm.slane %v535, %v953
      %v975 = vperm.slane %v538, %v955
      %v976 = vsel %vm957, %v975, %v974
      %v977 = vperm.slane %v541, %v959
      %v978 = vsel %vm961, %v977, %v976
      %v979 = vperm.slane %v544, %v963
      %v980 = vsel %vm965, %v979, %v978
      %v981 = vperm.slane %v547, %v953
      %v982 = vperm.slane %v550, %v955
      %v983 = vsel %vm957, %v982, %v981
      %v984 = vperm.slane %v553, %v959
      %v985 = vsel %vm961, %v984, %v983
      %v986 = vperm.slane %v556, %v963
      %v987 = vsel %vm965, %v986, %v985
      %v988 = vperm.slane %v559, %v953
      %v989 = vperm.slane %v562, %v955
      %v990 = vsel %vm957, %v989, %v988
      %v991 = vperm.slane %v565, %v959
      %v992 = vsel %vm961, %v991, %v990
      %v993 = vperm.slane %v568, %v963
      %v994 = vsel %vm965, %v993, %v992
      %v995 = vperm.slane %v571, %v953
      %v996 = vperm.slane %v574, %v955
      %v997 = vsel %vm957, %v996, %v995
      %v998 = vperm.slane %v577, %v959
      %v999 = vsel %vm961, %v998, %v997
      %v1000 = vperm.slane %v580, %v963
      %v1001 = vsel %vm965, %v1000, %v999
      %v1002 = vperm.slane %v583, %v953
      %v1003 = vperm.slane %v586, %v955
      %v1004 = vsel %vm957, %v1003, %v1002
      %v1005 = vperm.slane %v589, %v959
      %v1006 = vsel %vm961, %v1005, %v1004
      %v1007 = vperm.slane %v592, %v963
      %v1008 = vsel %vm965, %v1007, %v1006
      %v1009 = vperm.slane %v595, %v953
      %v1010 = vperm.slane %v598, %v955
      %v1011 = vsel %vm957, %v1010, %v1009
      %v1012 = vperm.slane %v601, %v959
      %v1013 = vsel %vm961, %v1012, %v1011
      %v1014 = vperm.slane %v604, %v963
      %v1015 = vsel %vm965, %v1014, %v1013
      %vm1016 = vcmask 1041409
      %v1017 = vsel %vm1016, %v973, %v966
      %vm1018 = vcmask 1042434
      %v1019 = vsel %vm1018, %v980, %v1017
      %vm1020 = vcmask 1043459
      %v1021 = vsel %vm1020, %v987, %v1019
      %vm1022 = vcmask 1044484
      %v1023 = vsel %vm1022, %v994, %v1021
      %vm1024 = vcmask 1045509
      %v1025 = vsel %vm1024, %v1001, %v1023
      %vm1026 = vcmask 1046534
      %v1027 = vsel %vm1026, %v1008, %v1025
      %vm1028 = vcmask 1047559
      %v1029 = vsel %vm1028, %v1015, %v1027
      %v1031 = vadd.f32 %v919, %v1029
      %vm1032 = vcmask 261120
      %1033 = vst.msk [vmem:[#allocation2] sm:$0xff] %vm1032, %v1031
      %v1034 = vld [vmem:[#allocation3] sm:$0xff]
      %v1067 = vperm.slane %v607, %v953
      %v1068 = vperm.slane %v610, %v955
      %v1069 = vsel %vm957, %v1068, %v1067
      %v1070 = vperm.slane %v613, %v959
      %v1071 = vsel %vm961, %v1070, %v1069
      %v1072 = vperm.slane %v616, %v963
      %v1073 = vsel %vm965, %v1072, %v1071
      %v1074 = vperm.slane %v619, %v953
      %v1075 = vperm.slane %v622, %v955
      %v1076 = vsel %vm957, %v1075, %v1074
      %v1077 = vperm.slane %v625, %v959
      %v1078 = vsel %vm961, %v1077, %v1076
      %v1079 = vperm.slane %v628, %v963
      %v1080 = vsel %vm965, %v1079, %v1078
      %v1081 = vperm.slane %v631, %v953
      %v1082 = vperm.slane %v634, %v955
      %v1083 = vsel %vm957, %v1082, %v1081
      %v1084 = vperm.slane %v637, %v959
      %v1085 = vsel %vm961, %v1084, %v1083
      %v1086 = vperm.slane %v640, %v963
      %v1087 = vsel %vm965, %v1086, %v1085
      %v1088 = vperm.slane %v643, %v953
      %v1089 = vperm.slane %v646, %v955
      %v1090 = vsel %vm957, %v1089, %v1088
      %v1091 = vperm.slane %v649, %v959
      %v1092 = vsel %vm961, %v1091, %v1090
      %v1093 = vperm.slane %v652, %v963
      %v1094 = vsel %vm965, %v1093, %v1092
      %v1095 = vperm.slane %v655, %v953
      %v1096 = vperm.slane %v658, %v955
      %v1097 = vsel %vm957, %v1096, %v1095
      %v1098 = vperm.slane %v661, %v959
      %v1099 = vsel %vm961, %v1098, %v1097
      %v1100 = vperm.slane %v664, %v963
      %v1101 = vsel %vm965, %v1100, %v1099
      %v1102 = vperm.slane %v667, %v953
      %v1103 = vperm.slane %v670, %v955
      %v1104 = vsel %vm957, %v1103, %v1102
      %v1105 = vperm.slane %v673, %v959
      %v1106 = vsel %vm961, %v1105, %v1104
      %v1107 = vperm.slane %v676, %v963
      %v1108 = vsel %vm965, %v1107, %v1106
      %v1109 = vperm.slane %v679, %v953
      %v1110 = vperm.slane %v682, %v955
      %v1111 = vsel %vm957, %v1110, %v1109
      %v1112 = vperm.slane %v685, %v959
      %v1113 = vsel %vm961, %v1112, %v1111
      %v1114 = vperm.slane %v688, %v963
      %v1115 = vsel %vm965, %v1114, %v1113
      %v1116 = vperm.slane %v691, %v953
      %v1117 = vperm.slane %v694, %v955
      %v1118 = vsel %vm957, %v1117, %v1116
      %v1119 = vperm.slane %v697, %v959
      %v1120 = vsel %vm961, %v1119, %v1118
      %v1121 = vperm.slane %v700, %v963
      %v1122 = vsel %vm965, %v1121, %v1120
      %v1123 = vsel %vm1016, %v1080, %v1073
      %v1124 = vsel %vm1018, %v1087, %v1123
      %v1125 = vsel %vm1020, %v1094, %v1124
      %v1126 = vsel %vm1022, %v1101, %v1125
      %v1127 = vsel %vm1024, %v1108, %v1126
      %v1128 = vsel %vm1026, %v1115, %v1127
      %v1129 = vsel %vm1028, %v1122, %v1128
      %v1131 = vadd.f32 %v1034, %v1129
      %1132 = vst.msk [vmem:[#allocation3] sm:$0xff] %vm1032, %v1131
    $region53: #{tpu_custom_call.1} parent=1 // pred_fallthru
      _
    // Predicated region
    $region54: #{tpu_custom_call.1} parent=1 // pred_check
      %p1133 = pneg %p701
    $region55: #{tpu_custom_call.1} parent=1 // pred_check_branch
      %1135 = sbr.rel (%p1133) target = $region57
    $region56: #{tpu_custom_call.1} parent=1 // pred_region
      %v1136 = vld [vmem:[#allocation2] sm:$0xff]
      %v1137 = vmul.f32 %v1136, 0.015625
      %v1138 = vld [vmem:[#allocation3] sm:$0xff]
      %v1139 = vmul.f32 %v1138, 0.015625
      %v1140 = vsub.f32 %v1139, %v1137
      %v1141 = vld [vmem:[%s4] sm:$0xff]
      %v1142 = vld [vmem:[%s4 + $0x8] sm:$0xff]
      %v1143 = vld [vmem:[%s4 + $0x10] sm:$0xff]
      %v1144 = vld [vmem:[%s4 + $0x18] sm:$0xff]
      %v1145 = vld [vmem:[%s4 + $0x20] sm:$0xff]
      %v1146 = vld [vmem:[%s4 + $0x28] sm:$0xff]
      %v1147 = vld [vmem:[%s4 + $0x30] sm:$0xff]
      %v1148 = vld [vmem:[%s4 + $0x38] sm:$0xff]
      %vm1149 = vcmask 261120
      %v1151 = vsel %vm1149, %v1140, 0
      %1153 = vmatpush.msra.mxu0 0.0
      %1154 = vmatpush.msra.mxu0 0.0
      %1155 = vmatpush.msra.mxu0 0.0
      %1156 = vmatpush.msra.mxu0 0.0
      %1157 = vmatpush.msra.mxu0 0.0
      %1158 = vmatpush.msra.mxu0 0.0
      %1159 = vmatpush.msra.mxu0 0.0
      %1160 = vmatpush.msra.mxu0 0.0
      %1161 = vmatpush.msra.mxu0 0.0
      %1162 = vmatpush.msra.mxu0 0.0
      %1163 = vmatpush.msra.mxu0 0.0
      %1164 = vmatpush.msra.mxu0 0.0
      %1165 = vmatpush.msra.mxu0 %v1148
      %1166 = vmatpush.msra.mxu0 %v1147
      %1167 = vmatpush.msra.mxu0 %v1146
      %1168 = vmatpush.msra.mxu0 %v1145
      %1169 = vmatmul.f32.gmra.mxu0 %v1151
      %v1170 = vpop.f32.mrf.mxu0
      %v1171 = vadd.f32 0.0, %v1170
      %1172 = vdwg.mxu0
      %v1174 = vsel %vm1149, %v1137, 0
      %1176 = vmatpush.msra.mxu0 0.0
      %1177 = vmatpush.msra.mxu0 0.0
      %1178 = vmatpush.msra.mxu0 0.0
      %1179 = vmatpush.msra.mxu0 0.0
      %1180 = vmatpush.msra.mxu0 0.0
      %1181 = vmatpush.msra.mxu0 0.0
      %1182 = vmatpush.msra.mxu0 0.0
      %1183 = vmatpush.msra.mxu0 0.0
      %1184 = vmatpush.msra.mxu0 0.0
      %1185 = vmatpush.msra.mxu0 0.0
      %1186 = vmatpush.msra.mxu0 0.0
      %1187 = vmatpush.msra.mxu0 0.0
      %1188 = vmatpush.msra.mxu0 %v1144
      %1189 = vmatpush.msra.mxu0 %v1143
      %1190 = vmatpush.msra.mxu0 %v1142
      %1191 = vmatpush.msra.mxu0 %v1141
      %1192 = vmatmul.f32.gmra.mxu0 %v1174
      %v1193 = vpop.f32.mrf.mxu0
      %v1194 = vadd.f32 %v1171, %v1193
      %1195 = vdwg.mxu0
      %v1196 = vld [vmem:[%s5] sm:$0x1]
      %v1198 = vperm.slane %v1196, 0
      %v1200 = vadd.f32 %v1194, %v1198
      %v1201 = vmax.f32 %v1200, 0.0
      %v1202 = vld [vmem:[%s3 + $0x1] sm:$0x1]
      %v1203 = vld [vmem:[%s3 + $0x2] sm:$0x1]
      %v1204 = vld [vmem:[%s6] sm:$0x1]
      %1206 = vset.pattern.permute.xlu0 0
      %1207 = vperm.xlu0 %1206, %v1201
      %v1208 = vpop.permute.xlu0 %1207
      %v1210 = vperm.slane %v1204, 0
      %v1211 = vmul.f32 %v1208, %v1210
      %v1212 = vperm.slane %v1202, 0
      %v1213 = vadd.f32 %v1212, %v1211
      %v1214 = vld [vmem:[%s7] sm:$0x1]
      %v1215 = vperm.slane %v1214, 0
      %v1216 = vmul.f32 %v1208, %v1215
      %v1217 = vperm.slane %v1203, 0
      %v1218 = vadd.f32 %v1217, %v1216
      %v1219 = vld [vmem:[%s6 + $0x1] sm:$0x1]
      %1220 = vset.pattern.permute.xlu0 1
      %1221 = vperm.xlu0 %1220, %v1201
      %v1222 = vpop.permute.xlu0 %1221
      %v1224 = vperm.slane %v1219, 0
      %v1225 = vmul.f32 %v1222, %v1224
      %v1226 = vadd.f32 %v1213, %v1225
      %v1227 = vld [vmem:[%s7 + $0x1] sm:$0x1]
      %v1228 = vperm.slane %v1227, 0
      %v1229 = vmul.f32 %v1222, %v1228
      %v1230 = vadd.f32 %v1218, %v1229
      %v1231 = vxor.u32 %v1226, 2147483648
      %v1232 = vmul.f32 %v1231, 1.442695
      %v1233 = vpow.pop %v1232
      %v1234 = vadd.f32 %v1233, 1.0
      %v1235 = vrcp.pop %v1234
      %v1236 = vmul.f32 %v1234, %v1235
      %v1237 = vsub.f32 1.0, %v1236
      %v1238 = vmul.f32 %v1235, %v1237
      %v1239 = vadd.f32 %v1235, %v1238
      %vm1240 = vweird.f32 %v1234
      %vm1241 = vweird.f32 %v1235
      %vm1242 = vmor %vm1240, %vm1241
      %v1243 = vsel %vm1242, %v1235, %v1239
      %v1244 = vand.u32 2147483647, %v1234
      %vm1245 = vcmp.eq.f32.partialorder %v1244, 8.507059e+37
      %v1246 = vand.u32 %v1234, 2147483648
      %v1247 = vor.u32 1.1754944e-38, %v1246
      %v1248 = vsel %vm1245, %v1247, %v1243
      %v1249 = vmul.f32 1.0, %v1248
      %v1250 = vxor.u32 %v1230, 2147483648
      %v1251 = vmul.f32 %v1250, 1.442695
      %v1252 = vpow.pop %v1251
      %v1253 = vadd.f32 %v1252, 1.0
      %v1254 = vrcp.pop %v1253
      %v1255 = vmul.f32 %v1253, %v1254
      %v1256 = vsub.f32 1.0, %v1255
      %v1257 = vmul.f32 %v1254, %v1256
      %v1258 = vadd.f32 %v1254, %v1257
      %vm1259 = vweird.f32 %v1253
      %vm1260 = vweird.f32 %v1254
      %vm1261 = vmor %vm1259, %vm1260
      %v1262 = vsel %vm1261, %v1254, %v1258
      %v1263 = vand.u32 2147483647, %v1253
      %vm1264 = vcmp.eq.f32.partialorder %v1263, 8.507059e+37
      %v1265 = vand.u32 %v1253, 2147483648
      %v1266 = vor.u32 1.1754944e-38, %v1265
      %v1267 = vsel %vm1264, %v1266, %v1262
      %v1268 = vmul.f32 1.0, %v1267
      %v1269 = vadd.f32 %v1249, 1.0
      %v1270 = vmul.f32 %v1137, %v1269
      %v1271 = vadd.f32 %v1268, 1.0
      %v1272 = vmul.f32 %v1140, %v1271
      %v1273 = vld [vmem:[%s8] sm:$0xff]
      %v1274 = vld [vmem:[%s8 + $0x8] sm:$0xff]
      %v1275 = vld [vmem:[%s8 + $0x10] sm:$0xff]
      %v1276 = vld [vmem:[%s8 + $0x18] sm:$0xff]
      %v1277 = vld [vmem:[%s8 + $0x20] sm:$0xff]
      %v1278 = vld [vmem:[%s8 + $0x28] sm:$0xff]
      %v1279 = vld [vmem:[%s8 + $0x30] sm:$0xff]
      %v1280 = vld [vmem:[%s8 + $0x38] sm:$0xff]
      %v1282 = vsel %vm1149, %v1272, 0
      %1284 = vmatpush.msra.mxu0 0.0
      %1285 = vmatpush.msra.mxu0 0.0
      %1286 = vmatpush.msra.mxu0 0.0
      %1287 = vmatpush.msra.mxu0 0.0
      %1288 = vmatpush.msra.mxu0 0.0
      %1289 = vmatpush.msra.mxu0 0.0
      %1290 = vmatpush.msra.mxu0 0.0
      %1291 = vmatpush.msra.mxu0 0.0
      %1292 = vmatpush.msra.mxu0 0.0
      %1293 = vmatpush.msra.mxu0 0.0
      %1294 = vmatpush.msra.mxu0 0.0
      %1295 = vmatpush.msra.mxu0 0.0
      %1296 = vmatpush.msra.mxu0 %v1280
      %1297 = vmatpush.msra.mxu0 %v1279
      %1298 = vmatpush.msra.mxu0 %v1278
      %1299 = vmatpush.msra.mxu0 %v1277
      %1300 = vmatmul.f32.gmra.mxu0 %v1282
      %v1301 = vpop.f32.mrf.mxu0
      %v1302 = vadd.f32 0.0, %v1301
      %1303 = vdwg.mxu0
      %v1305 = vsel %vm1149, %v1270, 0
      %1307 = vmatpush.msra.mxu0 0.0
      %1308 = vmatpush.msra.mxu0 0.0
      %1309 = vmatpush.msra.mxu0 0.0
      %1310 = vmatpush.msra.mxu0 0.0
      %1311 = vmatpush.msra.mxu0 0.0
      %1312 = vmatpush.msra.mxu0 0.0
      %1313 = vmatpush.msra.mxu0 0.0
      %1314 = vmatpush.msra.mxu0 0.0
      %1315 = vmatpush.msra.mxu0 0.0
      %1316 = vmatpush.msra.mxu0 0.0
      %1317 = vmatpush.msra.mxu0 0.0
      %1318 = vmatpush.msra.mxu0 0.0
      %1319 = vmatpush.msra.mxu0 %v1276
      %1320 = vmatpush.msra.mxu0 %v1275
      %1321 = vmatpush.msra.mxu0 %v1274
      %1322 = vmatpush.msra.mxu0 %v1273
      %1323 = vmatmul.f32.gmra.mxu0 %v1305
      %v1324 = vpop.f32.mrf.mxu0
      %v1325 = vadd.f32 %v1302, %v1324
      %1326 = vdwg.mxu0
      %v1327 = vld [vmem:[%s9] sm:$0x1]
      %v1329 = vperm.slane %v1327, 0
      %v1331 = vadd.f32 %v1325, %v1329
      %v1333 = vrot.slane %v1331, 1
      %v1334 = vrot.slane %v1331, 2
      %v1335 = vrot.slane %v1331, 3
      %v1336 = vrot.slane %v1331, 4
      %v1337 = vrot.slane %v1331, 5
      %v1338 = vrot.slane %v1331, 6
      %v1339 = vrot.slane %v1331, 7
      %1347 = vst [vmem:[#allocation7] sm:$0x1] %v1331
      %1348 = vst [vmem:[#allocation7 + $0x1] sm:$0x1] %v1333
      %1349 = vst [vmem:[#allocation7 + $0x2] sm:$0x1] %v1334
      %1350 = vst [vmem:[#allocation7 + $0x3] sm:$0x1] %v1335
      %1351 = vst [vmem:[#allocation7 + $0x4] sm:$0x1] %v1336
      %1352 = vst [vmem:[#allocation7 + $0x5] sm:$0x1] %v1337
      %1353 = vst [vmem:[#allocation7 + $0x6] sm:$0x1] %v1338
      %1354 = vst [vmem:[#allocation7 + $0x7] sm:$0x1] %v1339
    $region57: #{tpu_custom_call.1} parent=1 // pred_fallthru
      _
    // Predicated region
    $region58: #{tpu_custom_call.1} parent=1 // pred_check
      _
    $region59: #{tpu_custom_call.1} parent=1 // pred_check_branch
      %1356 = sbr.rel (0) target = $region61
    $region60: #{tpu_custom_call.1} parent=1 // pred_region
      %1358 = vsyncadd [#allocation6], 0
      %s1359 = sshll.u32 [#allocation7], 4
      %s1360 = int_to_ptr.vmem [resolvable:$true] %s1359
      %s1361 = sshll.u32 %s10, 4
      %s1362 = int_to_ptr.hbm [resolvable:$true] %s1361
      %1367 = dma.vmem_to_hbm [thread:$0]  %s1360, 128, %s1362, [#allocation6], 16, 16, 1
    $region61: #{tpu_custom_call.1} parent=1 // pred_fallthru
      _
    // Predicated region
    $region62: #{tpu_custom_call.1} parent=1 // pred_check
      _
    $region63: #{tpu_custom_call.1} parent=1 // pred_check_branch
      %1369 = sbr.rel (0) target = $region65
    $region64: #{tpu_custom_call.1} parent=1 // pred_region
      %1371 = dma.done [#allocation6], 128
    $region65: #{tpu_custom_call.1} parent=1 // pred_fallthru
      _
    %1372 = vsyncpa [#allocation5], 1
    %1373 = vsyncpa [#allocation6], 1

// kernel: tpu_custom_call.1
$region0: #{tpu_custom_call.1}
  #allocation0 [shape = 'u32[]', space=smem, size = 0x4, offset = 0x4, fixed_abs, tag = 'smem constant byte address 0x4 - core index']
  #allocation1 [shape = 'u32[72,128]{1,0:T(1,128)}', space=vmem, size = 0x9000, scoped, tag = 'internal scratch']
  #allocation2 [shape = 'f32[8,32]{1,0:T(8,128)}', space=vmem, size = 0x1000, scoped, tag = 'scratch operand']
  #allocation3 [shape = 'f32[8,32]{1,0:T(8,128)}', space=vmem, size = 0x1000, scoped, tag = 'scratch operand']
  %s0 = inlined_call_operand.hbm [shape: f32[8,32,64], index: 0, kind: input, shape index: {}]
  %s1 = inlined_call_operand.vmem [shape: f32[8,1,32], index: 1, kind: input, shape index: {}]
  %s2 = inlined_call_operand.vmem [shape: f32[32,1], index: 2, kind: input, shape index: {}]
  %s3 = inlined_call_operand.vmem [shape: f32[4,32], index: 3, kind: input, shape index: {}]
  %s4 = inlined_call_operand.vmem [shape: f32[64,2], index: 4, kind: input, shape index: {}]
  %s5 = inlined_call_operand.vmem [shape: f32[1,2], index: 5, kind: input, shape index: {}]
  %s6 = inlined_call_operand.vmem [shape: f32[2,32], index: 6, kind: input, shape index: {}]
  %s7 = inlined_call_operand.vmem [shape: f32[2,32], index: 7, kind: input, shape index: {}]
  %s8 = inlined_call_operand.vmem [shape: f32[64,128], index: 8, kind: input, shape index: {}]
  %s9 = inlined_call_operand.vmem [shape: f32[1,128], index: 9, kind: input, shape index: {}]
  %s10 = inlined_call_operand.hbm [shape: f32[8,1,128], index: 10, kind: output, shape index: {}]
  %s11 = sld [smem:[#allocation0]]
  $region66: #{tpu_custom_call.1} parent=0
    _
  %s13 = ssub.s32 1, %s11
  %s14 = scalar_select 0, %s13, %s11
  $region1: #{tpu_custom_call.1} parent=0
    #allocation4 [shape = 'u8[131072]{0}', space=vmem, size = 0x20000, scoped, tag = 'input window, operand 0, single buffered']
    #allocation5 [shape = 's32[1]{0}', space=sflag, size = 0x4, scoped, tag = 'scoped memory for tpu_custom_call.1']
    #allocation6 [shape = 's32[1]{0}', space=sflag, size = 0x4, scoped, tag = 'scoped memory for tpu_custom_call.1']
    #allocation7 [shape = 'u8[4096]{0}', space=vmem, size = 0x1000, scoped, tag = 'output window, operand 0, single buffered']
    %15 = vsyncpa [#allocation5], 0
    %16 = vsyncpa [#allocation6], 0
    // Predicated region
    $region2: #{tpu_custom_call.1} parent=1 // pred_check
      _
    $region3: #{tpu_custom_call.1} parent=1 // pred_check_branch
      %18 = sbr.rel (0) target = $region5
    $region4: #{tpu_custom_call.1} parent=1 // pred_region
      %20 = vsyncadd [#allocation5], 0
      %s21 = sshll.u32 %s0, 4
      %s22 = int_to_ptr.hbm [resolvable:$true] %s21
      %s23 = sshll.u32 [#allocation4], 4
      %s24 = int_to_ptr.vmem [resolvable:$true] %s23
      %29 = dma.hbm_to_vmem [thread:$0]  %s22, 4096, %s24, [#allocation5], 128, 128, 8
    $region5: #{tpu_custom_call.1} parent=1 // pred_fallthru
      _
    // Predicated region
    $region6: #{tpu_custom_call.1} parent=1 // pred_check
      _
    $region7: #{tpu_custom_call.1} parent=1 // pred_check_branch
      %31 = sbr.rel (0) target = $region9
    $region8: #{tpu_custom_call.1} parent=1 // pred_region
      _
    $region9: #{tpu_custom_call.1} parent=1 // pred_fallthru
      _
    // Predicated region
    $region10: #{tpu_custom_call.1} parent=1 // pred_check
      _
    $region11: #{tpu_custom_call.1} parent=1 // pred_check_branch
      %33 = sbr.rel (0) target = $region13
    $region12: #{tpu_custom_call.1} parent=1 // pred_region
      _
    $region13: #{tpu_custom_call.1} parent=1 // pred_fallthru
      _
    // Predicated region
    $region14: #{tpu_custom_call.1} parent=1 // pred_check
      _
    $region15: #{tpu_custom_call.1} parent=1 // pred_check_branch
      %35 = sbr.rel (0) target = $region17
    $region16: #{tpu_custom_call.1} parent=1 // pred_region
      _
    $region17: #{tpu_custom_call.1} parent=1 // pred_fallthru
      _
    // Predicated region
    $region18: #{tpu_custom_call.1} parent=1 // pred_check
      _
    $region19: #{tpu_custom_call.1} parent=1 // pred_check_branch
      %37 = sbr.rel (0) target = $region21
    $region20: #{tpu_custom_call.1} parent=1 // pred_region
      _
    $region21: #{tpu_custom_call.1} parent=1 // pred_fallthru
      _
    // Predicated region
    $region22: #{tpu_custom_call.1} parent=1 // pred_check
      _
    $region23: #{tpu_custom_call.1} parent=1 // pred_check_branch
      %39 = sbr.rel (0) target = $region25
    $region24: #{tpu_custom_call.1} parent=1 // pred_region
      _
    $region25: #{tpu_custom_call.1} parent=1 // pred_fallthru
      _
    // Predicated region
    $region26: #{tpu_custom_call.1} parent=1 // pred_check
      _
    $region27: #{tpu_custom_call.1} parent=1 // pred_check_branch
      %41 = sbr.rel (0) target = $region29
    $region28: #{tpu_custom_call.1} parent=1 // pred_region
      _
    $region29: #{tpu_custom_call.1} parent=1 // pred_fallthru
      _
    // Predicated region
    $region30: #{tpu_custom_call.1} parent=1 // pred_check
      _
    $region31: #{tpu_custom_call.1} parent=1 // pred_check_branch
      %43 = sbr.rel (0) target = $region33
    $region32: #{tpu_custom_call.1} parent=1 // pred_region
      _
    $region33: #{tpu_custom_call.1} parent=1 // pred_fallthru
      _
    // Predicated region
    $region34: #{tpu_custom_call.1} parent=1 // pred_check
      _
    $region35: #{tpu_custom_call.1} parent=1 // pred_check_branch
      %45 = sbr.rel (0) target = $region37
    $region36: #{tpu_custom_call.1} parent=1 // pred_region
      _
    $region37: #{tpu_custom_call.1} parent=1 // pred_fallthru
      _
    // Predicated region
    $region38: #{tpu_custom_call.1} parent=1 // pred_check
      _
    $region39: #{tpu_custom_call.1} parent=1 // pred_check_branch
      %47 = sbr.rel (0) target = $region41
    $region40: #{tpu_custom_call.1} parent=1 // pred_region
      _
    $region41: #{tpu_custom_call.1} parent=1 // pred_fallthru
      _
    // Predicated region
    $region42: #{tpu_custom_call.1} parent=1 // pred_check
      _
    $region43: #{tpu_custom_call.1} parent=1 // pred_check_branch
      %49 = sbr.rel (0) target = $region45
    $region44: #{tpu_custom_call.1} parent=1 // pred_region
      %51 = dma.done [#allocation5], 4096
    $region45: #{tpu_custom_call.1} parent=1 // pred_fallthru
      _
    %v52 = vld [vmem:[#allocation4] sm:$0xff]
    %v53 = vld [vmem:[#allocation4 + $0x8] sm:$0xff]
    %v54 = vld [vmem:[#allocation4 + $0x10] sm:$0xff]
    %v55 = vld [vmem:[#allocation4 + $0x18] sm:$0xff]
    %v56 = vld [vmem:[#allocation4 + $0x20] sm:$0xff]
    %v57 = vld [vmem:[#allocation4 + $0x28] sm:$0xff]
    %v58 = vld [vmem:[#allocation4 + $0x30] sm:$0xff]
    %v59 = vld [vmem:[#allocation4 + $0x38] sm:$0xff]
    %v60 = vld [vmem:[#allocation4 + $0x40] sm:$0xff]
    %v61 = vld [vmem:[#allocation4 + $0x48] sm:$0xff]
    %v62 = vld [vmem:[#allocation4 + $0x50] sm:$0xff]
    %v63 = vld [vmem:[#allocation4 + $0x58] sm:$0xff]
    %v64 = vld [vmem:[#allocation4 + $0x60] sm:$0xff]
    %v65 = vld [vmem:[#allocation4 + $0x68] sm:$0xff]
    %v66 = vld [vmem:[#allocation4 + $0x70] sm:$0xff]
    %v67 = vld [vmem:[#allocation4 + $0x78] sm:$0xff]
    %v68 = vld [vmem:[#allocation4 + $0x80] sm:$0xff]
    %v69 = vld [vmem:[#allocation4 + $0x88] sm:$0xff]
    %v70 = vld [vmem:[#allocation4 + $0x90] sm:$0xff]
    %v71 = vld [vmem:[#allocation4 + $0x98] sm:$0xff]
    %v72 = vld [vmem:[#allocation4 + $0xa0] sm:$0xff]
    %v73 = vld [vmem:[#allocation4 + $0xa8] sm:$0xff]
    %v74 = vld [vmem:[#allocation4 + $0xb0] sm:$0xff]
    %v75 = vld [vmem:[#allocation4 + $0xb8] sm:$0xff]
    %v76 = vld [vmem:[#allocation4 + $0xc0] sm:$0xff]
    %v77 = vld [vmem:[#allocation4 + $0xc8] sm:$0xff]
    %v78 = vld [vmem:[#allocation4 + $0xd0] sm:$0xff]
    %v79 = vld [vmem:[#allocation4 + $0xd8] sm:$0xff]
    %v80 = vld [vmem:[#allocation4 + $0xe0] sm:$0xff]
    %v81 = vld [vmem:[#allocation4 + $0xe8] sm:$0xff]
    %v82 = vld [vmem:[#allocation4 + $0xf0] sm:$0xff]
    %v83 = vld [vmem:[#allocation4 + $0xf8] sm:$0xff]
    %v84 = vld [vmem:[%s2] sm:$0xff]
    %v85 = vld [vmem:[%s2 + $0x8] sm:$0xff]
    %v86 = vld [vmem:[%s2 + $0x10] sm:$0xff]
    %v87 = vld [vmem:[%s2 + $0x18] sm:$0xff]
    %89 = vset.pattern.permute.xlu0 0
    %90 = vperm.xlu0 %89, %v84
    %v91 = vpop.permute.xlu0 %90
    %94 = vset.pattern.permute.xlu0 0
    %95 = vperm.xlu0 %94, %v85
    %v96 = vpop.permute.xlu0 %95
    %99 = vset.pattern.permute.xlu0 0
    %100 = vperm.xlu0 %99, %v86
    %v101 = vpop.permute.xlu0 %100
    %104 = vset.pattern.permute.xlu0 0
    %105 = vperm.xlu0 %104, %v87
    %v106 = vpop.permute.xlu0 %105
    %v108 = vmul.f32 %v52, %v91
    %v109 = vmul.f32 %v53, %v96
    %v110 = vmul.f32 %v54, %v101
    %v111 = vmul.f32 %v55, %v106
    %v112 = vmul.f32 %v56, %v91
    %v113 = vmul.f32 %v57, %v96
    %v114 = vmul.f32 %v58, %v101
    %v115 = vmul.f32 %v59, %v106
    %v116 = vmul.f32 %v60, %v91
    %v117 = vmul.f32 %v61, %v96
    %v118 = vmul.f32 %v62, %v101
    %v119 = vmul.f32 %v63, %v106
    %v120 = vmul.f32 %v64, %v91
    %v121 = vmul.f32 %v65, %v96
    %v122 = vmul.f32 %v66, %v101
    %v123 = vmul.f32 %v67, %v106
    %v124 = vmul.f32 %v68, %v91
    %v125 = vmul.f32 %v69, %v96
    %v126 = vmul.f32 %v70, %v101
    %v127 = vmul.f32 %v71, %v106
    %v128 = vmul.f32 %v72, %v91
    %v129 = vmul.f32 %v73, %v96
    %v130 = vmul.f32 %v74, %v101
    %v131 = vmul.f32 %v75, %v106
    %v132 = vmul.f32 %v76, %v91
    %v133 = vmul.f32 %v77, %v96
    %v134 = vmul.f32 %v78, %v101
    %v135 = vmul.f32 %v79, %v106
    %v136 = vmul.f32 %v80, %v91
    %v137 = vmul.f32 %v81, %v96
    %v138 = vmul.f32 %v82, %v101
    %v139 = vmul.f32 %v83, %v106
    %vm140 = vcmask 523264
    %v141 = vsel %vm140, %v108, 0.0
    %v142 = vsel %vm140, %v109, 0.0
    %v143 = vadd.f32 %v141, %v142
    %v144 = vsel %vm140, %v110, 0.0
    %v145 = vadd.f32 %v143, %v144
    %v146 = vsel %vm140, %v111, 0.0
    %v147 = vadd.f32 %v145, %v146
    %v148 = vrot.slane %v147, 4
    %v149 = vadd.f32 %v147, %v148
    %v150 = vrot.slane %v149, 2
    %v151 = vadd.f32 %v149, %v150
    %v152 = vrot.slane %v151, 1
    %v153 = vadd.f32 %v151, %v152
    %v154 = vsel %vm140, %v112, 0.0
    %v155 = vsel %vm140, %v113, 0.0
    %v156 = vadd.f32 %v154, %v155
    %v157 = vsel %vm140, %v114, 0.0
    %v158 = vadd.f32 %v156, %v157
    %v159 = vsel %vm140, %v115, 0.0
    %v160 = vadd.f32 %v158, %v159
    %v161 = vrot.slane %v160, 4
    %v162 = vadd.f32 %v160, %v161
    %v163 = vrot.slane %v162, 2
    %v164 = vadd.f32 %v162, %v163
    %v165 = vrot.slane %v164, 1
    %v166 = vadd.f32 %v164, %v165
    %v167 = vsel %vm140, %v116, 0.0
    %v168 = vsel %vm140, %v117, 0.0
    %v169 = vadd.f32 %v167, %v168
    %v170 = vsel %vm140, %v118, 0.0
    %v171 = vadd.f32 %v169, %v170
    %v172 = vsel %vm140, %v119, 0.0
    %v173 = vadd.f32 %v171, %v172
    %v174 = vrot.slane %v173, 4
    %v175 = vadd.f32 %v173, %v174
    %v176 = vrot.slane %v175, 2
    %v177 = vadd.f32 %v175, %v176
    %v178 = vrot.slane %v177, 1
    %v179 = vadd.f32 %v177, %v178
    %v180 = vsel %vm140, %v120, 0.0
    %v181 = vsel %vm140, %v121, 0.0
    %v182 = vadd.f32 %v180, %v181
    %v183 = vsel %vm140, %v122, 0.0
    %v184 = vadd.f32 %v182, %v183
    %v185 = vsel %vm140, %v123, 0.0
    %v186 = vadd.f32 %v184, %v185
    %v187 = vrot.slane %v186, 4
    %v188 = vadd.f32 %v186, %v187
    %v189 = vrot.slane %v188, 2
    %v190 = vadd.f32 %v188, %v189
    %v191 = vrot.slane %v190, 1
    %v192 = vadd.f32 %v190, %v191
    %v193 = vsel %vm140, %v124, 0.0
    %v194 = vsel %vm140, %v125, 0.0
    %v195 = vadd.f32 %v193, %v194
    %v196 = vsel %vm140, %v126, 0.0
    %v197 = vadd.f32 %v195, %v196
    %v198 = vsel %vm140, %v127, 0.0
    %v199 = vadd.f32 %v197, %v198
    %v200 = vrot.slane %v199, 4
    %v201 = vadd.f32 %v199, %v200
    %v202 = vrot.slane %v201, 2
    %v203 = vadd.f32 %v201, %v202
    %v204 = vrot.slane %v203, 1
    %v205 = vadd.f32 %v203, %v204
    %v206 = vsel %vm140, %v128, 0.0
    %v207 = vsel %vm140, %v129, 0.0
    %v208 = vadd.f32 %v206, %v207
    %v209 = vsel %vm140, %v130, 0.0
    %v210 = vadd.f32 %v208, %v209
    %v211 = vsel %vm140, %v131, 0.0
    %v212 = vadd.f32 %v210, %v211
    %v213 = vrot.slane %v212, 4
    %v214 = vadd.f32 %v212, %v213
    %v215 = vrot.slane %v214, 2
    %v216 = vadd.f32 %v214, %v215
    %v217 = vrot.slane %v216, 1
    %v218 = vadd.f32 %v216, %v217
    %v219 = vsel %vm140, %v132, 0.0
    %v220 = vsel %vm140, %v133, 0.0
    %v221 = vadd.f32 %v219, %v220
    %v222 = vsel %vm140, %v134, 0.0
    %v223 = vadd.f32 %v221, %v222
    %v224 = vsel %vm140, %v135, 0.0
    %v225 = vadd.f32 %v223, %v224
    %v226 = vrot.slane %v225, 4
    %v227 = vadd.f32 %v225, %v226
    %v228 = vrot.slane %v227, 2
    %v229 = vadd.f32 %v227, %v228
    %v230 = vrot.slane %v229, 1
    %v231 = vadd.f32 %v229, %v230
    %v232 = vsel %vm140, %v136, 0.0
    %v233 = vsel %vm140, %v137, 0.0
    %v234 = vadd.f32 %v232, %v233
    %v235 = vsel %vm140, %v138, 0.0
    %v236 = vadd.f32 %v234, %v235
    %v237 = vsel %vm140, %v139, 0.0
    %v238 = vadd.f32 %v236, %v237
    %v239 = vrot.slane %v238, 4
    %v240 = vadd.f32 %v238, %v239
    %v241 = vrot.slane %v240, 2
    %v242 = vadd.f32 %v240, %v241
    %v243 = vrot.slane %v242, 1
    %v244 = vadd.f32 %v242, %v243
    %v245 = vld [vmem:[%s1] sm:$0x1]
    %v246 = vld [vmem:[%s1 + $0x1] sm:$0x1]
    %v247 = vld [vmem:[%s1 + $0x2] sm:$0x1]
    %v248 = vld [vmem:[%s1 + $0x3] sm:$0x1]
    %v249 = vld [vmem:[%s1 + $0x4] sm:$0x1]
    %v250 = vld [vmem:[%s1 + $0x5] sm:$0x1]
    %v251 = vld [vmem:[%s1 + $0x6] sm:$0x1]
    %v252 = vld [vmem:[%s1 + $0x7] sm:$0x1]
    %v253 = vld [vmem:[%s3] sm:$0x1]
    %v254 = vmul.f32 %v245, %v253
    %v255 = vmul.f32 %v246, %v253
    %v256 = vmul.f32 %v247, %v253
    %v257 = vmul.f32 %v248, %v253
    %v258 = vmul.f32 %v249, %v253
    %v259 = vmul.f32 %v250, %v253
    %v260 = vmul.f32 %v251, %v253
    %v261 = vmul.f32 %v252, %v253
    %vm262 = vcmask 253952
    %v263 = vsel %vm262, %v254, 0.0
    %264 = vadd.xlane.f32.xlu0 %v263
    %v265 = vpop.xlane.xlu0 %264
    %v266 = vsel %vm262, %v255, 0.0
    %267 = vadd.xlane.f32.xlu0 %v266
    %v268 = vpop.xlane.xlu0 %267
    %v269 = vsel %vm262, %v256, 0.0
    %270 = vadd.xlane.f32.xlu0 %v269
    %v271 = vpop.xlane.xlu0 %270
    %v272 = vsel %vm262, %v257, 0.0
    %273 = vadd.xlane.f32.xlu0 %v272
    %v274 = vpop.xlane.xlu0 %273
    %v275 = vsel %vm262, %v258, 0.0
    %276 = vadd.xlane.f32.xlu0 %v275
    %v277 = vpop.xlane.xlu0 %276
    %v278 = vsel %vm262, %v259, 0.0
    %279 = vadd.xlane.f32.xlu0 %v278
    %v280 = vpop.xlane.xlu0 %279
    %v281 = vsel %vm262, %v260, 0.0
    %282 = vadd.xlane.f32.xlu0 %v281
    %v283 = vpop.xlane.xlu0 %282
    %v284 = vsel %vm262, %v261, 0.0
    %285 = vadd.xlane.f32.xlu0 %v284
    %v286 = vpop.xlane.xlu0 %285
    %v287 = vld [vmem:[%s3 + $0x3] sm:$0x1]
    %v288 = vadd.f32 %v153, %v265
    %v289 = vadd.f32 %v166, %v268
    %v290 = vadd.f32 %v179, %v271
    %v291 = vadd.f32 %v192, %v274
    %v292 = vadd.f32 %v205, %v277
    %v293 = vadd.f32 %v218, %v280
    %v294 = vadd.f32 %v231, %v283
    %v295 = vadd.f32 %v244, %v286
    %297 = vset.pattern.permute.xlu0 0
    %298 = vperm.xlu0 %297, %v287
    %v299 = vpop.permute.xlu0 %298
    %v301 = vadd.f32 %v288, %v299
    %v302 = vadd.f32 %v289, %v299
    %v303 = vadd.f32 %v290, %v299
    %v304 = vadd.f32 %v291, %v299
    %v305 = vadd.f32 %v292, %v299
    %v306 = vadd.f32 %v293, %v299
    %v307 = vadd.f32 %v294, %v299
    %v308 = vadd.f32 %v295, %v299
    %v309 = vmax.f32 %v301, 0.0
    %v310 = vmax.f32 %v302, 0.0
    %v311 = vmax.f32 %v303, 0.0
    %v312 = vmax.f32 %v304, 0.0
    %v313 = vmax.f32 %v305, 0.0
    %v314 = vmax.f32 %v306, 0.0
    %v315 = vmax.f32 %v307, 0.0
    %v316 = vmax.f32 %v308, 0.0
    %v317 = vxor.u32 %v309, 2147483648
    %v318 = vxor.u32 %v310, 2147483648
    %v319 = vxor.u32 %v311, 2147483648
    %v320 = vxor.u32 %v312, 2147483648
    %v321 = vxor.u32 %v313, 2147483648
    %v322 = vxor.u32 %v314, 2147483648
    %v323 = vxor.u32 %v315, 2147483648
    %v324 = vxor.u32 %v316, 2147483648
    %v325 = vmul.f32 %v317, 1.442695
    %v326 = vpow.pop %v325
    %v327 = vmul.f32 %v318, 1.442695
    %v328 = vpow.pop %v327
    %v329 = vmul.f32 %v319, 1.442695
    %v330 = vpow.pop %v329
    %v331 = vmul.f32 %v320, 1.442695
    %v332 = vpow.pop %v331
    %v333 = vmul.f32 %v321, 1.442695
    %v334 = vpow.pop %v333
    %v335 = vmul.f32 %v322, 1.442695
    %v336 = vpow.pop %v335
    %v337 = vmul.f32 %v323, 1.442695
    %v338 = vpow.pop %v337
    %v339 = vmul.f32 %v324, 1.442695
    %v340 = vpow.pop %v339
    %v341 = vadd.f32 %v326, 1.0
    %v342 = vadd.f32 %v328, 1.0
    %v343 = vadd.f32 %v330, 1.0
    %v344 = vadd.f32 %v332, 1.0
    %v345 = vadd.f32 %v334, 1.0
    %v346 = vadd.f32 %v336, 1.0
    %v347 = vadd.f32 %v338, 1.0
    %v348 = vadd.f32 %v340, 1.0
    %v349 = vrcp.pop %v341
    %v350 = vmul.f32 %v341, %v349
    %v351 = vsub.f32 1.0, %v350
    %v352 = vmul.f32 %v349, %v351
    %v353 = vadd.f32 %v349, %v352
    %vm354 = vweird.f32 %v341
    %vm355 = vweird.f32 %v349
    %vm356 = vmor %vm354, %vm355
    %v357 = vsel %vm356, %v349, %v353
    %v358 = vand.u32 2147483647, %v341
    %vm359 = vcmp.eq.f32.partialorder %v358, 8.507059e+37
    %v360 = vand.u32 %v341, 2147483648
    %v361 = vor.u32 1.1754944e-38, %v360
    %v362 = vsel %vm359, %v361, %v357
    %v363 = vmul.f32 1.0, %v362
    %v364 = vrcp.pop %v342
    %v365 = vmul.f32 %v342, %v364
    %v366 = vsub.f32 1.0, %v365
    %v367 = vmul.f32 %v364, %v366
    %v368 = vadd.f32 %v364, %v367
    %vm369 = vweird.f32 %v342
    %vm370 = vweird.f32 %v364
    %vm371 = vmor %vm369, %vm370
    %v372 = vsel %vm371, %v364, %v368
    %v373 = vand.u32 2147483647, %v342
    %vm374 = vcmp.eq.f32.partialorder %v373, 8.507059e+37
    %v375 = vand.u32 %v342, 2147483648
    %v376 = vor.u32 1.1754944e-38, %v375
    %v377 = vsel %vm374, %v376, %v372
    %v378 = vmul.f32 1.0, %v377
    %v379 = vrcp.pop %v343
    %v380 = vmul.f32 %v343, %v379
    %v381 = vsub.f32 1.0, %v380
    %v382 = vmul.f32 %v379, %v381
    %v383 = vadd.f32 %v379, %v382
    %vm384 = vweird.f32 %v343
    %vm385 = vweird.f32 %v379
    %vm386 = vmor %vm384, %vm385
    %v387 = vsel %vm386, %v379, %v383
    %v388 = vand.u32 2147483647, %v343
    %vm389 = vcmp.eq.f32.partialorder %v388, 8.507059e+37
    %v390 = vand.u32 %v343, 2147483648
    %v391 = vor.u32 1.1754944e-38, %v390
    %v392 = vsel %vm389, %v391, %v387
    %v393 = vmul.f32 1.0, %v392
    %v394 = vrcp.pop %v344
    %v395 = vmul.f32 %v344, %v394
    %v396 = vsub.f32 1.0, %v395
    %v397 = vmul.f32 %v394, %v396
    %v398 = vadd.f32 %v394, %v397
    %vm399 = vweird.f32 %v344
    %vm400 = vweird.f32 %v394
    %vm401 = vmor %vm399, %vm400
    %v402 = vsel %vm401, %v394, %v398
    %v403 = vand.u32 2147483647, %v344
    %vm404 = vcmp.eq.f32.partialorder %v403, 8.507059e+37
    %v405 = vand.u32 %v344, 2147483648
    %v406 = vor.u32 1.1754944e-38, %v405
    %v407 = vsel %vm404, %v406, %v402
    %v408 = vmul.f32 1.0, %v407
    %v409 = vrcp.pop %v345
    %v410 = vmul.f32 %v345, %v409
    %v411 = vsub.f32 1.0, %v410
    %v412 = vmul.f32 %v409, %v411
    %v413 = vadd.f32 %v409, %v412
    %vm414 = vweird.f32 %v345
    %vm415 = vweird.f32 %v409
    %vm416 = vmor %vm414, %vm415
    %v417 = vsel %vm416, %v409, %v413
    %v418 = vand.u32 2147483647, %v345
    %vm419 = vcmp.eq.f32.partialorder %v418, 8.507059e+37
    %v420 = vand.u32 %v345, 2147483648
    %v421 = vor.u32 1.1754944e-38, %v420
    %v422 = vsel %vm419, %v421, %v417
    %v423 = vmul.f32 1.0, %v422
    %v424 = vrcp.pop %v346
    %v425 = vmul.f32 %v346, %v424
    %v426 = vsub.f32 1.0, %v425
    %v427 = vmul.f32 %v424, %v426
    %v428 = vadd.f32 %v424, %v427
    %vm429 = vweird.f32 %v346
    %vm430 = vweird.f32 %v424
    %vm431 = vmor %vm429, %vm430
    %v432 = vsel %vm431, %v424, %v428
    %v433 = vand.u32 2147483647, %v346
    %vm434 = vcmp.eq.f32.partialorder %v433, 8.507059e+37
    %v435 = vand.u32 %v346, 2147483648
    %v436 = vor.u32 1.1754944e-38, %v435
    %v437 = vsel %vm434, %v436, %v432
    %v438 = vmul.f32 1.0, %v437
    %v439 = vrcp.pop %v347
    %v440 = vmul.f32 %v347, %v439
    %v441 = vsub.f32 1.0, %v440
    %v442 = vmul.f32 %v439, %v441
    %v443 = vadd.f32 %v439, %v442
    %vm444 = vweird.f32 %v347
    %vm445 = vweird.f32 %v439
    %vm446 = vmor %vm444, %vm445
    %v447 = vsel %vm446, %v439, %v443
    %v448 = vand.u32 2147483647, %v347
    %vm449 = vcmp.eq.f32.partialorder %v448, 8.507059e+37
    %v450 = vand.u32 %v347, 2147483648
    %v451 = vor.u32 1.1754944e-38, %v450
    %v452 = vsel %vm449, %v451, %v447
    %v453 = vmul.f32 1.0, %v452
    %v454 = vrcp.pop %v348
    %v455 = vmul.f32 %v348, %v454
    %v456 = vsub.f32 1.0, %v455
    %v457 = vmul.f32 %v454, %v456
    %v458 = vadd.f32 %v454, %v457
    %vm459 = vweird.f32 %v348
    %vm460 = vweird.f32 %v454
    %vm461 = vmor %vm459, %vm460
    %v462 = vsel %vm461, %v454, %v458
    %v463 = vand.u32 2147483647, %v348
    %vm464 = vcmp.eq.f32.partialorder %v463, 8.507059e+37
    %v465 = vand.u32 %v348, 2147483648
    %v466 = vor.u32 1.1754944e-38, %v465
    %v467 = vsel %vm464, %v466, %v462
    %v468 = vmul.f32 1.0, %v467
    %v469 = vperm.slane %v363, 0
    %v470 = vperm.slane %v378, 0
    %v471 = vperm.slane %v393, 0
    %v472 = vperm.slane %v408, 0
    %v473 = vperm.slane %v423, 0
    %v474 = vperm.slane %v438, 0
    %v475 = vperm.slane %v453, 0
    %v476 = vperm.slane %v468, 0
    %v477 = vmul.f32 %v52, %v469
    %v478 = vmul.f32 %v53, %v469
    %v479 = vmul.f32 %v54, %v469
    %v480 = vmul.f32 %v55, %v469
    %v481 = vmul.f32 %v56, %v470
    %v482 = vmul.f32 %v57, %v470
    %v483 = vmul.f32 %v58, %v470
    %v484 = vmul.f32 %v59, %v470
    %v485 = vmul.f32 %v60, %v471
    %v486 = vmul.f32 %v61, %v471
    %v487 = vmul.f32 %v62, %v471
    %v488 = vmul.f32 %v63, %v471
    %v489 = vmul.f32 %v64, %v472
    %v490 = vmul.f32 %v65, %v472
    %v491 = vmul.f32 %v66, %v472
    %v492 = vmul.f32 %v67, %v472
    %v493 = vmul.f32 %v68, %v473
    %v494 = vmul.f32 %v69, %v473
    %v495 = vmul.f32 %v70, %v473
    %v496 = vmul.f32 %v71, %v473
    %v497 = vmul.f32 %v72, %v474
    %v498 = vmul.f32 %v73, %v474
    %v499 = vmul.f32 %v74, %v474
    %v500 = vmul.f32 %v75, %v474
    %v501 = vmul.f32 %v76, %v475
    %v502 = vmul.f32 %v77, %v475
    %v503 = vmul.f32 %v78, %v475
    %v504 = vmul.f32 %v79, %v475
    %v505 = vmul.f32 %v80, %v476
    %v506 = vmul.f32 %v81, %v476
    %v507 = vmul.f32 %v82, %v476
    %v508 = vmul.f32 %v83, %v476
    %v509 = vsel %vm140, %v477, 0.0
    %510 = vadd.xlane.f32.xlu0 %v509
    %v511 = vpop.xlane.xlu0 %510
    %v512 = vsel %vm140, %v478, 0.0
    %513 = vadd.xlane.f32.xlu0 %v512
    %v514 = vpop.xlane.xlu0 %513
    %v515 = vsel %vm140, %v479, 0.0
    %516 = vadd.xlane.f32.xlu0 %v515
    %v517 = vpop.xlane.xlu0 %516
    %v518 = vsel %vm140, %v480, 0.0
    %519 = vadd.xlane.f32.xlu0 %v518
    %v520 = vpop.xlane.xlu0 %519
    %v521 = vsel %vm140, %v481, 0.0
    %522 = vadd.xlane.f32.xlu0 %v521
    %v523 = vpop.xlane.xlu0 %522
    %v524 = vsel %vm140, %v482, 0.0
    %525 = vadd.xlane.f32.xlu0 %v524
    %v526 = vpop.xlane.xlu0 %525
    %v527 = vsel %vm140, %v483, 0.0
    %528 = vadd.xlane.f32.xlu0 %v527
    %v529 = vpop.xlane.xlu0 %528
    %v530 = vsel %vm140, %v484, 0.0
    %531 = vadd.xlane.f32.xlu0 %v530
    %v532 = vpop.xlane.xlu0 %531
    %v533 = vsel %vm140, %v485, 0.0
    %534 = vadd.xlane.f32.xlu0 %v533
    %v535 = vpop.xlane.xlu0 %534
    %v536 = vsel %vm140, %v486, 0.0
    %537 = vadd.xlane.f32.xlu0 %v536
    %v538 = vpop.xlane.xlu0 %537
    %v539 = vsel %vm140, %v487, 0.0
    %540 = vadd.xlane.f32.xlu0 %v539
    %v541 = vpop.xlane.xlu0 %540
    %v542 = vsel %vm140, %v488, 0.0
    %543 = vadd.xlane.f32.xlu0 %v542
    %v544 = vpop.xlane.xlu0 %543
    %v545 = vsel %vm140, %v489, 0.0
    %546 = vadd.xlane.f32.xlu0 %v545
    %v547 = vpop.xlane.xlu0 %546
    %v548 = vsel %vm140, %v490, 0.0
    %549 = vadd.xlane.f32.xlu0 %v548
    %v550 = vpop.xlane.xlu0 %549
    %v551 = vsel %vm140, %v491, 0.0
    %552 = vadd.xlane.f32.xlu0 %v551
    %v553 = vpop.xlane.xlu0 %552
    %v554 = vsel %vm140, %v492, 0.0
    %555 = vadd.xlane.f32.xlu0 %v554
    %v556 = vpop.xlane.xlu0 %555
    %v557 = vsel %vm140, %v493, 0.0
    %558 = vadd.xlane.f32.xlu0 %v557
    %v559 = vpop.xlane.xlu0 %558
    %v560 = vsel %vm140, %v494, 0.0
    %561 = vadd.xlane.f32.xlu0 %v560
    %v562 = vpop.xlane.xlu0 %561
    %v563 = vsel %vm140, %v495, 0.0
    %564 = vadd.xlane.f32.xlu0 %v563
    %v565 = vpop.xlane.xlu0 %564
    %v566 = vsel %vm140, %v496, 0.0
    %567 = vadd.xlane.f32.xlu0 %v566
    %v568 = vpop.xlane.xlu0 %567
    %v569 = vsel %vm140, %v497, 0.0
    %570 = vadd.xlane.f32.xlu0 %v569
    %v571 = vpop.xlane.xlu0 %570
    %v572 = vsel %vm140, %v498, 0.0
    %573 = vadd.xlane.f32.xlu0 %v572
    %v574 = vpop.xlane.xlu0 %573
    %v575 = vsel %vm140, %v499, 0.0
    %576 = vadd.xlane.f32.xlu0 %v575
    %v577 = vpop.xlane.xlu0 %576
    %v578 = vsel %vm140, %v500, 0.0
    %579 = vadd.xlane.f32.xlu0 %v578
    %v580 = vpop.xlane.xlu0 %579
    %v581 = vsel %vm140, %v501, 0.0
    %582 = vadd.xlane.f32.xlu0 %v581
    %v583 = vpop.xlane.xlu0 %582
    %v584 = vsel %vm140, %v502, 0.0
    %585 = vadd.xlane.f32.xlu0 %v584
    %v586 = vpop.xlane.xlu0 %585
    %v587 = vsel %vm140, %v503, 0.0
    %588 = vadd.xlane.f32.xlu0 %v587
    %v589 = vpop.xlane.xlu0 %588
    %v590 = vsel %vm140, %v504, 0.0
    %591 = vadd.xlane.f32.xlu0 %v590
    %v592 = vpop.xlane.xlu0 %591
    %v593 = vsel %vm140, %v505, 0.0
    %594 = vadd.xlane.f32.xlu0 %v593
    %v595 = vpop.xlane.xlu0 %594
    %v596 = vsel %vm140, %v506, 0.0
    %597 = vadd.xlane.f32.xlu0 %v596
    %v598 = vpop.xlane.xlu0 %597
    %v599 = vsel %vm140, %v507, 0.0
    %600 = vadd.xlane.f32.xlu0 %v599
    %v601 = vpop.xlane.xlu0 %600
    %v602 = vsel %vm140, %v508, 0.0
    %603 = vadd.xlane.f32.xlu0 %v602
    %v604 = vpop.xlane.xlu0 %603
    %v605 = vsel %vm140, %v52, 0.0
    %606 = vadd.xlane.f32.xlu0 %v605
    %v607 = vpop.xlane.xlu0 %606
    %v608 = vsel %vm140, %v53, 0.0
    %609 = vadd.xlane.f32.xlu0 %v608
    %v610 = vpop.xlane.xlu0 %609
    %v611 = vsel %vm140, %v54, 0.0
    %612 = vadd.xlane.f32.xlu0 %v611
    %v613 = vpop.xlane.xlu0 %612
    %v614 = vsel %vm140, %v55, 0.0
    %615 = vadd.xlane.f32.xlu0 %v614
    %v616 = vpop.xlane.xlu0 %615
    %v617 = vsel %vm140, %v56, 0.0
    %618 = vadd.xlane.f32.xlu0 %v617
    %v619 = vpop.xlane.xlu0 %618
    %v620 = vsel %vm140, %v57, 0.0
    %621 = vadd.xlane.f32.xlu0 %v620
    %v622 = vpop.xlane.xlu0 %621
    %v623 = vsel %vm140, %v58, 0.0
    %624 = vadd.xlane.f32.xlu0 %v623
    %v625 = vpop.xlane.xlu0 %624
    %v626 = vsel %vm140, %v59, 0.0
    %627 = vadd.xlane.f32.xlu0 %v626
    %v628 = vpop.xlane.xlu0 %627
    %v629 = vsel %vm140, %v60, 0.0
    %630 = vadd.xlane.f32.xlu0 %v629
    %v631 = vpop.xlane.xlu0 %630
    %v632 = vsel %vm140, %v61, 0.0
    %633 = vadd.xlane.f32.xlu0 %v632
    %v634 = vpop.xlane.xlu0 %633
    %v635 = vsel %vm140, %v62, 0.0
    %636 = vadd.xlane.f32.xlu0 %v635
    %v637 = vpop.xlane.xlu0 %636
    %v638 = vsel %vm140, %v63, 0.0
    %639 = vadd.xlane.f32.xlu0 %v638
    %v640 = vpop.xlane.xlu0 %639
    %v641 = vsel %vm140, %v64, 0.0
    %642 = vadd.xlane.f32.xlu0 %v641
    %v643 = vpop.xlane.xlu0 %642
    %v644 = vsel %vm140, %v65, 0.0
    %645 = vadd.xlane.f32.xlu0 %v644
    %v646 = vpop.xlane.xlu0 %645
    %v647 = vsel %vm140, %v66, 0.0
    %648 = vadd.xlane.f32.xlu0 %v647
    %v649 = vpop.xlane.xlu0 %648
    %v650 = vsel %vm140, %v67, 0.0
    %651 = vadd.xlane.f32.xlu0 %v650
    %v652 = vpop.xlane.xlu0 %651
    %v653 = vsel %vm140, %v68, 0.0
    %654 = vadd.xlane.f32.xlu0 %v653
    %v655 = vpop.xlane.xlu0 %654
    %v656 = vsel %vm140, %v69, 0.0
    %657 = vadd.xlane.f32.xlu0 %v656
    %v658 = vpop.xlane.xlu0 %657
    %v659 = vsel %vm140, %v70, 0.0
    %660 = vadd.xlane.f32.xlu0 %v659
    %v661 = vpop.xlane.xlu0 %660
    %v662 = vsel %vm140, %v71, 0.0
    %663 = vadd.xlane.f32.xlu0 %v662
    %v664 = vpop.xlane.xlu0 %663
    %v665 = vsel %vm140, %v72, 0.0
    %666 = vadd.xlane.f32.xlu0 %v665
    %v667 = vpop.xlane.xlu0 %666
    %v668 = vsel %vm140, %v73, 0.0
    %669 = vadd.xlane.f32.xlu0 %v668
    %v670 = vpop.xlane.xlu0 %669
    %v671 = vsel %vm140, %v74, 0.0
    %672 = vadd.xlane.f32.xlu0 %v671
    %v673 = vpop.xlane.xlu0 %672
    %v674 = vsel %vm140, %v75, 0.0
    %675 = vadd.xlane.f32.xlu0 %v674
    %v676 = vpop.xlane.xlu0 %675
    %v677 = vsel %vm140, %v76, 0.0
    %678 = vadd.xlane.f32.xlu0 %v677
    %v679 = vpop.xlane.xlu0 %678
    %v680 = vsel %vm140, %v77, 0.0
    %681 = vadd.xlane.f32.xlu0 %v680
    %v682 = vpop.xlane.xlu0 %681
    %v683 = vsel %vm140, %v78, 0.0
    %684 = vadd.xlane.f32.xlu0 %v683
    %v685 = vpop.xlane.xlu0 %684
    %v686 = vsel %vm140, %v79, 0.0
    %687 = vadd.xlane.f32.xlu0 %v686
    %v688 = vpop.xlane.xlu0 %687
    %v689 = vsel %vm140, %v80, 0.0
    %690 = vadd.xlane.f32.xlu0 %v689
    %v691 = vpop.xlane.xlu0 %690
    %v692 = vsel %vm140, %v81, 0.0
    %693 = vadd.xlane.f32.xlu0 %v692
    %v694 = vpop.xlane.xlu0 %693
    %v695 = vsel %vm140, %v82, 0.0
    %696 = vadd.xlane.f32.xlu0 %v695
    %v697 = vpop.xlane.xlu0 %696
    %v698 = vsel %vm140, %v83, 0.0
    %699 = vadd.xlane.f32.xlu0 %v698
    %v700 = vpop.xlane.xlu0 %699
    %p701 = scmp.eq.s32.totalorder 0, 0
    // Predicated region
    $region46: #{tpu_custom_call.1} parent=1 // pred_check
      %p702 = pneg %p701
    $region47: #{tpu_custom_call.1} parent=1 // pred_check_branch
      %704 = sbr.rel (%p702) target = $region49
    $region48: #{tpu_custom_call.1} parent=1 // pred_region
      %v737 = vlaneseq
      %v738 = vand.u32 %v737, 127
      %v739 = vperm.slane %v511, %v738
      %v740 = vadd.s32 %v738, 4294967288
      %v741 = vperm.slane %v514, %v740
      %vm742 = vcmask 130112
      %v743 = vsel %vm742, %v741, %v739
      %v744 = vadd.s32 %v738, 4294967280
      %v745 = vperm.slane %v517, %v744
      %vm746 = vcmask 195712
      %v747 = vsel %vm746, %v745, %v743
      %v748 = vadd.s32 %v738, 4294967272
      %v749 = vperm.slane %v520, %v748
      %vm750 = vcmask 261312
      %v751 = vsel %vm750, %v749, %v747
      %v752 = vperm.slane %v523, %v738
      %v753 = vperm.slane %v526, %v740
      %v754 = vsel %vm742, %v753, %v752
      %v755 = vperm.slane %v529, %v744
      %v756 = vsel %vm746, %v755, %v754
      %v757 = vperm.slane %v532, %v748
      %v758 = vsel %vm750, %v757, %v756
      %v759 = vperm.slane %v535, %v738
      %v760 = vperm.slane %v538, %v740
      %v761 = vsel %vm742, %v760, %v759
      %v762 = vperm.slane %v541, %v744
      %v763 = vsel %vm746, %v762, %v761
      %v764 = vperm.slane %v544, %v748
      %v765 = vsel %vm750, %v764, %v763
      %v766 = vperm.slane %v547, %v738
      %v767 = vperm.slane %v550, %v740
      %v768 = vsel %vm742, %v767, %v766
      %v769 = vperm.slane %v553, %v744
      %v770 = vsel %vm746, %v769, %v768
      %v771 = vperm.slane %v556, %v748
      %v772 = vsel %vm750, %v771, %v770
      %v773 = vperm.slane %v559, %v738
      %v774 = vperm.slane %v562, %v740
      %v775 = vsel %vm742, %v774, %v773
      %v776 = vperm.slane %v565, %v744
      %v777 = vsel %vm746, %v776, %v775
      %v778 = vperm.slane %v568, %v748
      %v779 = vsel %vm750, %v778, %v777
      %v780 = vperm.slane %v571, %v738
      %v781 = vperm.slane %v574, %v740
      %v782 = vsel %vm742, %v781, %v780
      %v783 = vperm.slane %v577, %v744
      %v784 = vsel %vm746, %v783, %v782
      %v785 = vperm.slane %v580, %v748
      %v786 = vsel %vm750, %v785, %v784
      %v787 = vperm.slane %v583, %v738
      %v788 = vperm.slane %v586, %v740
      %v789 = vsel %vm742, %v788, %v787
      %v790 = vperm.slane %v589, %v744
      %v791 = vsel %vm746, %v790, %v789
      %v792 = vperm.slane %v592, %v748
      %v793 = vsel %vm750, %v792, %v791
      %v794 = vperm.slane %v595, %v738
      %v795 = vperm.slane %v598, %v740
      %v796 = vsel %vm742, %v795, %v794
      %v797 = vperm.slane %v601, %v744
      %v798 = vsel %vm746, %v797, %v796
      %v799 = vperm.slane %v604, %v748
      %v800 = vsel %vm750, %v799, %v798
      %vm801 = vcmask 1041409
      %v802 = vsel %vm801, %v758, %v751
      %vm803 = vcmask 1042434
      %v804 = vsel %vm803, %v765, %v802
      %vm805 = vcmask 1043459
      %v806 = vsel %vm805, %v772, %v804
      %vm807 = vcmask 1044484
      %v808 = vsel %vm807, %v779, %v806
      %vm809 = vcmask 1045509
      %v810 = vsel %vm809, %v786, %v808
      %vm811 = vcmask 1046534
      %v812 = vsel %vm811, %v793, %v810
      %vm813 = vcmask 1047559
      %v814 = vsel %vm813, %v800, %v812
      %vm816 = vcmask 261120
      %817 = vst.msk [vmem:[#allocation2] sm:$0xff] %vm816, %v814
      %v850 = vperm.slane %v607, %v738
      %v851 = vperm.slane %v610, %v740
      %v852 = vsel %vm742, %v851, %v850
      %v853 = vperm.slane %v613, %v744
      %v854 = vsel %vm746, %v853, %v852
      %v855 = vperm.slane %v616, %v748
      %v856 = vsel %vm750, %v855, %v854
      %v857 = vperm.slane %v619, %v738
      %v858 = vperm.slane %v622, %v740
      %v859 = vsel %vm742, %v858, %v857
      %v860 = vperm.slane %v625, %v744
      %v861 = vsel %vm746, %v860, %v859
      %v862 = vperm.slane %v628, %v748
      %v863 = vsel %vm750, %v862, %v861
      %v864 = vperm.slane %v631, %v738
      %v865 = vperm.slane %v634, %v740
      %v866 = vsel %vm742, %v865, %v864
      %v867 = vperm.slane %v637, %v744
      %v868 = vsel %vm746, %v867, %v866
      %v869 = vperm.slane %v640, %v748
      %v870 = vsel %vm750, %v869, %v868
      %v871 = vperm.slane %v643, %v738
      %v872 = vperm.slane %v646, %v740
      %v873 = vsel %vm742, %v872, %v871
      %v874 = vperm.slane %v649, %v744
      %v875 = vsel %vm746, %v874, %v873
      %v876 = vperm.slane %v652, %v748
      %v877 = vsel %vm750, %v876, %v875
      %v878 = vperm.slane %v655, %v738
      %v879 = vperm.slane %v658, %v740
      %v880 = vsel %vm742, %v879, %v878
      %v881 = vperm.slane %v661, %v744
      %v882 = vsel %vm746, %v881, %v880
      %v883 = vperm.slane %v664, %v748
      %v884 = vsel %vm750, %v883, %v882
      %v885 = vperm.slane %v667, %v738
      %v886 = vperm.slane %v670, %v740
      %v887 = vsel %vm742, %v886, %v885
      %v888 = vperm.slane %v673, %v744
      %v889 = vsel %vm746, %v888, %v887
      %v890 = vperm.slane %v676, %v748
      %v891 = vsel %vm750, %v890, %v889
      %v892 = vperm.slane %v679, %v738
      %v893 = vperm.slane %v682, %v740
      %v894 = vsel %vm742, %v893, %v892
      %v895 = vperm.slane %v685, %v744
      %v896 = vsel %vm746, %v895, %v894
      %v897 = vperm.slane %v688, %v748
      %v898 = vsel %vm750, %v897, %v896
      %v899 = vperm.slane %v691, %v738
      %v900 = vperm.slane %v694, %v740
      %v901 = vsel %vm742, %v900, %v899
      %v902 = vperm.slane %v697, %v744
      %v903 = vsel %vm746, %v902, %v901
      %v904 = vperm.slane %v700, %v748
      %v905 = vsel %vm750, %v904, %v903
      %v906 = vsel %vm801, %v863, %v856
      %v907 = vsel %vm803, %v870, %v906
      %v908 = vsel %vm805, %v877, %v907
      %v909 = vsel %vm807, %v884, %v908
      %v910 = vsel %vm809, %v891, %v909
      %v911 = vsel %vm811, %v898, %v910
      %v912 = vsel %vm813, %v905, %v911
      %914 = vst.msk [vmem:[#allocation3] sm:$0xff] %vm816, %v912
    $region49: #{tpu_custom_call.1} parent=1 // pred_fallthru
      _
    %p915 = scmp.gt.s32.totalorder 0, 0
    // Predicated region
    $region50: #{tpu_custom_call.1} parent=1 // pred_check
      %p916 = pneg %p915
    $region51: #{tpu_custom_call.1} parent=1 // pred_check_branch
      %918 = sbr.rel (%p916) target = $region53
    $region52: #{tpu_custom_call.1} parent=1 // pred_region
      %v919 = vld [vmem:[#allocation2] sm:$0xff]
      %v952 = vlaneseq
      %v953 = vand.u32 %v952, 127
      %v954 = vperm.slane %v511, %v953
      %v955 = vadd.s32 %v953, 4294967288
      %v956 = vperm.slane %v514, %v955
      %vm957 = vcmask 130112
      %v958 = vsel %vm957, %v956, %v954
      %v959 = vadd.s32 %v953, 4294967280
      %v960 = vperm.slane %v517, %v959
      %vm961 = vcmask 195712
      %v962 = vsel %vm961, %v960, %v958
      %v963 = vadd.s32 %v953, 4294967272
      %v964 = vperm.slane %v520, %v963
      %vm965 = vcmask 261312
      %v966 = vsel %vm965, %v964, %v962
      %v967 = vperm.slane %v523, %v953
      %v968 = vperm.slane %v526, %v955
      %v969 = vsel %vm957, %v968, %v967
      %v970 = vperm.slane %v529, %v959
      %v971 = vsel %vm961, %v970, %v969
      %v972 = vperm.slane %v532, %v963
      %v973 = vsel %vm965, %v972, %v971
      %v974 = vperm.slane %v535, %v953
      %v975 = vperm.slane %v538, %v955
      %v976 = vsel %vm957, %v975, %v974
      %v977 = vperm.slane %v541, %v959
      %v978 = vsel %vm961, %v977, %v976
      %v979 = vperm.slane %v544, %v963
      %v980 = vsel %vm965, %v979, %v978
      %v981 = vperm.slane %v547, %v953
      %v982 = vperm.slane %v550, %v955
      %v983 = vsel %vm957, %v982, %v981
      %v984 = vperm.slane %v553, %v959
      %v985 = vsel %vm961, %v984, %v983
      %v986 = vperm.slane %v556, %v963
      %v987 = vsel %vm965, %v986, %v985
      %v988 = vperm.slane %v559, %v953
      %v989 = vperm.slane %v562, %v955
      %v990 = vsel %vm957, %v989, %v988
      %v991 = vperm.slane %v565, %v959
      %v992 = vsel %vm961, %v991, %v990
      %v993 = vperm.slane %v568, %v963
      %v994 = vsel %vm965, %v993, %v992
      %v995 = vperm.slane %v571, %v953
      %v996 = vperm.slane %v574, %v955
      %v997 = vsel %vm957, %v996, %v995
      %v998 = vperm.slane %v577, %v959
      %v999 = vsel %vm961, %v998, %v997
      %v1000 = vperm.slane %v580, %v963
      %v1001 = vsel %vm965, %v1000, %v999
      %v1002 = vperm.slane %v583, %v953
      %v1003 = vperm.slane %v586, %v955
      %v1004 = vsel %vm957, %v1003, %v1002
      %v1005 = vperm.slane %v589, %v959
      %v1006 = vsel %vm961, %v1005, %v1004
      %v1007 = vperm.slane %v592, %v963
      %v1008 = vsel %vm965, %v1007, %v1006
      %v1009 = vperm.slane %v595, %v953
      %v1010 = vperm.slane %v598, %v955
      %v1011 = vsel %vm957, %v1010, %v1009
      %v1012 = vperm.slane %v601, %v959
      %v1013 = vsel %vm961, %v1012, %v1011
      %v1014 = vperm.slane %v604, %v963
      %v1015 = vsel %vm965, %v1014, %v1013
      %vm1016 = vcmask 1041409
      %v1017 = vsel %vm1016, %v973, %v966
      %vm1018 = vcmask 1042434
      %v1019 = vsel %vm1018, %v980, %v1017
      %vm1020 = vcmask 1043459
      %v1021 = vsel %vm1020, %v987, %v1019
      %vm1022 = vcmask 1044484
      %v1023 = vsel %vm1022, %v994, %v1021
      %vm1024 = vcmask 1045509
      %v1025 = vsel %vm1024, %v1001, %v1023
      %vm1026 = vcmask 1046534
      %v1027 = vsel %vm1026, %v1008, %v1025
      %vm1028 = vcmask 1047559
      %v1029 = vsel %vm1028, %v1015, %v1027
      %v1031 = vadd.f32 %v919, %v1029
      %vm1032 = vcmask 261120
      %1033 = vst.msk [vmem:[#allocation2] sm:$0xff] %vm1032, %v1031
      %v1034 = vld [vmem:[#allocation3] sm:$0xff]
      %v1067 = vperm.slane %v607, %v953
      %v1068 = vperm.slane %v610, %v955
      %v1069 = vsel %vm957, %v1068, %v1067
      %v1070 = vperm.slane %v613, %v959
      %v1071 = vsel %vm961, %v1070, %v1069
      %v1072 = vperm.slane %v616, %v963
      %v1073 = vsel %vm965, %v1072, %v1071
      %v1074 = vperm.slane %v619, %v953
      %v1075 = vperm.slane %v622, %v955
      %v1076 = vsel %vm957, %v1075, %v1074
      %v1077 = vperm.slane %v625, %v959
      %v1078 = vsel %vm961, %v1077, %v1076
      %v1079 = vperm.slane %v628, %v963
      %v1080 = vsel %vm965, %v1079, %v1078
      %v1081 = vperm.slane %v631, %v953
      %v1082 = vperm.slane %v634, %v955
      %v1083 = vsel %vm957, %v1082, %v1081
      %v1084 = vperm.slane %v637, %v959
      %v1085 = vsel %vm961, %v1084, %v1083
      %v1086 = vperm.slane %v640, %v963
      %v1087 = vsel %vm965, %v1086, %v1085
      %v1088 = vperm.slane %v643, %v953
      %v1089 = vperm.slane %v646, %v955
      %v1090 = vsel %vm957, %v1089, %v1088
      %v1091 = vperm.slane %v649, %v959
      %v1092 = vsel %vm961, %v1091, %v1090
      %v1093 = vperm.slane %v652, %v963
      %v1094 = vsel %vm965, %v1093, %v1092
      %v1095 = vperm.slane %v655, %v953
      %v1096 = vperm.slane %v658, %v955
      %v1097 = vsel %vm957, %v1096, %v1095
      %v1098 = vperm.slane %v661, %v959
      %v1099 = vsel %vm961, %v1098, %v1097
      %v1100 = vperm.slane %v664, %v963
      %v1101 = vsel %vm965, %v1100, %v1099
      %v1102 = vperm.slane %v667, %v953
      %v1103 = vperm.slane %v670, %v955
      %v1104 = vsel %vm957, %v1103, %v1102
      %v1105 = vperm.slane %v673, %v959
      %v1106 = vsel %vm961, %v1105, %v1104
      %v1107 = vperm.slane %v676, %v963
      %v1108 = vsel %vm965, %v1107, %v1106
      %v1109 = vperm.slane %v679, %v953
      %v1110 = vperm.slane %v682, %v955
      %v1111 = vsel %vm957, %v1110, %v1109
      %v1112 = vperm.slane %v685, %v959
      %v1113 = vsel %vm961, %v1112, %v1111
      %v1114 = vperm.slane %v688, %v963
      %v1115 = vsel %vm965, %v1114, %v1113
      %v1116 = vperm.slane %v691, %v953
      %v1117 = vperm.slane %v694, %v955
      %v1118 = vsel %vm957, %v1117, %v1116
      %v1119 = vperm.slane %v697, %v959
      %v1120 = vsel %vm961, %v1119, %v1118
      %v1121 = vperm.slane %v700, %v963
      %v1122 = vsel %vm965, %v1121, %v1120
      %v1123 = vsel %vm1016, %v1080, %v1073
      %v1124 = vsel %vm1018, %v1087, %v1123
      %v1125 = vsel %vm1020, %v1094, %v1124
      %v1126 = vsel %vm1022, %v1101, %v1125
      %v1127 = vsel %vm1024, %v1108, %v1126
      %v1128 = vsel %vm1026, %v1115, %v1127
      %v1129 = vsel %vm1028, %v1122, %v1128
      %v1131 = vadd.f32 %v1034, %v1129
      %1132 = vst.msk [vmem:[#allocation3] sm:$0xff] %vm1032, %v1131
    $region53: #{tpu_custom_call.1} parent=1 // pred_fallthru
      _
    // Predicated region
    $region54: #{tpu_custom_call.1} parent=1 // pred_check
      %p1133 = pneg %p701
    $region55: #{tpu_custom_call.1} parent=1 // pred_check_branch
      %1135 = sbr.rel (%p1133) target = $region57
    $region56: #{tpu_custom_call.1} parent=1 // pred_region
      %v1136 = vld [vmem:[#allocation2] sm:$0xff]
      %v1137 = vmul.f32 %v1136, 0.015625
      %v1138 = vld [vmem:[#allocation3] sm:$0xff]
      %v1139 = vmul.f32 %v1138, 0.015625
      %v1140 = vsub.f32 %v1139, %v1137
      %v1141 = vld [vmem:[%s4] sm:$0xff]
      %v1142 = vld [vmem:[%s4 + $0x8] sm:$0xff]
      %v1143 = vld [vmem:[%s4 + $0x10] sm:$0xff]
      %v1144 = vld [vmem:[%s4 + $0x18] sm:$0xff]
      %v1145 = vld [vmem:[%s4 + $0x20] sm:$0xff]
      %v1146 = vld [vmem:[%s4 + $0x28] sm:$0xff]
      %v1147 = vld [vmem:[%s4 + $0x30] sm:$0xff]
      %v1148 = vld [vmem:[%s4 + $0x38] sm:$0xff]
      %vm1149 = vcmask 261120
      %v1151 = vsel %vm1149, %v1140, 0
      %1153 = vmatpush.msra.mxu0 0.0
      %1154 = vmatpush.msra.mxu0 0.0
      %1155 = vmatpush.msra.mxu0 0.0
      %1156 = vmatpush.msra.mxu0 0.0
      %1157 = vmatpush.msra.mxu0 0.0
      %1158 = vmatpush.msra.mxu0 0.0
      %1159 = vmatpush.msra.mxu0 0.0
      %1160 = vmatpush.msra.mxu0 0.0
      %1161 = vmatpush.msra.mxu0 0.0
      %1162 = vmatpush.msra.mxu0 0.0
      %1163 = vmatpush.msra.mxu0 0.0
      %1164 = vmatpush.msra.mxu0 0.0
      %1165 = vmatpush.msra.mxu0 %v1148
      %1166 = vmatpush.msra.mxu0 %v1147
      %1167 = vmatpush.msra.mxu0 %v1146
      %1168 = vmatpush.msra.mxu0 %v1145
      %1169 = vmatmul.f32.gmra.mxu0 %v1151
      %v1170 = vpop.f32.mrf.mxu0
      %v1171 = vadd.f32 0.0, %v1170
      %1172 = vdwg.mxu0
      %v1174 = vsel %vm1149, %v1137, 0
      %1176 = vmatpush.msra.mxu0 0.0
      %1177 = vmatpush.msra.mxu0 0.0
      %1178 = vmatpush.msra.mxu0 0.0
      %1179 = vmatpush.msra.mxu0 0.0
      %1180 = vmatpush.msra.mxu0 0.0
      %1181 = vmatpush.msra.mxu0 0.0
      %1182 = vmatpush.msra.mxu0 0.0
      %1183 = vmatpush.msra.mxu0 0.0
      %1184 = vmatpush.msra.mxu0 0.0
      %1185 = vmatpush.msra.mxu0 0.0
      %1186 = vmatpush.msra.mxu0 0.0
      %1187 = vmatpush.msra.mxu0 0.0
      %1188 = vmatpush.msra.mxu0 %v1144
      %1189 = vmatpush.msra.mxu0 %v1143
      %1190 = vmatpush.msra.mxu0 %v1142
      %1191 = vmatpush.msra.mxu0 %v1141
      %1192 = vmatmul.f32.gmra.mxu0 %v1174
      %v1193 = vpop.f32.mrf.mxu0
      %v1194 = vadd.f32 %v1171, %v1193
      %1195 = vdwg.mxu0
      %v1196 = vld [vmem:[%s5] sm:$0x1]
      %v1198 = vperm.slane %v1196, 0
      %v1200 = vadd.f32 %v1194, %v1198
      %v1201 = vmax.f32 %v1200, 0.0
      %v1202 = vld [vmem:[%s3 + $0x1] sm:$0x1]
      %v1203 = vld [vmem:[%s3 + $0x2] sm:$0x1]
      %v1204 = vld [vmem:[%s6] sm:$0x1]
      %1206 = vset.pattern.permute.xlu0 0
      %1207 = vperm.xlu0 %1206, %v1201
      %v1208 = vpop.permute.xlu0 %1207
      %v1210 = vperm.slane %v1204, 0
      %v1211 = vmul.f32 %v1208, %v1210
      %v1212 = vperm.slane %v1202, 0
      %v1213 = vadd.f32 %v1212, %v1211
      %v1214 = vld [vmem:[%s7] sm:$0x1]
      %v1215 = vperm.slane %v1214, 0
      %v1216 = vmul.f32 %v1208, %v1215
      %v1217 = vperm.slane %v1203, 0
      %v1218 = vadd.f32 %v1217, %v1216
      %v1219 = vld [vmem:[%s6 + $0x1] sm:$0x1]
      %1220 = vset.pattern.permute.xlu0 1
      %1221 = vperm.xlu0 %1220, %v1201
      %v1222 = vpop.permute.xlu0 %1221
      %v1224 = vperm.slane %v1219, 0
      %v1225 = vmul.f32 %v1222, %v1224
      %v1226 = vadd.f32 %v1213, %v1225
      %v1227 = vld [vmem:[%s7 + $0x1] sm:$0x1]
      %v1228 = vperm.slane %v1227, 0
      %v1229 = vmul.f32 %v1222, %v1228
      %v1230 = vadd.f32 %v1218, %v1229
      %v1231 = vxor.u32 %v1226, 2147483648
      %v1232 = vmul.f32 %v1231, 1.442695
      %v1233 = vpow.pop %v1232
      %v1234 = vadd.f32 %v1233, 1.0
      %v1235 = vrcp.pop %v1234
      %v1236 = vmul.f32 %v1234, %v1235
      %v1237 = vsub.f32 1.0, %v1236
      %v1238 = vmul.f32 %v1235, %v1237
      %v1239 = vadd.f32 %v1235, %v1238
      %vm1240 = vweird.f32 %v1234
      %vm1241 = vweird.f32 %v1235
      %vm1242 = vmor %vm1240, %vm1241
      %v1243 = vsel %vm1242, %v1235, %v1239
      %v1244 = vand.u32 2147483647, %v1234
      %vm1245 = vcmp.eq.f32.partialorder %v1244, 8.507059e+37
      %v1246 = vand.u32 %v1234, 2147483648
      %v1247 = vor.u32 1.1754944e-38, %v1246
      %v1248 = vsel %vm1245, %v1247, %v1243
      %v1249 = vmul.f32 1.0, %v1248
      %v1250 = vxor.u32 %v1230, 2147483648
      %v1251 = vmul.f32 %v1250, 1.442695
      %v1252 = vpow.pop %v1251
      %v1253 = vadd.f32 %v1252, 1.0
      %v1254 = vrcp.pop %v1253
      %v1255 = vmul.f32 %v1253, %v1254
      %v1256 = vsub.f32 1.0, %v1255
      %v1257 = vmul.f32 %v1254, %v1256
      %v1258 = vadd.f32 %v1254, %v1257
      %vm1259 = vweird.f32 %v1253
      %vm1260 = vweird.f32 %v1254
      %vm1261 = vmor %vm1259, %vm1260
      %v1262 = vsel %vm1261, %v1254, %v1258
      %v1263 = vand.u32 2147483647, %v1253
      %vm1264 = vcmp.eq.f32.partialorder %v1263, 8.507059e+37
      %v1265 = vand.u32 %v1253, 2147483648
      %v1266 = vor.u32 1.1754944e-38, %v1265
      %v1267 = vsel %vm1264, %v1266, %v1262
      %v1268 = vmul.f32 1.0, %v1267
      %v1269 = vadd.f32 %v1249, 1.0
      %v1270 = vmul.f32 %v1137, %v1269
      %v1271 = vadd.f32 %v1268, 1.0
      %v1272 = vmul.f32 %v1140, %v1271
      %v1273 = vld [vmem:[%s8] sm:$0xff]
      %v1274 = vld [vmem:[%s8 + $0x8] sm:$0xff]
      %v1275 = vld [vmem:[%s8 + $0x10] sm:$0xff]
      %v1276 = vld [vmem:[%s8 + $0x18] sm:$0xff]
      %v1277 = vld [vmem:[%s8 + $0x20] sm:$0xff]
      %v1278 = vld [vmem:[%s8 + $0x28] sm:$0xff]
      %v1279 = vld [vmem:[%s8 + $0x30] sm:$0xff]
      %v1280 = vld [vmem:[%s8 + $0x38] sm:$0xff]
      %v1282 = vsel %vm1149, %v1272, 0
      %1284 = vmatpush.msra.mxu0 0.0
      %1285 = vmatpush.msra.mxu0 0.0
      %1286 = vmatpush.msra.mxu0 0.0
      %1287 = vmatpush.msra.mxu0 0.0
      %1288 = vmatpush.msra.mxu0 0.0
      %1289 = vmatpush.msra.mxu0 0.0
      %1290 = vmatpush.msra.mxu0 0.0
      %1291 = vmatpush.msra.mxu0 0.0
      %1292 = vmatpush.msra.mxu0 0.0
      %1293 = vmatpush.msra.mxu0 0.0
      %1294 = vmatpush.msra.mxu0 0.0
      %1295 = vmatpush.msra.mxu0 0.0
      %1296 = vmatpush.msra.mxu0 %v1280
      %1297 = vmatpush.msra.mxu0 %v1279
      %1298 = vmatpush.msra.mxu0 %v1278
      %1299 = vmatpush.msra.mxu0 %v1277
      %1300 = vmatmul.f32.gmra.mxu0 %v1282
      %v1301 = vpop.f32.mrf.mxu0
      %v1302 = vadd.f32 0.0, %v1301
      %1303 = vdwg.mxu0
      %v1305 = vsel %vm1149, %v1270, 0
      %1307 = vmatpush.msra.mxu0 0.0
      %1308 = vmatpush.msra.mxu0 0.0
      %1309 = vmatpush.msra.mxu0 0.0
      %1310 = vmatpush.msra.mxu0 0.0
      %1311 = vmatpush.msra.mxu0 0.0
      %1312 = vmatpush.msra.mxu0 0.0
      %1313 = vmatpush.msra.mxu0 0.0
      %1314 = vmatpush.msra.mxu0 0.0
      %1315 = vmatpush.msra.mxu0 0.0
      %1316 = vmatpush.msra.mxu0 0.0
      %1317 = vmatpush.msra.mxu0 0.0
      %1318 = vmatpush.msra.mxu0 0.0
      %1319 = vmatpush.msra.mxu0 %v1276
      %1320 = vmatpush.msra.mxu0 %v1275
      %1321 = vmatpush.msra.mxu0 %v1274
      %1322 = vmatpush.msra.mxu0 %v1273
      %1323 = vmatmul.f32.gmra.mxu0 %v1305
      %v1324 = vpop.f32.mrf.mxu0
      %v1325 = vadd.f32 %v1302, %v1324
      %1326 = vdwg.mxu0
      %v1327 = vld [vmem:[%s9] sm:$0x1]
      %v1329 = vperm.slane %v1327, 0
      %v1331 = vadd.f32 %v1325, %v1329
      %v1333 = vrot.slane %v1331, 1
      %v1334 = vrot.slane %v1331, 2
      %v1335 = vrot.slane %v1331, 3
      %v1336 = vrot.slane %v1331, 4
      %v1337 = vrot.slane %v1331, 5
      %v1338 = vrot.slane %v1331, 6
      %v1339 = vrot.slane %v1331, 7
      %1347 = vst [vmem:[#allocation7] sm:$0x1] %v1331
      %1348 = vst [vmem:[#allocation7 + $0x1] sm:$0x1] %v1333
      %1349 = vst [vmem:[#allocation7 + $0x2] sm:$0x1] %v1334
      %1350 = vst [vmem:[#allocation7 + $0x3] sm:$0x1] %v1335
      %1351 = vst [vmem:[#allocation7 + $0x4] sm:$0x1] %v1336
      %1352 = vst [vmem:[#allocation7 + $0x5] sm:$0x1] %v1337
      %1353 = vst [vmem:[#allocation7 + $0x6] sm:$0x1] %v1338
      %1354 = vst [vmem:[#allocation7 + $0x7] sm:$0x1] %v1339
    $region57: #{tpu_custom_call.1} parent=1 // pred_fallthru
      _
    // Predicated region
    $region58: #{tpu_custom_call.1} parent=1 // pred_check
      _
    $region59: #{tpu_custom_call.1} parent=1 // pred_check_branch
      %1356 = sbr.rel (0) target = $region61
    $region60: #{tpu_custom_call.1} parent=1 // pred_region
      %1358 = vsyncadd [#allocation6], 0
      %s1359 = sshll.u32 [#allocation7], 4
      %s1360 = int_to_ptr.vmem [resolvable:$true] %s1359
      %s1361 = sshll.u32 %s10, 4
      %s1362 = int_to_ptr.hbm [resolvable:$true] %s1361
      %1367 = dma.vmem_to_hbm [thread:$0]  %s1360, 128, %s1362, [#allocation6], 16, 16, 1
    $region61: #{tpu_custom_call.1} parent=1 // pred_fallthru
      _
    // Predicated region
    $region62: #{tpu_custom_call.1} parent=1 // pred_check
      _
    $region63: #{tpu_custom_call.1} parent=1 // pred_check_branch
      %1369 = sbr.rel (0) target = $region65
    $region64: #{tpu_custom_call.1} parent=1 // pred_region
      %1371 = dma.done [#allocation6], 128
    $region65: #{tpu_custom_call.1} parent=1 // pred_fallthru
      _
    %1372 = vsyncpa [#allocation5], 1
    %1373 = vsyncpa [#allocation6], 1

</llo_original>
